<compile_context>
chip_gen: v5e
topology: v5e:2x2
jax: 0.10.0
libtpu: 0.0.40
codegen_flags: <defaults>
</compile_context>

<pallas_src>
import math
import functools

import jax
import jax.numpy as jnp
from jax.experimental import pallas as pl
from jax.experimental.pallas import tpu as pltpu

# ----------------------------- config (small) --------------------------------
DMODEL = 128          # dmodel == dembed
DFF = 256             # d_ff
HEAD = 4
DHEAD = DMODEL // HEAD
LAYERS = 2            # encoder layers == decoder layers
EPS = 1e-5
IN_VOCAB = 64
OUT_VOCAB = 64
PAD_VOCAB = 128       # final projection padded to a full lane width
NEG_INF = -1e9
BF16 = jnp.bfloat16


# ----------------------------- in-kernel helpers ------------------------------
def _layernorm(h, g, b):
    """LayerNorm over last dim, f32 math. h:(S,D), g/b:(1,D)."""
    mean = jnp.mean(h, axis=-1, keepdims=True)
    var = jnp.mean((h - mean) ** 2, axis=-1, keepdims=True)
    return (h - mean) * jax.lax.rsqrt(var + EPS) * g + b


def _mha_core(q, k, v, mask, scale):
    """Multi-head attention for one batch.

    q:(Sq,D) f32, k/v:(Sk,D) f32, mask:(1 or Sq, Sk) f32 additive.
    Heads are static lane slices of width DHEAD; matmuls run in bf16 with f32
    accumulation, softmax stays in f32, normalization uses the EUP reciprocal.
    """
    outs = []
    for hd in range(HEAD):
        lo, hi = hd * DHEAD, (hd + 1) * DHEAD
        qh = q[:, lo:hi].astype(BF16)
        kh = k[:, lo:hi].astype(BF16)
        vh = v[:, lo:hi].astype(BF16)
        s = jax.lax.dot_general(qh, kh, (((1,), (1,)), ((), ())),
                                preferred_element_type=jnp.float32)
        s = s * scale + mask
        s = s - jnp.max(s, axis=-1, keepdims=True)
        p = jnp.exp(s)
        p = p * pl.reciprocal(jnp.sum(p, axis=-1, keepdims=True), approx=True)
        outs.append(jnp.dot(p.astype(BF16), vh,
                            preferred_element_type=jnp.float32))
    return jnp.concatenate(outs, axis=-1)            # (Sq, D) f32


# ----------------------------- fused stack kernels ----------------------------
def _encoder_stack_kernel(h_ref, m_ref,
                          wqkv_ref, bqkv_ref, wo_ref, bo_ref,
                          g1_ref, b1_ref,
                          w1_ref, fb1_ref, w2_ref, fb2_ref,
                          g2_ref, b2_ref,
                          o_ref, h_sc, *, scale):
    """grid=(B, LAYERS); hidden state stays in VMEM scratch across layers."""
    lyr = pl.program_id(1)

    @pl.when(lyr == 0)
    def _():
        h_sc[...] = h_ref[...]

    h = h_sc[...]                                    # (S, D) f32
    # ---- fused QKV projection (one (D,3D) bf16 matmul)
    qkv = jnp.dot(h.astype(BF16), wqkv_ref[...],
                  preferred_element_type=jnp.float32) + bqkv_ref[...]
    q = qkv[:, 0:DMODEL]
    k = qkv[:, DMODEL:2 * DMODEL]
    v = qkv[:, 2 * DMODEL:3 * DMODEL]
    attn = _mha_core(q, k, v, m_ref[...], scale)     # (S, D) f32
    proj = jnp.dot(attn.astype(BF16), wo_ref[...],
                   preferred_element_type=jnp.float32) + bo_ref[...]
    # ---- residual + LN (epilogue, f32)
    h1 = _layernorm(h + proj, g1_ref[...], b1_ref[...])
    # ---- FFN fused (w1 + ReLU + w2)
    ff = jnp.dot(h1.astype(BF16), w1_ref[...],
                 preferred_element_type=jnp.float32) + fb1_ref[...]
    ff = jnp.maximum(ff, 0.0)
    ff = jnp.dot(ff.astype(BF16), w2_ref[...],
                 preferred_element_type=jnp.float32) + fb2_ref[...]
    h2 = _layernorm(h1 + ff, g2_ref[...], b2_ref[...])
    h_sc[...] = h2

    @pl.when(lyr == pl.num_programs(1) - 1)
    def _():
        o_ref[...] = h2


def _decoder_stack_kernel(d_ref, enc_ref, la_ref, cm_ref,
                          swqkv_ref, sbqkv_ref, swo_ref, sbo_ref,
                          g1_ref, b1_ref,
                          cwq_ref, cbq_ref, cwkv_ref, cbkv_ref, cwo_ref, cbo_ref,
                          g2_ref, b2_ref,
                          w1_ref, fb1_ref, w2_ref, fb2_ref,
                          g3_ref, b3_ref,
                          wfin_ref, bfin_ref,
                          logits_ref, d_sc, *, scale):
    """grid=(B, LAYERS); final projection fused as epilogue of the last layer."""
    lyr = pl.program_id(1)

    @pl.when(lyr == 0)
    def _():
        d_sc[...] = d_ref[...]

    d = d_sc[...]                                    # (Sy, D) f32
    enc = enc_ref[...]                               # (Sx, D) f32

    # ---- masked self attention (fused QKV)
    qkv = jnp.dot(d.astype(BF16), swqkv_ref[...],
                  preferred_element_type=jnp.float32) + sbqkv_ref[...]
    q = qkv[:, 0:DMODEL]
    k = qkv[:, DMODEL:2 * DMODEL]
    v = qkv[:, 2 * DMODEL:3 * DMODEL]
    attn = _mha_core(q, k, v, la_ref[...], scale)
    proj = jnp.dot(attn.astype(BF16), swo_ref[...],
                   preferred_element_type=jnp.float32) + sbo_ref[...]
    d1 = _layernorm(d + proj, g1_ref[...], b1_ref[...])

    # ---- cross attention (fused KV from encoder output)
    q = jnp.dot(d1.astype(BF16), cwq_ref[...],
                preferred_element_type=jnp.float32) + cbq_ref[...]
    kv = jnp.dot(enc.astype(BF16), cwkv_ref[...],
                 preferred_element_type=jnp.float32) + cbkv_ref[...]
    k = kv[:, 0:DMODEL]
    v = kv[:, DMODEL:2 * DMODEL]
    attn = _mha_core(q, k, v, cm_ref[...], scale)
    proj = jnp.dot(attn.astype(BF16), cwo_ref[...],
                   preferred_element_type=jnp.float32) + cbo_ref[...]
    d2 = _layernorm(d1 + proj, g2_ref[...], b2_ref[...])

    # ---- FFN fused (w1 + ReLU + w2)
    ff = jnp.dot(d2.astype(BF16), w1_ref[...],
                 preferred_element_type=jnp.float32) + fb1_ref[...]
    ff = jnp.maximum(ff, 0.0)
    ff = jnp.dot(ff.astype(BF16), w2_ref[...],
                 preferred_element_type=jnp.float32) + fb2_ref[...]
    d3 = _layernorm(d2 + ff, g3_ref[...], b3_ref[...])
    d_sc[...] = d3

    @pl.when(lyr == pl.num_programs(1) - 1)
    def _():
        # fused final projection (tying=False), 128-lane padded output
        logits_ref[...] = (jnp.dot(d3.astype(BF16), wfin_ref[...],
                                   preferred_element_type=jnp.float32)
                           + bfin_ref[...])


# ----------------------------- BlockSpec helpers ------------------------------
def _per_batch(tail):
    """Block selected by batch grid index; layer-invariant (DMA'd once per b)."""
    tail = tuple(tail)
    n = len(tail)
    return pl.BlockSpec((None,) + tail, lambda b, l: (b,) + (0,) * n)


def _per_layer(tail):
    """Block selected by layer grid index (stacked per-layer weights)."""
    tail = tuple(tail)
    n = len(tail)
    return pl.BlockSpec((None,) + tail, lambda b, l: (l,) + (0,) * n)


def _invariant(shape):
    """Grid-invariant (resident) full-array block."""
    shape = tuple(shape)
    n = len(shape)
    return pl.BlockSpec(shape, lambda b, l: (0,) * n)


# ----------------------------- stack wrappers ---------------------------------
def encoder_stack(h, mask, ep):
    """h:(B,Sx,D) f32, mask:(B,1,Sx) f32 additive -> (B,Sx,D) f32."""
    B, S, D = h.shape
    operands = (h, mask,
                ep["wqkv"], ep["bqkv"], ep["wo"], ep["bo"],
                ep["g1"], ep["b1"],
                ep["w1"], ep["fb1"], ep["w2"], ep["fb2"],
                ep["g2"], ep["b2"])
    in_specs = ([_per_batch((S, D)), _per_batch((1, S))]
                + [_per_layer(o.shape[1:]) for o in operands[2:]])
    return pl.pallas_call(
        functools.partial(_encoder_stack_kernel, scale=1.0 / math.sqrt(DHEAD)),
        out_shape=jax.ShapeDtypeStruct((B, S, D), jnp.float32),
        grid=(B, LAYERS),
        in_specs=in_specs,
        out_specs=_per_batch((S, D)),
        scratch_shapes=[pltpu.VMEM((S, D), jnp.float32)],
        compiler_params=pltpu.CompilerParams(
            dimension_semantics=("parallel", "arbitrary")),
    )(*operands)


def decoder_stack(d, enc_out, la_mask, cross_mask, dp, wfin, bfin):
    """d:(B,Sy,D), enc_out:(B,Sx,D), la_mask:(B,Sy,Sy), cross_mask:(B,1,Sx)
    -> padded logits (B,Sy,PAD_VOCAB)."""
    B, Sy, D = d.shape
    Sx = enc_out.shape[1]
    operands = (d, enc_out, la_mask, cross_mask,
                dp["swqkv"], dp["sbqkv"], dp["swo"], dp["sbo"],
                dp["g1"], dp["b1"],
                dp["cwq"], dp["cbq"], dp["cwkv"], dp["cbkv"],
                dp["cwo"], dp["cbo"],
                dp["g2"], dp["b2"],
                dp["w1"], dp["fb1"], dp["w2"], dp["fb2"],
                dp["g3"], dp["b3"],
                wfin, bfin)
    in_specs = ([_per_batch((Sy, D)), _per_batch((Sx, D)),
                 _per_batch((Sy, Sy)), _per_batch((1, Sx))]
                + [_per_layer(o.shape[1:]) for o in operands[4:24]]
                + [_invariant(wfin.shape), _invariant(bfin.shape)])
    return pl.pallas_call(
        functools.partial(_decoder_stack_kernel, scale=1.0 / math.sqrt(DHEAD)),
        out_shape=jax.ShapeDtypeStruct((B, Sy, PAD_VOCAB), jnp.float32),
        grid=(B, LAYERS),
        in_specs=in_specs,
        out_specs=_per_batch((Sy, PAD_VOCAB)),
        scratch_shapes=[pltpu.VMEM((Sy, D), jnp.float32)],
        compiler_params=pltpu.CompilerParams(
            dimension_semantics=("parallel", "arbitrary")),
    )(*operands)


# ----------------------------- model glue (plain JAX) -------------------------
def positional_encoding(S, D):
    pos = jnp.arange(S, dtype=jnp.float32)[:, None]
    i = jnp.arange(D)[None, :]
    rates = 1.0 / jnp.power(10000.0, (2 * (i // 2)).astype(jnp.float32) / D)
    angles = pos * rates
    return jnp.where(i % 2 == 0, jnp.sin(angles), jnp.cos(angles))


def embed(tokens, table):
    # TODO(synk): embedding gather + positional encoding kept in plain JAX
    B, S = tokens.shape
    e = jnp.take(table, tokens, axis=0) * math.sqrt(DMODEL)
    return e + positional_encoding(S, DMODEL)[None, :, :]


def additive_padding_mask(x_tokens):
    """Block attention to positions where encoder token == 0. -> (B, 1, Sx)."""
    keep = (x_tokens != 0).astype(jnp.float32)
    return ((1.0 - keep) * NEG_INF)[:, None, :]


def look_ahead_additive_mask(y_tokens):
    """Causal mask combined with decoder padding mask. -> (B, Sy, Sy)."""
    B, S = y_tokens.shape
    causal = jnp.tril(jnp.ones((S, S), jnp.float32))
    keep = (y_tokens != 0).astype(jnp.float32)[:, None, :]
    allowed = causal[None, :, :] * keep
    return (1.0 - allowed) * NEG_INF


def transformer_forward(pp, x_tokens, y_tokens):
    B, Sx = x_tokens.shape
    _, Sy = y_tokens.shape

    # dropout layers are identity in eval mode
    h = embed(x_tokens, pp["inp_emb"])                   # (B, Sx, D)
    d = embed(y_tokens, pp["out_emb"])                   # (B, Sy, D)

    enc_mask = additive_padding_mask(x_tokens)           # (B, 1, Sx)
    la_mask = look_ahead_additive_mask(y_tokens)         # (B, Sy, Sy)
    cross_mask = enc_mask                                # (B, 1, Sx)

    # ---- encoder: one fused Pallas call for the whole stack
    enc_out = encoder_stack(h, enc_mask, pp["enc"])      # (B, Sx, D)

    # ---- decoder + final projection: one fused Pallas call
    logits_pad = decoder_stack(d, enc_out, la_mask, cross_mask,
                               pp["dec"], pp["final_w"], pp["final_b"])
    return logits_pad[:, :, :OUT_VOCAB]


# ----------------------------- param packing ----------------------------------
def prepare_params(params):
    """Stack per-layer weights along a leading layer axis, cast matmul weights
    to bf16 and pad the final projection to 128 lanes. Done once, outside jit
    hot path."""
    def stk(xs):
        return jnp.stack(xs, axis=0)

    enc = params["enc"]
    ep = {
        "wqkv": stk([jnp.concatenate([L["mha"]["wq"], L["mha"]["wk"],
                                      L["mha"]["wv"]], axis=1) for L in enc]).astype(BF16),
        "bqkv": stk([jnp.concatenate([L["mha"]["bq"], L["mha"]["bk"],
                                      L["mha"]["bv"]]).reshape(1, 3 * DMODEL) for L in enc]),
        "wo": stk([L["mha"]["wo"] for L in enc]).astype(BF16),
        "bo": stk([L["mha"]["bo"].reshape(1, DMODEL) for L in enc]),
        "g1": stk([L["ln1"]["g"].reshape(1, DMODEL) for L in enc]),
        "b1": stk([L["ln1"]["b"].reshape(1, DMODEL) for L in enc]),
        "w1": stk([L["ffn"]["w1"] for L in enc]).astype(BF16),
        "fb1": stk([L["ffn"]["b1"].reshape(1, DFF) for L in enc]),
        "w2": stk([L["ffn"]["w2"] for L in enc]).astype(BF16),
        "fb2": stk([L["ffn"]["b2"].reshape(1, DMODEL) for L in enc]),
        "g2": stk([L["ln2"]["g"].reshape(1, DMODEL) for L in enc]),
        "b2": stk([L["ln2"]["b"].reshape(1, DMODEL) for L in enc]),
    }

    dec = params["dec"]
    dp = {
        "swqkv": stk([jnp.concatenate([L["self_mha"]["wq"], L["self_mha"]["wk"],
                                       L["self_mha"]["wv"]], axis=1) for L in dec]).astype(BF16),
        "sbqkv": stk([jnp.concatenate([L["self_mha"]["bq"], L["self_mha"]["bk"],
                                       L["self_mha"]["bv"]]).reshape(1, 3 * DMODEL) for L in dec]),
        "swo": stk([L["self_mha"]["wo"] for L in dec]).astype(BF16),
        "sbo": stk([L["self_mha"]["bo"].reshape(1, DMODEL) for L in dec]),
        "g1": stk([L["ln1"]["g"].reshape(1, DMODEL) for L in dec]),
        "b1": stk([L["ln1"]["b"].reshape(1, DMODEL) for L in dec]),
        "cwq": stk([L["cross_mha"]["wq"] for L in dec]).astype(BF16),
        "cbq": stk([L["cross_mha"]["bq"].reshape(1, DMODEL) for L in dec]),
        "cwkv": stk([jnp.concatenate([L["cross_mha"]["wk"],
                                      L["cross_mha"]["wv"]], axis=1) for L in dec]).astype(BF16),
        "cbkv": stk([jnp.concatenate([L["cross_mha"]["bk"],
                                      L["cross_mha"]["bv"]]).reshape(1, 2 * DMODEL) for L in dec]),
        "cwo": stk([L["cross_mha"]["wo"] for L in dec]).astype(BF16),
        "cbo": stk([L["cross_mha"]["bo"].reshape(1, DMODEL) for L in dec]),
        "g2": stk([L["ln2"]["g"].reshape(1, DMODEL) for L in dec]),
        "b2": stk([L["ln2"]["b"].reshape(1, DMODEL) for L in dec]),
        "w1": stk([L["ffn"]["w1"] for L in dec]).astype(BF16),
        "fb1": stk([L["ffn"]["b1"].reshape(1, DFF) for L in dec]),
        "w2": stk([L["ffn"]["w2"] for L in dec]).astype(BF16),
        "fb2": stk([L["ffn"]["b2"].reshape(1, DMODEL) for L in dec]),
        "g3": stk([L["ln3"]["g"].reshape(1, DMODEL) for L in dec]),
        "b3": stk([L["ln3"]["b"].reshape(1, DMODEL) for L in dec]),
    }

    w_pad = jnp.zeros((DMODEL, PAD_VOCAB), jnp.float32)
    w_pad = w_pad.at[:, :OUT_VOCAB].set(params["final_w"]).astype(BF16)
    b_pad = jnp.zeros((1, PAD_VOCAB), jnp.float32)
    b_pad = b_pad.at[:, :OUT_VOCAB].set(params["final_b"])

    return {"inp_emb": params["inp_emb"], "out_emb": params["out_emb"],
            "enc": ep, "dec": dp, "final_w": w_pad, "final_b": b_pad}


# ----------------------------- deterministic params ---------------------------
def init_params(key):
    keys = iter(jax.random.split(key, 256))

    def dense(shape):
        return jax.random.normal(next(keys), shape, jnp.float32) * 0.02

    def mha_p():
        return {
            "wq": dense((DMODEL, DMODEL)), "bq": jnp.zeros((DMODEL,), jnp.float32),
            "wk": dense((DMODEL, DMODEL)), "bk": jnp.zeros((DMODEL,), jnp.float32),
            "wv": dense((DMODEL, DMODEL)), "bv": jnp.zeros((DMODEL,), jnp.float32),
            "wo": dense((DMODEL, DMODEL)), "bo": jnp.zeros((DMODEL,), jnp.float32),
        }

    def ln_p():
        return {"g": jnp.ones((DMODEL,), jnp.float32),
                "b": jnp.zeros((DMODEL,), jnp.float32)}

    def ffn_p():
        return {"w1": dense((DMODEL, DFF)), "b1": jnp.zeros((DFF,), jnp.float32),
                "w2": dense((DFF, DMODEL)), "b2": jnp.zeros((DMODEL,), jnp.float32)}

    params = {
        "inp_emb": dense((IN_VOCAB, DMODEL)),
        "out_emb": dense((OUT_VOCAB, DMODEL)),
        "enc": [{"mha": mha_p(), "ln1": ln_p(), "ffn": ffn_p(), "ln2": ln_p()}
                for _ in range(LAYERS)],
        "dec": [{"self_mha": mha_p(), "ln1": ln_p(),
                 "cross_mha": mha_p(), "ln2": ln_p(),
                 "ffn": ffn_p(), "ln3": ln_p()}
                for _ in range(LAYERS)],
        "final_w": dense((DMODEL, OUT_VOCAB)),
        "final_b": jnp.zeros((OUT_VOCAB,), jnp.float32),
    }
    return params


# ----------------------------- main --------------------------------------------
if __name__ == "__main__":
    key = jax.random.PRNGKey(0)
    k_par, k_x, k_y = jax.random.split(key, 3)

    B, Sx, Sy = 2, 8, 8
    params = init_params(k_par)
    prepped = prepare_params(params)   # weight packing done once, outside jit

    # token id 0 is the pad id (exercised by the masks)
    x = jax.random.randint(k_x, (B, Sx), 0, IN_VOCAB, dtype=jnp.int32)
    y = jax.random.randint(k_y, (B, Sy), 0, OUT_VOCAB, dtype=jnp.int32)

    fwd = jax.jit(lambda xt, yt: transformer_forward(prepped, xt, yt))
    logits = fwd(x, y)
    jax.block_until_ready(logits)

    assert logits.shape == (B, Sy, OUT_VOCAB)
    assert bool(jnp.all(jnp.isfinite(logits)))
    print("KERNEL_OK")
</pallas_src>

<mosaic_0001>
module attributes {stable_mosaic.version = 11 : i64} {
  func.func @_encoder_stack_kernel(%arg0: i32, %arg1: i32, %arg2: memref<1x8x128xf32, #tpu.memory_space<vmem>>, %arg3: memref<1x1x8xf32, #tpu.memory_space<vmem>>, %arg4: memref<1x128x384xbf16, #tpu.memory_space<vmem>>, %arg5: memref<1x1x384xf32, #tpu.memory_space<vmem>>, %arg6: memref<1x128x128xbf16, #tpu.memory_space<vmem>>, %arg7: memref<1x1x128xf32, #tpu.memory_space<vmem>>, %arg8: memref<1x1x128xf32, #tpu.memory_space<vmem>>, %arg9: memref<1x1x128xf32, #tpu.memory_space<vmem>>, %arg10: memref<1x128x256xbf16, #tpu.memory_space<vmem>>, %arg11: memref<1x1x256xf32, #tpu.memory_space<vmem>>, %arg12: memref<1x256x128xbf16, #tpu.memory_space<vmem>>, %arg13: memref<1x1x128xf32, #tpu.memory_space<vmem>>, %arg14: memref<1x1x128xf32, #tpu.memory_space<vmem>>, %arg15: memref<1x1x128xf32, #tpu.memory_space<vmem>>, %arg16: memref<1x8x128xf32, #tpu.memory_space<vmem>>, %arg17: memref<8x128xf32, #tpu.memory_space<vmem>>) attributes {dimension_semantics = [#tpu.dimension_semantics<parallel>, #tpu.dimension_semantics<arbitrary>], iteration_bounds = array<i64: 2, 2>, scalar_prefetch = 0 : i64, scratch_operands = 1 : i64, tpu.core_type = #tpu.core_type<tc>, window_params = [{transform_indices = @transform_0, window_bounds = array<i64: 1, 8, 128>}, {transform_indices = @transform_1, window_bounds = array<i64: 1, 1, 8>}, {transform_indices = @transform_2, window_bounds = array<i64: 1, 128, 384>}, {transform_indices = @transform_3, window_bounds = array<i64: 1, 1, 384>}, {transform_indices = @transform_4, window_bounds = array<i64: 1, 128, 128>}, {transform_indices = @transform_5, window_bounds = array<i64: 1, 1, 128>}, {transform_indices = @transform_6, window_bounds = array<i64: 1, 1, 128>}, {transform_indices = @transform_7, window_bounds = array<i64: 1, 1, 128>}, {transform_indices = @transform_8, window_bounds = array<i64: 1, 128, 256>}, {transform_indices = @transform_9, window_bounds = array<i64: 1, 1, 256>}, {transform_indices = @transform_10, window_bounds = array<i64: 1, 256, 128>}, {transform_indices = @transform_11, window_bounds = array<i64: 1, 1, 128>}, {transform_indices = @transform_12, window_bounds = array<i64: 1, 1, 128>}, {transform_indices = @transform_13, window_bounds = array<i64: 1, 1, 128>}, {transform_indices = @transform_14, window_bounds = array<i64: 1, 8, 128>}]} {
    %c0_i32 = arith.constant 0 : i32
    %0 = arith.cmpi eq, %arg1, %c0_i32 : i32
    %1 = arith.extui %0 : i1 to i32
    %c0_i32_0 = arith.constant 0 : i32
    %2 = arith.cmpi ne, %1, %c0_i32_0 : i32
    scf.if %2 {
      %c0_78 = arith.constant 0 : index
      %c0_79 = arith.constant 0 : index
      %c0_80 = arith.constant 0 : index
      %194 = vector.load %arg2[%c0_78, %c0_79, %c0_80] : memref<1x8x128xf32, #tpu.memory_space<vmem>>, vector<1x8x128xf32>
      %195 = vector.shape_cast %194 : vector<1x8x128xf32> to vector<8x128xf32>
      %c0_81 = arith.constant 0 : index
      %c0_82 = arith.constant 0 : index
      %196 = vector.load %arg17[%c0_81, %c0_82] : memref<8x128xf32, #tpu.memory_space<vmem>>, vector<8x128xf32>
      tpu.vector_store %arg17[%c0_81, %c0_82], %195 {strides = array<i32>} : memref<8x128xf32, #tpu.memory_space<vmem>>, vector<8x128xf32>,
    } else {
    }
    %c0 = arith.constant 0 : index
    %c0_1 = arith.constant 0 : index
    %3 = vector.load %arg17[%c0, %c0_1] : memref<8x128xf32, #tpu.memory_space<vmem>>, vector<8x128xf32>
    %4 = arith.truncf %3 : vector<8x128xf32> to vector<8x128xbf16>
    %c0_2 = arith.constant 0 : index
    %c0_3 = arith.constant 0 : index
    %c0_4 = arith.constant 0 : index
    %5 = vector.load %arg4[%c0_2, %c0_3, %c0_4] : memref<1x128x384xbf16, #tpu.memory_space<vmem>>, vector<1x128x384xbf16>
    %6 = vector.shape_cast %5 : vector<1x128x384xbf16> to vector<128x384xbf16>
    %cst = arith.constant dense<0.000000e+00> : vector<8x384xf32>
    %7 = tpu.matmul %4, %6, %cst {dimension_numbers = #tpu.dot_dimension_numbers<[1], [0], [0], [1], [0, 0, 1, 1], [], []>} : vector<8x128xbf16>, vector<128x384xbf16>, vector<8x384xf32> -> vector<8x384xf32>
    %c0_5 = arith.constant 0 : index
    %c0_6 = arith.constant 0 : index
    %c0_7 = arith.constant 0 : index
    %8 = vector.load %arg5[%c0_5, %c0_6, %c0_7] : memref<1x1x384xf32, #tpu.memory_space<vmem>>, vector<1x1x384xf32>
    %9 = vector.shape_cast %8 : vector<1x1x384xf32> to vector<1x384xf32>
    %10 = vector.broadcast %9 : vector<1x384xf32> to vector<8x384xf32>
    %11 = arith.addf %7, %10 : vector<8x384xf32>
    %12 = vector.extract_strided_slice %11 {offsets = [0, 0], sizes = [8, 128], strides = [1, 1]} : vector<8x384xf32> to vector<8x128xf32>
    %13 = vector.extract_strided_slice %11 {offsets = [0, 128], sizes = [8, 128], strides = [1, 1]} : vector<8x384xf32> to vector<8x128xf32>
    %14 = vector.extract_strided_slice %11 {offsets = [0, 256], sizes = [8, 128], strides = [1, 1]} : vector<8x384xf32> to vector<8x128xf32>
    %c0_8 = arith.constant 0 : index
    %c0_9 = arith.constant 0 : index
    %c0_10 = arith.constant 0 : index
    %15 = vector.load %arg3[%c0_8, %c0_9, %c0_10] : memref<1x1x8xf32, #tpu.memory_space<vmem>>, vector<1x1x8xf32>
    %16 = vector.shape_cast %15 : vector<1x1x8xf32> to vector<1x8xf32>
    %17 = vector.extract_strided_slice %12 {offsets = [0, 0], sizes = [8, 32], strides = [1, 1]} : vector<8x128xf32> to vector<8x32xf32>
    %18 = arith.truncf %17 : vector<8x32xf32> to vector<8x32xbf16>
    %19 = vector.extract_strided_slice %13 {offsets = [0, 0], sizes = [8, 32], strides = [1, 1]} : vector<8x128xf32> to vector<8x32xf32>
    %20 = arith.truncf %19 : vector<8x32xf32> to vector<8x32xbf16>
    %21 = vector.extract_strided_slice %14 {offsets = [0, 0], sizes = [8, 32], strides = [1, 1]} : vector<8x128xf32> to vector<8x32xf32>
    %22 = arith.truncf %21 : vector<8x32xf32> to vector<8x32xbf16>
    %cst_11 = arith.constant dense<0.000000e+00> : vector<8x8xf32>
    %23 = tpu.matmul %18, %20, %cst_11 {dimension_numbers = #tpu.dot_dimension_numbers<[1], [1], [0], [0], [0, 0, 1, 0], [], []>} : vector<8x32xbf16>, vector<8x32xbf16>, vector<8x8xf32> -> vector<8x8xf32>
    %cst_12 = arith.constant 0.176776692 : f32
    %24 = vector.broadcast %cst_12 : f32 to vector<8x8xf32>
    %25 = arith.mulf %23, %24 : vector<8x8xf32>
    %26 = vector.broadcast %16 : vector<1x8xf32> to vector<8x8xf32>
    %27 = arith.addf %25, %26 : vector<8x8xf32>
    %cst_13 = arith.constant dense<0xFF800000> : vector<8xf32>
    %28 = vector.multi_reduction <maximumf>, %27, %cst_13 [1] : vector<8x8xf32> to vector<8xf32>
    %29 = vector.shape_cast %28 : vector<8xf32> to vector<8x1xf32>
    %30 = vector.broadcast %29 : vector<8x1xf32> to vector<8x8xf32>
    %31 = arith.subf %27, %30 : vector<8x8xf32>
    %32 = math.exp %31 : vector<8x8xf32>
    %cst_14 = arith.constant dense<0.000000e+00> : vector<8xf32>
    %33 = vector.multi_reduction <add>, %32, %cst_14 [1] : vector<8x8xf32> to vector<8xf32>
    %34 = vector.shape_cast %33 : vector<8xf32> to vector<8x1xf32>
    %35 = tpu.reciprocal %34 {approx = true} : vector<8x1xf32> -> vector<8x1xf32>
    %36 = vector.broadcast %35 : vector<8x1xf32> to vector<8x8xf32>
    %37 = arith.mulf %32, %36 : vector<8x8xf32>
    %38 = arith.truncf %37 : vector<8x8xf32> to vector<8x8xbf16>
    %cst_15 = arith.constant dense<0.000000e+00> : vector<8x32xf32>
    %39 = tpu.matmul %38, %22, %cst_15 {dimension_numbers = #tpu.dot_dimension_numbers<[1], [0], [0], [1], [0, 0, 1, 1], [], []>} : vector<8x8xbf16>, vector<8x32xbf16>, vector<8x32xf32> -> vector<8x32xf32>
    %40 = vector.extract_strided_slice %12 {offsets = [0, 32], sizes = [8, 32], strides = [1, 1]} : vector<8x128xf32> to vector<8x32xf32>
    %41 = arith.truncf %40 : vector<8x32xf32> to vector<8x32xbf16>
    %42 = vector.extract_strided_slice %13 {offsets = [0, 32], sizes = [8, 32], strides = [1, 1]} : vector<8x128xf32> to vector<8x32xf32>
    %43 = arith.truncf %42 : vector<8x32xf32> to vector<8x32xbf16>
    %44 = vector.extract_strided_slice %14 {offsets = [0, 32], sizes = [8, 32], strides = [1, 1]} : vector<8x128xf32> to vector<8x32xf32>
    %45 = arith.truncf %44 : vector<8x32xf32> to vector<8x32xbf16>
    %cst_16 = arith.constant dense<0.000000e+00> : vector<8x8xf32>
    %46 = tpu.matmul %41, %43, %cst_16 {dimension_numbers = #tpu.dot_dimension_numbers<[1], [1], [0], [0], [0, 0, 1, 0], [], []>} : vector<8x32xbf16>, vector<8x32xbf16>, vector<8x8xf32> -> vector<8x8xf32>
    %cst_17 = arith.constant 0.176776692 : f32
    %47 = vector.broadcast %cst_17 : f32 to vector<8x8xf32>
    %48 = arith.mulf %46, %47 : vector<8x8xf32>
    %49 = vector.broadcast %16 : vector<1x8xf32> to vector<8x8xf32>
    %50 = arith.addf %48, %49 : vector<8x8xf32>
    %cst_18 = arith.constant dense<0xFF800000> : vector<8xf32>
    %51 = vector.multi_reduction <maximumf>, %50, %cst_18 [1] : vector<8x8xf32> to vector<8xf32>
    %52 = vector.shape_cast %51 : vector<8xf32> to vector<8x1xf32>
    %53 = vector.broadcast %52 : vector<8x1xf32> to vector<8x8xf32>
    %54 = arith.subf %50, %53 : vector<8x8xf32>
    %55 = math.exp %54 : vector<8x8xf32>
    %cst_19 = arith.constant dense<0.000000e+00> : vector<8xf32>
    %56 = vector.multi_reduction <add>, %55, %cst_19 [1] : vector<8x8xf32> to vector<8xf32>
    %57 = vector.shape_cast %56 : vector<8xf32> to vector<8x1xf32>
    %58 = tpu.reciprocal %57 {approx = true} : vector<8x1xf32> -> vector<8x1xf32>
    %59 = vector.broadcast %58 : vector<8x1xf32> to vector<8x8xf32>
    %60 = arith.mulf %55, %59 : vector<8x8xf32>
    %61 = arith.truncf %60 : vector<8x8xf32> to vector<8x8xbf16>
    %cst_20 = arith.constant dense<0.000000e+00> : vector<8x32xf32>
    %62 = tpu.matmul %61, %45, %cst_20 {dimension_numbers = #tpu.dot_dimension_numbers<[1], [0], [0], [1], [0, 0, 1, 1], [], []>} : vector<8x8xbf16>, vector<8x32xbf16>, vector<8x32xf32> -> vector<8x32xf32>
    %63 = vector.extract_strided_slice %12 {offsets = [0, 64], sizes = [8, 32], strides = [1, 1]} : vector<8x128xf32> to vector<8x32xf32>
    %64 = arith.truncf %63 : vector<8x32xf32> to vector<8x32xbf16>
    %65 = vector.extract_strided_slice %13 {offsets = [0, 64], sizes = [8, 32], strides = [1, 1]} : vector<8x128xf32> to vector<8x32xf32>
    %66 = arith.truncf %65 : vector<8x32xf32> to vector<8x32xbf16>
    %67 = vector.extract_strided_slice %14 {offsets = [0, 64], sizes = [8, 32], strides = [1, 1]} : vector<8x128xf32> to vector<8x32xf32>
    %68 = arith.truncf %67 : vector<8x32xf32> to vector<8x32xbf16>
    %cst_21 = arith.constant dense<0.000000e+00> : vector<8x8xf32>
    %69 = tpu.matmul %64, %66, %cst_21 {dimension_numbers = #tpu.dot_dimension_numbers<[1], [1], [0], [0], [0, 0, 1, 0], [], []>} : vector<8x32xbf16>, vector<8x32xbf16>, vector<8x8xf32> -> vector<8x8xf32>
    %cst_22 = arith.constant 0.176776692 : f32
    %70 = vector.broadcast %cst_22 : f32 to vector<8x8xf32>
    %71 = arith.mulf %69, %70 : vector<8x8xf32>
    %72 = vector.broadcast %16 : vector<1x8xf32> to vector<8x8xf32>
    %73 = arith.addf %71, %72 : vector<8x8xf32>
    %cst_23 = arith.constant dense<0xFF800000> : vector<8xf32>
    %74 = vector.multi_reduction <maximumf>, %73, %cst_23 [1] : vector<8x8xf32> to vector<8xf32>
    %75 = vector.shape_cast %74 : vector<8xf32> to vector<8x1xf32>
    %76 = vector.broadcast %75 : vector<8x1xf32> to vector<8x8xf32>
    %77 = arith.subf %73, %76 : vector<8x8xf32>
    %78 = math.exp %77 : vector<8x8xf32>
    %cst_24 = arith.constant dense<0.000000e+00> : vector<8xf32>
    %79 = vector.multi_reduction <add>, %78, %cst_24 [1] : vector<8x8xf32> to vector<8xf32>
    %80 = vector.shape_cast %79 : vector<8xf32> to vector<8x1xf32>
    %81 = tpu.reciprocal %80 {approx = true} : vector<8x1xf32> -> vector<8x1xf32>
    %82 = vector.broadcast %81 : vector<8x1xf32> to vector<8x8xf32>
    %83 = arith.mulf %78, %82 : vector<8x8xf32>
    %84 = arith.truncf %83 : vector<8x8xf32> to vector<8x8xbf16>
    %cst_25 = arith.constant dense<0.000000e+00> : vector<8x32xf32>
    %85 = tpu.matmul %84, %68, %cst_25 {dimension_numbers = #tpu.dot_dimension_numbers<[1], [0], [0], [1], [0, 0, 1, 1], [], []>} : vector<8x8xbf16>, vector<8x32xbf16>, vector<8x32xf32> -> vector<8x32xf32>
    %86 = vector.extract_strided_slice %12 {offsets = [0, 96], sizes = [8, 32], strides = [1, 1]} : vector<8x128xf32> to vector<8x32xf32>
    %87 = arith.truncf %86 : vector<8x32xf32> to vector<8x32xbf16>
    %88 = vector.extract_strided_slice %13 {offsets = [0, 96], sizes = [8, 32], strides = [1, 1]} : vector<8x128xf32> to vector<8x32xf32>
    %89 = arith.truncf %88 : vector<8x32xf32> to vector<8x32xbf16>
    %90 = vector.extract_strided_slice %14 {offsets = [0, 96], sizes = [8, 32], strides = [1, 1]} : vector<8x128xf32> to vector<8x32xf32>
    %91 = arith.truncf %90 : vector<8x32xf32> to vector<8x32xbf16>
    %cst_26 = arith.constant dense<0.000000e+00> : vector<8x8xf32>
    %92 = tpu.matmul %87, %89, %cst_26 {dimension_numbers = #tpu.dot_dimension_numbers<[1], [1], [0], [0], [0, 0, 1, 0], [], []>} : vector<8x32xbf16>, vector<8x32xbf16>, vector<8x8xf32> -> vector<8x8xf32>
    %cst_27 = arith.constant 0.176776692 : f32
    %93 = vector.broadcast %cst_27 : f32 to vector<8x8xf32>
    %94 = arith.mulf %92, %93 : vector<8x8xf32>
    %95 = vector.broadcast %16 : vector<1x8xf32> to vector<8x8xf32>
    %96 = arith.addf %94, %95 : vector<8x8xf32>
    %cst_28 = arith.constant dense<0xFF800000> : vector<8xf32>
    %97 = vector.multi_reduction <maximumf>, %96, %cst_28 [1] : vector<8x8xf32> to vector<8xf32>
    %98 = vector.shape_cast %97 : vector<8xf32> to vector<8x1xf32>
    %99 = vector.broadcast %98 : vector<8x1xf32> to vector<8x8xf32>
    %100 = arith.subf %96, %99 : vector<8x8xf32>
    %101 = math.exp %100 : vector<8x8xf32>
    %cst_29 = arith.constant dense<0.000000e+00> : vector<8xf32>
    %102 = vector.multi_reduction <add>, %101, %cst_29 [1] : vector<8x8xf32> to vector<8xf32>
    %103 = vector.shape_cast %102 : vector<8xf32> to vector<8x1xf32>
    %104 = tpu.reciprocal %103 {approx = true} : vector<8x1xf32> -> vector<8x1xf32>
    %105 = vector.broadcast %104 : vector<8x1xf32> to vector<8x8xf32>
    %106 = arith.mulf %101, %105 : vector<8x8xf32>
    %107 = arith.truncf %106 : vector<8x8xf32> to vector<8x8xbf16>
    %cst_30 = arith.constant dense<0.000000e+00> : vector<8x32xf32>
    %108 = tpu.matmul %107, %91, %cst_30 {dimension_numbers = #tpu.dot_dimension_numbers<[1], [0], [0], [1], [0, 0, 1, 1], [], []>} : vector<8x8xbf16>, vector<8x32xbf16>, vector<8x32xf32> -> vector<8x32xf32>
    %109 = tpu.concatenate %39, %62, %85, %108 in 1 : vector<8x32xf32>, vector<8x32xf32>, vector<8x32xf32>, vector<8x32xf32> -> vector<8x128xf32>
    %110 = arith.truncf %109 : vector<8x128xf32> to vector<8x128xbf16>
    %c0_31 = arith.constant 0 : index
    %c0_32 = arith.constant 0 : index
    %c0_33 = arith.constant 0 : index
    %111 = vector.load %arg6[%c0_31, %c0_32, %c0_33] : memref<1x128x128xbf16, #tpu.memory_space<vmem>>, vector<1x128x128xbf16>
    %112 = vector.shape_cast %111 : vector<1x128x128xbf16> to vector<128x128xbf16>
    %cst_34 = arith.constant dense<0.000000e+00> : vector<8x128xf32>
    %113 = tpu.matmul %110, %112, %cst_34 {dimension_numbers = #tpu.dot_dimension_numbers<[1], [0], [0], [1], [0, 0, 1, 1], [], []>} : vector<8x128xbf16>, vector<128x128xbf16>, vector<8x128xf32> -> vector<8x128xf32>
    %c0_35 = arith.constant 0 : index
    %c0_36 = arith.constant 0 : index
    %c0_37 = arith.constant 0 : index
    %114 = vector.load %arg7[%c0_35, %c0_36, %c0_37] : memref<1x1x128xf32, #tpu.memory_space<vmem>>, vector<1x1x128xf32>
    %115 = vector.shape_cast %114 : vector<1x1x128xf32> to vector<1x128xf32>
    %116 = vector.broadcast %115 : vector<1x128xf32> to vector<8x128xf32>
    %117 = arith.addf %113, %116 : vector<8x128xf32>
    %118 = arith.addf %3, %117 : vector<8x128xf32>
    %c0_38 = arith.constant 0 : index
    %c0_39 = arith.constant 0 : index
    %c0_40 = arith.constant 0 : index
    %119 = vector.load %arg8[%c0_38, %c0_39, %c0_40] : memref<1x1x128xf32, #tpu.memory_space<vmem>>, vector<1x1x128xf32>
    %120 = vector.shape_cast %119 : vector<1x1x128xf32> to vector<1x128xf32>
    %c0_41 = arith.constant 0 : index
    %c0_42 = arith.constant 0 : index
    %c0_43 = arith.constant 0 : index
    %121 = vector.load %arg9[%c0_41, %c0_42, %c0_43] : memref<1x1x128xf32, #tpu.memory_space<vmem>>, vector<1x1x128xf32>
    %122 = vector.shape_cast %121 : vector<1x1x128xf32> to vector<1x128xf32>
    %cst_44 = arith.constant dense<0.000000e+00> : vector<8xf32>
    %123 = vector.multi_reduction <add>, %118, %cst_44 [1] : vector<8x128xf32> to vector<8xf32>
    %124 = vector.shape_cast %123 : vector<8xf32> to vector<8x1xf32>
    %cst_45 = arith.constant 1.280000e+02 : f32
    %125 = vector.broadcast %cst_45 : f32 to vector<8x1xf32>
    %126 = arith.divf %124, %125 : vector<8x1xf32>
    %127 = vector.broadcast %126 : vector<8x1xf32> to vector<8x128xf32>
    %128 = arith.subf %118, %127 : vector<8x128xf32>
    %129 = arith.mulf %128, %128 : vector<8x128xf32>
    %cst_46 = arith.constant dense<0.000000e+00> : vector<8xf32>
    %130 = vector.multi_reduction <add>, %129, %cst_46 [1] : vector<8x128xf32> to vector<8xf32>
    %131 = vector.shape_cast %130 : vector<8xf32> to vector<8x1xf32>
    %cst_47 = arith.constant 1.280000e+02 : f32
    %132 = vector.broadcast %cst_47 : f32 to vector<8x1xf32>
    %133 = arith.divf %131, %132 : vector<8x1xf32>
    %134 = vector.broadcast %126 : vector<8x1xf32> to vector<8x128xf32>
    %135 = arith.subf %118, %134 : vector<8x128xf32>
    %cst_48 = arith.constant 9.99999974E-6 : f32
    %136 = vector.broadcast %cst_48 : f32 to vector<8x1xf32>
    %137 = arith.addf %133, %136 : vector<8x1xf32>
    %138 = math.rsqrt %137 : vector<8x1xf32>
    %139 = vector.broadcast %138 : vector<8x1xf32> to vector<8x128xf32>
    %140 = arith.mulf %135, %139 : vector<8x128xf32>
    %141 = vector.broadcast %120 : vector<1x128xf32> to vector<8x128xf32>
    %142 = arith.mulf %140, %141 : vector<8x128xf32>
    %143 = vector.broadcast %122 : vector<1x128xf32> to vector<8x128xf32>
    %144 = arith.addf %142, %143 : vector<8x128xf32>
    %145 = arith.truncf %144 : vector<8x128xf32> to vector<8x128xbf16>
    %c0_49 = arith.constant 0 : index
    %c0_50 = arith.constant 0 : index
    %c0_51 = arith.constant 0 : index
    %146 = vector.load %arg10[%c0_49, %c0_50, %c0_51] : memref<1x128x256xbf16, #tpu.memory_space<vmem>>, vector<1x128x256xbf16>
    %147 = vector.shape_cast %146 : vector<1x128x256xbf16> to vector<128x256xbf16>
    %cst_52 = arith.constant dense<0.000000e+00> : vector<8x256xf32>
    %148 = tpu.matmul %145, %147, %cst_52 {dimension_numbers = #tpu.dot_dimension_numbers<[1], [0], [0], [1], [0, 0, 1, 1], [], []>} : vector<8x128xbf16>, vector<128x256xbf16>, vector<8x256xf32> -> vector<8x256xf32>
    %c0_53 = arith.constant 0 : index
    %c0_54 = arith.constant 0 : index
    %c0_55 = arith.constant 0 : index
    %149 = vector.load %arg11[%c0_53, %c0_54, %c0_55] : memref<1x1x256xf32, #tpu.memory_space<vmem>>, vector<1x1x256xf32>
    %150 = vector.shape_cast %149 : vector<1x1x256xf32> to vector<1x256xf32>
    %151 = vector.broadcast %150 : vector<1x256xf32> to vector<8x256xf32>
    %152 = arith.addf %148, %151 : vector<8x256xf32>
    %cst_56 = arith.constant 0.000000e+00 : f32
    %153 = vector.broadcast %cst_56 : f32 to vector<8x256xf32>
    %154 = arith.maximumf %152, %153 : vector<8x256xf32>
    %155 = arith.truncf %154 : vector<8x256xf32> to vector<8x256xbf16>
    %c0_57 = arith.constant 0 : index
    %c0_58 = arith.constant 0 : index
    %c0_59 = arith.constant 0 : index
    %156 = vector.load %arg12[%c0_57, %c0_58, %c0_59] : memref<1x256x128xbf16, #tpu.memory_space<vmem>>, vector<1x256x128xbf16>
    %157 = vector.shape_cast %156 : vector<1x256x128xbf16> to vector<256x128xbf16>
    %cst_60 = arith.constant dense<0.000000e+00> : vector<8x128xf32>
    %158 = tpu.matmul %155, %157, %cst_60 {dimension_numbers = #tpu.dot_dimension_numbers<[1], [0], [0], [1], [0, 0, 1, 1], [], []>} : vector<8x256xbf16>, vector<256x128xbf16>, vector<8x128xf32> -> vector<8x128xf32>
    %c0_61 = arith.constant 0 : index
    %c0_62 = arith.constant 0 : index
    %c0_63 = arith.constant 0 : index
    %159 = vector.load %arg13[%c0_61, %c0_62, %c0_63] : memref<1x1x128xf32, #tpu.memory_space<vmem>>, vector<1x1x128xf32>
    %160 = vector.shape_cast %159 : vector<1x1x128xf32> to vector<1x128xf32>
    %161 = vector.broadcast %160 : vector<1x128xf32> to vector<8x128xf32>
    %162 = arith.addf %158, %161 : vector<8x128xf32>
    %163 = arith.addf %144, %162 : vector<8x128xf32>
    %c0_64 = arith.constant 0 : index
    %c0_65 = arith.constant 0 : index
    %c0_66 = arith.constant 0 : index
    %164 = vector.load %arg14[%c0_64, %c0_65, %c0_66] : memref<1x1x128xf32, #tpu.memory_space<vmem>>, vector<1x1x128xf32>
    %165 = vector.shape_cast %164 : vector<1x1x128xf32> to vector<1x128xf32>
    %c0_67 = arith.constant 0 : index
    %c0_68 = arith.constant 0 : index
    %c0_69 = arith.constant 0 : index
    %166 = vector.load %arg15[%c0_67, %c0_68, %c0_69] : memref<1x1x128xf32, #tpu.memory_space<vmem>>, vector<1x1x128xf32>
    %167 = vector.shape_cast %166 : vector<1x1x128xf32> to vector<1x128xf32>
    %cst_70 = arith.constant dense<0.000000e+00> : vector<8xf32>
    %168 = vector.multi_reduction <add>, %163, %cst_70 [1] : vector<8x128xf32> to vector<8xf32>
    %169 = vector.shape_cast %168 : vector<8xf32> to vector<8x1xf32>
    %cst_71 = arith.constant 1.280000e+02 : f32
    %170 = vector.broadcast %cst_71 : f32 to vector<8x1xf32>
    %171 = arith.divf %169, %170 : vector<8x1xf32>
    %172 = vector.broadcast %171 : vector<8x1xf32> to vector<8x128xf32>
    %173 = arith.subf %163, %172 : vector<8x128xf32>
    %174 = arith.mulf %173, %173 : vector<8x128xf32>
    %cst_72 = arith.constant dense<0.000000e+00> : vector<8xf32>
    %175 = vector.multi_reduction <add>, %174, %cst_72 [1] : vector<8x128xf32> to vector<8xf32>
    %176 = vector.shape_cast %175 : vector<8xf32> to vector<8x1xf32>
    %cst_73 = arith.constant 1.280000e+02 : f32
    %177 = vector.broadcast %cst_73 : f32 to vector<8x1xf32>
    %178 = arith.divf %176, %177 : vector<8x1xf32>
    %179 = vector.broadcast %171 : vector<8x1xf32> to vector<8x128xf32>
    %180 = arith.subf %163, %179 : vector<8x128xf32>
    %cst_74 = arith.constant 9.99999974E-6 : f32
    %181 = vector.broadcast %cst_74 : f32 to vector<8x1xf32>
    %182 = arith.addf %178, %181 : vector<8x1xf32>
    %183 = math.rsqrt %182 : vector<8x1xf32>
    %184 = vector.broadcast %183 : vector<8x1xf32> to vector<8x128xf32>
    %185 = arith.mulf %180, %184 : vector<8x128xf32>
    %186 = vector.broadcast %165 : vector<1x128xf32> to vector<8x128xf32>
    %187 = arith.mulf %185, %186 : vector<8x128xf32>
    %188 = vector.broadcast %167 : vector<1x128xf32> to vector<8x128xf32>
    %189 = arith.addf %187, %188 : vector<8x128xf32>
    %c0_75 = arith.constant 0 : index
    %c0_76 = arith.constant 0 : index
    %190 = vector.load %arg17[%c0_75, %c0_76] : memref<8x128xf32, #tpu.memory_space<vmem>>, vector<8x128xf32>
    tpu.vector_store %arg17[%c0_75, %c0_76], %189 {strides = array<i32>} : memref<8x128xf32, #tpu.memory_space<vmem>>, vector<8x128xf32>,
    %c1_i32 = arith.constant 1 : i32
    %191 = arith.cmpi eq, %arg1, %c1_i32 : i32
    %192 = arith.extui %191 : i1 to i32
    %c0_i32_77 = arith.constant 0 : i32
    %193 = arith.cmpi ne, %192, %c0_i32_77 : i32
    scf.if %193 {
      %c0_78 = arith.constant 0 : index
      %c0_79 = arith.constant 0 : index
      %c0_80 = arith.constant 0 : index
      %194 = vector.load %arg16[%c0_78, %c0_79, %c0_80] : memref<1x8x128xf32, #tpu.memory_space<vmem>>, vector<1x8x128xf32>
      %195 = vector.shape_cast %194 : vector<1x8x128xf32> to vector<8x128xf32>
      %196 = vector.shape_cast %189 : vector<8x128xf32> to vector<1x8x128xf32>
      tpu.vector_store %arg16[%c0_78, %c0_79, %c0_80], %196 {strides = array<i32>} : memref<1x8x128xf32, #tpu.memory_space<vmem>>, vector<1x8x128xf32>,
    } else {
    }
    return
  }
  func.func @transform_0(%arg0: i32, %arg1: i32) -> (i32, i32, i32) {
    %c0_i32 = arith.constant 0 : i32
    %c0_i32_0 = arith.constant 0 : i32
    %c0_i32_1 = arith.constant 0 : i32
    return %arg0, %c0_i32, %c0_i32_0 : i32, i32, i32
  }
  func.func @transform_1(%arg0: i32, %arg1: i32) -> (i32, i32, i32) {
    %c0_i32 = arith.constant 0 : i32
    %c0_i32_0 = arith.constant 0 : i32
    %c0_i32_1 = arith.constant 0 : i32
    return %arg0, %c0_i32, %c0_i32_0 : i32, i32, i32
  }
  func.func @transform_2(%arg0: i32, %arg1: i32) -> (i32, i32, i32) {
    %c0_i32 = arith.constant 0 : i32
    %c0_i32_0 = arith.constant 0 : i32
    %c0_i32_1 = arith.constant 0 : i32
    return %arg1, %c0_i32, %c0_i32_0 : i32, i32, i32
  }
  func.func @transform_3(%arg0: i32, %arg1: i32) -> (i32, i32, i32) {
    %c0_i32 = arith.constant 0 : i32
    %c0_i32_0 = arith.constant 0 : i32
    %c0_i32_1 = arith.constant 0 : i32
    return %arg1, %c0_i32, %c0_i32_0 : i32, i32, i32
  }
  func.func @transform_4(%arg0: i32, %arg1: i32) -> (i32, i32, i32) {
    %c0_i32 = arith.constant 0 : i32
    %c0_i32_0 = arith.constant 0 : i32
    %c0_i32_1 = arith.constant 0 : i32
    return %arg1, %c0_i32, %c0_i32_0 : i32, i32, i32
  }
  func.func @transform_5(%arg0: i32, %arg1: i32) -> (i32, i32, i32) {
    %c0_i32 = arith.constant 0 : i32
    %c0_i32_0 = arith.constant 0 : i32
    %c0_i32_1 = arith.constant 0 : i32
    return %arg1, %c0_i32, %c0_i32_0 : i32, i32, i32
  }
  func.func @transform_6(%arg0: i32, %arg1: i32) -> (i32, i32, i32) {
    %c0_i32 = arith.constant 0 : i32
    %c0_i32_0 = arith.constant 0 : i32
    %c0_i32_1 = arith.constant 0 : i32
    return %arg1, %c0_i32, %c0_i32_0 : i32, i32, i32
  }
  func.func @transform_7(%arg0: i32, %arg1: i32) -> (i32, i32, i32) {
    %c0_i32 = arith.constant 0 : i32
    %c0_i32_0 = arith.constant 0 : i32
    %c0_i32_1 = arith.constant 0 : i32
    return %arg1, %c0_i32, %c0_i32_0 : i32, i32, i32
  }
  func.func @transform_8(%arg0: i32, %arg1: i32) -> (i32, i32, i32) {
    %c0_i32 = arith.constant 0 : i32
    %c0_i32_0 = arith.constant 0 : i32
    %c0_i32_1 = arith.constant 0 : i32
    return %arg1, %c0_i32, %c0_i32_0 : i32, i32, i32
  }
  func.func @transform_9(%arg0: i32, %arg1: i32) -> (i32, i32, i32) {
    %c0_i32 = arith.constant 0 : i32
    %c0_i32_0 = arith.constant 0 : i32
    %c0_i32_1 = arith.constant 0 : i32
    return %arg1, %c0_i32, %c0_i32_0 : i32, i32, i32
  }
  func.func @transform_10(%arg0: i32, %arg1: i32) -> (i32, i32, i32) {
    %c0_i32 = arith.constant 0 : i32
    %c0_i32_0 = arith.constant 0 : i32
    %c0_i32_1 = arith.constant 0 : i32
    return %arg1, %c0_i32, %c0_i32_0 : i32, i32, i32
  }
  func.func @transform_11(%arg0: i32, %arg1: i32) -> (i32, i32, i32) {
    %c0_i32 = arith.constant 0 : i32
    %c0_i32_0 = arith.constant 0 : i32
    %c0_i32_1 = arith.constant 0 : i32
    return %arg1, %c0_i32, %c0_i32_0 : i32, i32, i32
  }
  func.func @transform_12(%arg0: i32, %arg1: i32) -> (i32, i32, i32) {
    %c0_i32 = arith.constant 0 : i32
    %c0_i32_0 = arith.constant 0 : i32
    %c0_i32_1 = arith.constant 0 : i32
    return %arg1, %c0_i32, %c0_i32_0 : i32, i32, i32
  }
  func.func @transform_13(%arg0: i32, %arg1: i32) -> (i32, i32, i32) {
    %c0_i32 = arith.constant 0 : i32
    %c0_i32_0 = arith.constant 0 : i32
    %c0_i32_1 = arith.constant 0 : i32
    return %arg1, %c0_i32, %c0_i32_0 : i32, i32, i32
  }
  func.func @transform_14(%arg0: i32, %arg1: i32) -> (i32, i32, i32) {
    %c0_i32 = arith.constant 0 : i32
    %c0_i32_0 = arith.constant 0 : i32
    %c0_i32_1 = arith.constant 0 : i32
    return %arg0, %c0_i32, %c0_i32_0 : i32, i32, i32
  }
}

module attributes {stable_mosaic.version = 11 : i64} {
  func.func @_decoder_stack_kernel(%arg0: i32, %arg1: i32, %arg2: memref<1x8x128xf32, #tpu.memory_space<vmem>>, %arg3: memref<1x8x128xf32, #tpu.memory_space<vmem>>, %arg4: memref<1x8x8xf32, #tpu.memory_space<vmem>>, %arg5: memref<1x1x8xf32, #tpu.memory_space<vmem>>, %arg6: memref<1x128x384xbf16, #tpu.memory_space<vmem>>, %arg7: memref<1x1x384xf32, #tpu.memory_space<vmem>>, %arg8: memref<1x128x128xbf16, #tpu.memory_space<vmem>>, %arg9: memref<1x1x128xf32, #tpu.memory_space<vmem>>, %arg10: memref<1x1x128xf32, #tpu.memory_space<vmem>>, %arg11: memref<1x1x128xf32, #tpu.memory_space<vmem>>, %arg12: memref<1x128x128xbf16, #tpu.memory_space<vmem>>, %arg13: memref<1x1x128xf32, #tpu.memory_space<vmem>>, %arg14: memref<1x128x256xbf16, #tpu.memory_space<vmem>>, %arg15: memref<1x1x256xf32, #tpu.memory_space<vmem>>, %arg16: memref<1x128x128xbf16, #tpu.memory_space<vmem>>, %arg17: memref<1x1x128xf32, #tpu.memory_space<vmem>>, %arg18: memref<1x1x128xf32, #tpu.memory_space<vmem>>, %arg19: memref<1x1x128xf32, #tpu.memory_space<vmem>>, %arg20: memref<1x128x256xbf16, #tpu.memory_space<vmem>>, %arg21: memref<1x1x256xf32, #tpu.memory_space<vmem>>, %arg22: memref<1x256x128xbf16, #tpu.memory_space<vmem>>, %arg23: memref<1x1x128xf32, #tpu.memory_space<vmem>>, %arg24: memref<1x1x128xf32, #tpu.memory_space<vmem>>, %arg25: memref<1x1x128xf32, #tpu.memory_space<vmem>>, %arg26: memref<128x128xbf16, #tpu.memory_space<vmem>>, %arg27: memref<1x128xf32, #tpu.memory_space<vmem>>, %arg28: memref<1x8x128xf32, #tpu.memory_space<vmem>>, %arg29: memref<8x128xf32, #tpu.memory_space<vmem>>) attributes {dimension_semantics = [#tpu.dimension_semantics<parallel>, #tpu.dimension_semantics<arbitrary>], iteration_bounds = array<i64: 2, 2>, scalar_prefetch = 0 : i64, scratch_operands = 1 : i64, tpu.core_type = #tpu.core_type<tc>, window_params = [{transform_indices = @transform_0, window_bounds = array<i64: 1, 8, 128>}, {transform_indices = @transform_1, window_bounds = array<i64: 1, 8, 128>}, {transform_indices = @transform_2, window_bounds = array<i64: 1, 8, 8>}, {transform_indices = @transform_3, window_bounds = array<i64: 1, 1, 8>}, {transform_indices = @transform_4, window_bounds = array<i64: 1, 128, 384>}, {transform_indices = @transform_5, window_bounds = array<i64: 1, 1, 384>}, {transform_indices = @transform_6, window_bounds = array<i64: 1, 128, 128>}, {transform_indices = @transform_7, window_bounds = array<i64: 1, 1, 128>}, {transform_indices = @transform_8, window_bounds = array<i64: 1, 1, 128>}, {transform_indices = @transform_9, window_bounds = array<i64: 1, 1, 128>}, {transform_indices = @transform_10, window_bounds = array<i64: 1, 128, 128>}, {transform_indices = @transform_11, window_bounds = array<i64: 1, 1, 128>}, {transform_indices = @transform_12, window_bounds = array<i64: 1, 128, 256>}, {transform_indices = @transform_13, window_bounds = array<i64: 1, 1, 256>}, {transform_indices = @transform_14, window_bounds = array<i64: 1, 128, 128>}, {transform_indices = @transform_15, window_bounds = array<i64: 1, 1, 128>}, {transform_indices = @transform_16, window_bounds = array<i64: 1, 1, 128>}, {transform_indices = @transform_17, window_bounds = array<i64: 1, 1, 128>}, {transform_indices = @transform_18, window_bounds = array<i64: 1, 128, 256>}, {transform_indices = @transform_19, window_bounds = array<i64: 1, 1, 256>}, {transform_indices = @transform_20, window_bounds = array<i64: 1, 256, 128>}, {transform_indices = @transform_21, window_bounds = array<i64: 1, 1, 128>}, {transform_indices = @transform_22, window_bounds = array<i64: 1, 1, 128>}, {transform_indices = @transform_23, window_bounds = array<i64: 1, 1, 128>}, {pipeline_mode = #tpu.pipeline_mode<synchronous>, transform_indices = @transform_24, window_bounds = array<i64: 128, 128>}, {pipeline_mode = #tpu.pipeline_mode<synchronous>, transform_indices = @transform_25, window_bounds = array<i64: 1, 128>}, {transform_indices = @transform_26, window_bounds = array<i64: 1, 8, 128>}]} {
    %c0_i32 = arith.constant 0 : i32
    %0 = arith.cmpi eq, %arg1, %c0_i32 : i32
    %1 = arith.extui %0 : i1 to i32
    %c0_i32_0 = arith.constant 0 : i32
    %2 = arith.cmpi ne, %1, %c0_i32_0 : i32
    scf.if %2 {
      %c0_136 = arith.constant 0 : index
      %c0_137 = arith.constant 0 : index
      %c0_138 = arith.constant 0 : index
      %340 = vector.load %arg2[%c0_136, %c0_137, %c0_138] : memref<1x8x128xf32, #tpu.memory_space<vmem>>, vector<1x8x128xf32>
      %341 = vector.shape_cast %340 : vector<1x8x128xf32> to vector<8x128xf32>
      %c0_139 = arith.constant 0 : index
      %c0_140 = arith.constant 0 : index
      %342 = vector.load %arg29[%c0_139, %c0_140] : memref<8x128xf32, #tpu.memory_space<vmem>>, vector<8x128xf32>
      tpu.vector_store %arg29[%c0_139, %c0_140], %341 {strides = array<i32>} : memref<8x128xf32, #tpu.memory_space<vmem>>, vector<8x128xf32>,
    } else {
    }
    %c0 = arith.constant 0 : index
    %c0_1 = arith.constant 0 : index
    %3 = vector.load %arg29[%c0, %c0_1] : memref<8x128xf32, #tpu.memory_space<vmem>>, vector<8x128xf32>
    %c0_2 = arith.constant 0 : index
    %c0_3 = arith.constant 0 : index
    %c0_4 = arith.constant 0 : index
    %4 = vector.load %arg3[%c0_2, %c0_3, %c0_4] : memref<1x8x128xf32, #tpu.memory_space<vmem>>, vector<1x8x128xf32>
    %5 = vector.shape_cast %4 : vector<1x8x128xf32> to vector<8x128xf32>
    %6 = arith.truncf %3 : vector<8x128xf32> to vector<8x128xbf16>
    %c0_5 = arith.constant 0 : index
    %c0_6 = arith.constant 0 : index
    %c0_7 = arith.constant 0 : index
    %7 = vector.load %arg6[%c0_5, %c0_6, %c0_7] : memref<1x128x384xbf16, #tpu.memory_space<vmem>>, vector<1x128x384xbf16>
    %8 = vector.shape_cast %7 : vector<1x128x384xbf16> to vector<128x384xbf16>
    %cst = arith.constant dense<0.000000e+00> : vector<8x384xf32>
    %9 = tpu.matmul %6, %8, %cst {dimension_numbers = #tpu.dot_dimension_numbers<[1], [0], [0], [1], [0, 0, 1, 1], [], []>} : vector<8x128xbf16>, vector<128x384xbf16>, vector<8x384xf32> -> vector<8x384xf32>
    %c0_8 = arith.constant 0 : index
    %c0_9 = arith.constant 0 : index
    %c0_10 = arith.constant 0 : index
    %10 = vector.load %arg7[%c0_8, %c0_9, %c0_10] : memref<1x1x384xf32, #tpu.memory_space<vmem>>, vector<1x1x384xf32>
    %11 = vector.shape_cast %10 : vector<1x1x384xf32> to vector<1x384xf32>
    %12 = vector.broadcast %11 : vector<1x384xf32> to vector<8x384xf32>
    %13 = arith.addf %9, %12 : vector<8x384xf32>
    %14 = vector.extract_strided_slice %13 {offsets = [0, 0], sizes = [8, 128], strides = [1, 1]} : vector<8x384xf32> to vector<8x128xf32>
    %15 = vector.extract_strided_slice %13 {offsets = [0, 128], sizes = [8, 128], strides = [1, 1]} : vector<8x384xf32> to vector<8x128xf32>
    %16 = vector.extract_strided_slice %13 {offsets = [0, 256], sizes = [8, 128], strides = [1, 1]} : vector<8x384xf32> to vector<8x128xf32>
    %c0_11 = arith.constant 0 : index
    %c0_12 = arith.constant 0 : index
    %c0_13 = arith.constant 0 : index
    %17 = vector.load %arg4[%c0_11, %c0_12, %c0_13] : memref<1x8x8xf32, #tpu.memory_space<vmem>>, vector<1x8x8xf32>
    %18 = vector.shape_cast %17 : vector<1x8x8xf32> to vector<8x8xf32>
    %19 = vector.extract_strided_slice %14 {offsets = [0, 0], sizes = [8, 32], strides = [1, 1]} : vector<8x128xf32> to vector<8x32xf32>
    %20 = arith.truncf %19 : vector<8x32xf32> to vector<8x32xbf16>
    %21 = vector.extract_strided_slice %15 {offsets = [0, 0], sizes = [8, 32], strides = [1, 1]} : vector<8x128xf32> to vector<8x32xf32>
    %22 = arith.truncf %21 : vector<8x32xf32> to vector<8x32xbf16>
    %23 = vector.extract_strided_slice %16 {offsets = [0, 0], sizes = [8, 32], strides = [1, 1]} : vector<8x128xf32> to vector<8x32xf32>
    %24 = arith.truncf %23 : vector<8x32xf32> to vector<8x32xbf16>
    %cst_14 = arith.constant dense<0.000000e+00> : vector<8x8xf32>
    %25 = tpu.matmul %20, %22, %cst_14 {dimension_numbers = #tpu.dot_dimension_numbers<[1], [1], [0], [0], [0, 0, 1, 0], [], []>} : vector<8x32xbf16>, vector<8x32xbf16>, vector<8x8xf32> -> vector<8x8xf32>
    %cst_15 = arith.constant 0.176776692 : f32
    %26 = vector.broadcast %cst_15 : f32 to vector<8x8xf32>
    %27 = arith.mulf %25, %26 : vector<8x8xf32>
    %28 = arith.addf %27, %18 : vector<8x8xf32>
    %cst_16 = arith.constant dense<0xFF800000> : vector<8xf32>
    %29 = vector.multi_reduction <maximumf>, %28, %cst_16 [1] : vector<8x8xf32> to vector<8xf32>
    %30 = vector.shape_cast %29 : vector<8xf32> to vector<8x1xf32>
    %31 = vector.broadcast %30 : vector<8x1xf32> to vector<8x8xf32>
    %32 = arith.subf %28, %31 : vector<8x8xf32>
    %33 = math.exp %32 : vector<8x8xf32>
    %cst_17 = arith.constant dense<0.000000e+00> : vector<8xf32>
    %34 = vector.multi_reduction <add>, %33, %cst_17 [1] : vector<8x8xf32> to vector<8xf32>
    %35 = vector.shape_cast %34 : vector<8xf32> to vector<8x1xf32>
    %36 = tpu.reciprocal %35 {approx = true} : vector<8x1xf32> -> vector<8x1xf32>
    %37 = vector.broadcast %36 : vector<8x1xf32> to vector<8x8xf32>
    %38 = arith.mulf %33, %37 : vector<8x8xf32>
    %39 = arith.truncf %38 : vector<8x8xf32> to vector<8x8xbf16>
    %cst_18 = arith.constant dense<0.000000e+00> : vector<8x32xf32>
    %40 = tpu.matmul %39, %24, %cst_18 {dimension_numbers = #tpu.dot_dimension_numbers<[1], [0], [0], [1], [0, 0, 1, 1], [], []>} : vector<8x8xbf16>, vector<8x32xbf16>, vector<8x32xf32> -> vector<8x32xf32>
    %41 = vector.extract_strided_slice %14 {offsets = [0, 32], sizes = [8, 32], strides = [1, 1]} : vector<8x128xf32> to vector<8x32xf32>
    %42 = arith.truncf %41 : vector<8x32xf32> to vector<8x32xbf16>
    %43 = vector.extract_strided_slice %15 {offsets = [0, 32], sizes = [8, 32], strides = [1, 1]} : vector<8x128xf32> to vector<8x32xf32>
    %44 = arith.truncf %43 : vector<8x32xf32> to vector<8x32xbf16>
    %45 = vector.extract_strided_slice %16 {offsets = [0, 32], sizes = [8, 32], strides = [1, 1]} : vector<8x128xf32> to vector<8x32xf32>
    %46 = arith.truncf %45 : vector<8x32xf32> to vector<8x32xbf16>
    %cst_19 = arith.constant dense<0.000000e+00> : vector<8x8xf32>
    %47 = tpu.matmul %42, %44, %cst_19 {dimension_numbers = #tpu.dot_dimension_numbers<[1], [1], [0], [0], [0, 0, 1, 0], [], []>} : vector<8x32xbf16>, vector<8x32xbf16>, vector<8x8xf32> -> vector<8x8xf32>
    %cst_20 = arith.constant 0.176776692 : f32
    %48 = vector.broadcast %cst_20 : f32 to vector<8x8xf32>
    %49 = arith.mulf %47, %48 : vector<8x8xf32>
    %50 = arith.addf %49, %18 : vector<8x8xf32>
    %cst_21 = arith.constant dense<0xFF800000> : vector<8xf32>
    %51 = vector.multi_reduction <maximumf>, %50, %cst_21 [1] : vector<8x8xf32> to vector<8xf32>
    %52 = vector.shape_cast %51 : vector<8xf32> to vector<8x1xf32>
    %53 = vector.broadcast %52 : vector<8x1xf32> to vector<8x8xf32>
    %54 = arith.subf %50, %53 : vector<8x8xf32>
    %55 = math.exp %54 : vector<8x8xf32>
    %cst_22 = arith.constant dense<0.000000e+00> : vector<8xf32>
    %56 = vector.multi_reduction <add>, %55, %cst_22 [1] : vector<8x8xf32> to vector<8xf32>
    %57 = vector.shape_cast %56 : vector<8xf32> to vector<8x1xf32>
    %58 = tpu.reciprocal %57 {approx = true} : vector<8x1xf32> -> vector<8x1xf32>
    %59 = vector.broadcast %58 : vector<8x1xf32> to vector<8x8xf32>
    %60 = arith.mulf %55, %59 : vector<8x8xf32>
    %61 = arith.truncf %60 : vector<8x8xf32> to vector<8x8xbf16>
    %cst_23 = arith.constant dense<0.000000e+00> : vector<8x32xf32>
    %62 = tpu.matmul %61, %46, %cst_23 {dimension_numbers = #tpu.dot_dimension_numbers<[1], [0], [0], [1], [0, 0, 1, 1], [], []>} : vector<8x8xbf16>, vector<8x32xbf16>, vector<8x32xf32> -> vector<8x32xf32>
    %63 = vector.extract_strided_slice %14 {offsets = [0, 64], sizes = [8, 32], strides = [1, 1]} : vector<8x128xf32> to vector<8x32xf32>
    %64 = arith.truncf %63 : vector<8x32xf32> to vector<8x32xbf16>
    %65 = vector.extract_strided_slice %15 {offsets = [0, 64], sizes = [8, 32], strides = [1, 1]} : vector<8x128xf32> to vector<8x32xf32>
    %66 = arith.truncf %65 : vector<8x32xf32> to vector<8x32xbf16>
    %67 = vector.extract_strided_slice %16 {offsets = [0, 64], sizes = [8, 32], strides = [1, 1]} : vector<8x128xf32> to vector<8x32xf32>
    %68 = arith.truncf %67 : vector<8x32xf32> to vector<8x32xbf16>
    %cst_24 = arith.constant dense<0.000000e+00> : vector<8x8xf32>
    %69 = tpu.matmul %64, %66, %cst_24 {dimension_numbers = #tpu.dot_dimension_numbers<[1], [1], [0], [0], [0, 0, 1, 0], [], []>} : vector<8x32xbf16>, vector<8x32xbf16>, vector<8x8xf32> -> vector<8x8xf32>
    %cst_25 = arith.constant 0.176776692 : f32
    %70 = vector.broadcast %cst_25 : f32 to vector<8x8xf32>
    %71 = arith.mulf %69, %70 : vector<8x8xf32>
    %72 = arith.addf %71, %18 : vector<8x8xf32>
    %cst_26 = arith.constant dense<0xFF800000> : vector<8xf32>
    %73 = vector.multi_reduction <maximumf>, %72, %cst_26 [1] : vector<8x8xf32> to vector<8xf32>
    %74 = vector.shape_cast %73 : vector<8xf32> to vector<8x1xf32>
    %75 = vector.broadcast %74 : vector<8x1xf32> to vector<8x8xf32>
    %76 = arith.subf %72, %75 : vector<8x8xf32>
    %77 = math.exp %76 : vector<8x8xf32>
    %cst_27 = arith.constant dense<0.000000e+00> : vector<8xf32>
    %78 = vector.multi_reduction <add>, %77, %cst_27 [1] : vector<8x8xf32> to vector<8xf32>
    %79 = vector.shape_cast %78 : vector<8xf32> to vector<8x1xf32>
    %80 = tpu.reciprocal %79 {approx = true} : vector<8x1xf32> -> vector<8x1xf32>
    %81 = vector.broadcast %80 : vector<8x1xf32> to vector<8x8xf32>
    %82 = arith.mulf %77, %81 : vector<8x8xf32>
    %83 = arith.truncf %82 : vector<8x8xf32> to vector<8x8xbf16>
    %cst_28 = arith.constant dense<0.000000e+00> : vector<8x32xf32>
    %84 = tpu.matmul %83, %68, %cst_28 {dimension_numbers = #tpu.dot_dimension_numbers<[1], [0], [0], [1], [0, 0, 1, 1], [], []>} : vector<8x8xbf16>, vector<8x32xbf16>, vector<8x32xf32> -> vector<8x32xf32>
    %85 = vector.extract_strided_slice %14 {offsets = [0, 96], sizes = [8, 32], strides = [1, 1]} : vector<8x128xf32> to vector<8x32xf32>
    %86 = arith.truncf %85 : vector<8x32xf32> to vector<8x32xbf16>
    %87 = vector.extract_strided_slice %15 {offsets = [0, 96], sizes = [8, 32], strides = [1, 1]} : vector<8x128xf32> to vector<8x32xf32>
    %88 = arith.truncf %87 : vector<8x32xf32> to vector<8x32xbf16>
    %89 = vector.extract_strided_slice %16 {offsets = [0, 96], sizes = [8, 32], strides = [1, 1]} : vector<8x128xf32> to vector<8x32xf32>
    %90 = arith.truncf %89 : vector<8x32xf32> to vector<8x32xbf16>
    %cst_29 = arith.constant dense<0.000000e+00> : vector<8x8xf32>
    %91 = tpu.matmul %86, %88, %cst_29 {dimension_numbers = #tpu.dot_dimension_numbers<[1], [1], [0], [0], [0, 0, 1, 0], [], []>} : vector<8x32xbf16>, vector<8x32xbf16>, vector<8x8xf32> -> vector<8x8xf32>
    %cst_30 = arith.constant 0.176776692 : f32
    %92 = vector.broadcast %cst_30 : f32 to vector<8x8xf32>
    %93 = arith.mulf %91, %92 : vector<8x8xf32>
    %94 = arith.addf %93, %18 : vector<8x8xf32>
    %cst_31 = arith.constant dense<0xFF800000> : vector<8xf32>
    %95 = vector.multi_reduction <maximumf>, %94, %cst_31 [1] : vector<8x8xf32> to vector<8xf32>
    %96 = vector.shape_cast %95 : vector<8xf32> to vector<8x1xf32>
    %97 = vector.broadcast %96 : vector<8x1xf32> to vector<8x8xf32>
    %98 = arith.subf %94, %97 : vector<8x8xf32>
    %99 = math.exp %98 : vector<8x8xf32>
    %cst_32 = arith.constant dense<0.000000e+00> : vector<8xf32>
    %100 = vector.multi_reduction <add>, %99, %cst_32 [1] : vector<8x8xf32> to vector<8xf32>
    %101 = vector.shape_cast %100 : vector<8xf32> to vector<8x1xf32>
    %102 = tpu.reciprocal %101 {approx = true} : vector<8x1xf32> -> vector<8x1xf32>
    %103 = vector.broadcast %102 : vector<8x1xf32> to vector<8x8xf32>
    %104 = arith.mulf %99, %103 : vector<8x8xf32>
    %105 = arith.truncf %104 : vector<8x8xf32> to vector<8x8xbf16>
    %cst_33 = arith.constant dense<0.000000e+00> : vector<8x32xf32>
    %106 = tpu.matmul %105, %90, %cst_33 {dimension_numbers = #tpu.dot_dimension_numbers<[1], [0], [0], [1], [0, 0, 1, 1], [], []>} : vector<8x8xbf16>, vector<8x32xbf16>, vector<8x32xf32> -> vector<8x32xf32>
    %107 = tpu.concatenate %40, %62, %84, %106 in 1 : vector<8x32xf32>, vector<8x32xf32>, vector<8x32xf32>, vector<8x32xf32> -> vector<8x128xf32>
    %108 = arith.truncf %107 : vector<8x128xf32> to vector<8x128xbf16>
    %c0_34 = arith.constant 0 : index
    %c0_35 = arith.constant 0 : index
    %c0_36 = arith.constant 0 : index
    %109 = vector.load %arg8[%c0_34, %c0_35, %c0_36] : memref<1x128x128xbf16, #tpu.memory_space<vmem>>, vector<1x128x128xbf16>
    %110 = vector.shape_cast %109 : vector<1x128x128xbf16> to vector<128x128xbf16>
    %cst_37 = arith.constant dense<0.000000e+00> : vector<8x128xf32>
    %111 = tpu.matmul %108, %110, %cst_37 {dimension_numbers = #tpu.dot_dimension_numbers<[1], [0], [0], [1], [0, 0, 1, 1], [], []>} : vector<8x128xbf16>, vector<128x128xbf16>, vector<8x128xf32> -> vector<8x128xf32>
    %c0_38 = arith.constant 0 : index
    %c0_39 = arith.constant 0 : index
    %c0_40 = arith.constant 0 : index
    %112 = vector.load %arg9[%c0_38, %c0_39, %c0_40] : memref<1x1x128xf32, #tpu.memory_space<vmem>>, vector<1x1x128xf32>
    %113 = vector.shape_cast %112 : vector<1x1x128xf32> to vector<1x128xf32>
    %114 = vector.broadcast %113 : vector<1x128xf32> to vector<8x128xf32>
    %115 = arith.addf %111, %114 : vector<8x128xf32>
    %116 = arith.addf %3, %115 : vector<8x128xf32>
    %c0_41 = arith.constant 0 : index
    %c0_42 = arith.constant 0 : index
    %c0_43 = arith.constant 0 : index
    %117 = vector.load %arg10[%c0_41, %c0_42, %c0_43] : memref<1x1x128xf32, #tpu.memory_space<vmem>>, vector<1x1x128xf32>
    %118 = vector.shape_cast %117 : vector<1x1x128xf32> to vector<1x128xf32>
    %c0_44 = arith.constant 0 : index
    %c0_45 = arith.constant 0 : index
    %c0_46 = arith.constant 0 : index
    %119 = vector.load %arg11[%c0_44, %c0_45, %c0_46] : memref<1x1x128xf32, #tpu.memory_space<vmem>>, vector<1x1x128xf32>
    %120 = vector.shape_cast %119 : vector<1x1x128xf32> to vector<1x128xf32>
    %cst_47 = arith.constant dense<0.000000e+00> : vector<8xf32>
    %121 = vector.multi_reduction <add>, %116, %cst_47 [1] : vector<8x128xf32> to vector<8xf32>
    %122 = vector.shape_cast %121 : vector<8xf32> to vector<8x1xf32>
    %cst_48 = arith.constant 1.280000e+02 : f32
    %123 = vector.broadcast %cst_48 : f32 to vector<8x1xf32>
    %124 = arith.divf %122, %123 : vector<8x1xf32>
    %125 = vector.broadcast %124 : vector<8x1xf32> to vector<8x128xf32>
    %126 = arith.subf %116, %125 : vector<8x128xf32>
    %127 = arith.mulf %126, %126 : vector<8x128xf32>
    %cst_49 = arith.constant dense<0.000000e+00> : vector<8xf32>
    %128 = vector.multi_reduction <add>, %127, %cst_49 [1] : vector<8x128xf32> to vector<8xf32>
    %129 = vector.shape_cast %128 : vector<8xf32> to vector<8x1xf32>
    %cst_50 = arith.constant 1.280000e+02 : f32
    %130 = vector.broadcast %cst_50 : f32 to vector<8x1xf32>
    %131 = arith.divf %129, %130 : vector<8x1xf32>
    %132 = vector.broadcast %124 : vector<8x1xf32> to vector<8x128xf32>
    %133 = arith.subf %116, %132 : vector<8x128xf32>
    %cst_51 = arith.constant 9.99999974E-6 : f32
    %134 = vector.broadcast %cst_51 : f32 to vector<8x1xf32>
    %135 = arith.addf %131, %134 : vector<8x1xf32>
    %136 = math.rsqrt %135 : vector<8x1xf32>
    %137 = vector.broadcast %136 : vector<8x1xf32> to vector<8x128xf32>
    %138 = arith.mulf %133, %137 : vector<8x128xf32>
    %139 = vector.broadcast %118 : vector<1x128xf32> to vector<8x128xf32>
    %140 = arith.mulf %138, %139 : vector<8x128xf32>
    %141 = vector.broadcast %120 : vector<1x128xf32> to vector<8x128xf32>
    %142 = arith.addf %140, %141 : vector<8x128xf32>
    %143 = arith.truncf %142 : vector<8x128xf32> to vector<8x128xbf16>
    %c0_52 = arith.constant 0 : index
    %c0_53 = arith.constant 0 : index
    %c0_54 = arith.constant 0 : index
    %144 = vector.load %arg12[%c0_52, %c0_53, %c0_54] : memref<1x128x128xbf16, #tpu.memory_space<vmem>>, vector<1x128x128xbf16>
    %145 = vector.shape_cast %144 : vector<1x128x128xbf16> to vector<128x128xbf16>
    %cst_55 = arith.constant dense<0.000000e+00> : vector<8x128xf32>
    %146 = tpu.matmul %143, %145, %cst_55 {dimension_numbers = #tpu.dot_dimension_numbers<[1], [0], [0], [1], [0, 0, 1, 1], [], []>} : vector<8x128xbf16>, vector<128x128xbf16>, vector<8x128xf32> -> vector<8x128xf32>
    %c0_56 = arith.constant 0 : index
    %c0_57 = arith.constant 0 : index
    %c0_58 = arith.constant 0 : index
    %147 = vector.load %arg13[%c0_56, %c0_57, %c0_58] : memref<1x1x128xf32, #tpu.memory_space<vmem>>, vector<1x1x128xf32>
    %148 = vector.shape_cast %147 : vector<1x1x128xf32> to vector<1x128xf32>
    %149 = vector.broadcast %148 : vector<1x128xf32> to vector<8x128xf32>
    %150 = arith.addf %146, %149 : vector<8x128xf32>
    %151 = arith.truncf %5 : vector<8x128xf32> to vector<8x128xbf16>
    %c0_59 = arith.constant 0 : index
    %c0_60 = arith.constant 0 : index
    %c0_61 = arith.constant 0 : index
    %152 = vector.load %arg14[%c0_59, %c0_60, %c0_61] : memref<1x128x256xbf16, #tpu.memory_space<vmem>>, vector<1x128x256xbf16>
    %153 = vector.shape_cast %152 : vector<1x128x256xbf16> to vector<128x256xbf16>
    %cst_62 = arith.constant dense<0.000000e+00> : vector<8x256xf32>
    %154 = tpu.matmul %151, %153, %cst_62 {dimension_numbers = #tpu.dot_dimension_numbers<[1], [0], [0], [1], [0, 0, 1, 1], [], []>} : vector<8x128xbf16>, vector<128x256xbf16>, vector<8x256xf32> -> vector<8x256xf32>
    %c0_63 = arith.constant 0 : index
    %c0_64 = arith.constant 0 : index
    %c0_65 = arith.constant 0 : index
    %155 = vector.load %arg15[%c0_63, %c0_64, %c0_65] : memref<1x1x256xf32, #tpu.memory_space<vmem>>, vector<1x1x256xf32>
    %156 = vector.shape_cast %155 : vector<1x1x256xf32> to vector<1x256xf32>
    %157 = vector.broadcast %156 : vector<1x256xf32> to vector<8x256xf32>
    %158 = arith.addf %154, %157 : vector<8x256xf32>
    %159 = vector.extract_strided_slice %158 {offsets = [0, 0], sizes = [8, 128], strides = [1, 1]} : vector<8x256xf32> to vector<8x128xf32>
    %160 = vector.extract_strided_slice %158 {offsets = [0, 128], sizes = [8, 128], strides = [1, 1]} : vector<8x256xf32> to vector<8x128xf32>
    %c0_66 = arith.constant 0 : index
    %c0_67 = arith.constant 0 : index
    %c0_68 = arith.constant 0 : index
    %161 = vector.load %arg5[%c0_66, %c0_67, %c0_68] : memref<1x1x8xf32, #tpu.memory_space<vmem>>, vector<1x1x8xf32>
    %162 = vector.shape_cast %161 : vector<1x1x8xf32> to vector<1x8xf32>
    %163 = vector.extract_strided_slice %150 {offsets = [0, 0], sizes = [8, 32], strides = [1, 1]} : vector<8x128xf32> to vector<8x32xf32>
    %164 = arith.truncf %163 : vector<8x32xf32> to vector<8x32xbf16>
    %165 = vector.extract_strided_slice %159 {offsets = [0, 0], sizes = [8, 32], strides = [1, 1]} : vector<8x128xf32> to vector<8x32xf32>
    %166 = arith.truncf %165 : vector<8x32xf32> to vector<8x32xbf16>
    %167 = vector.extract_strided_slice %160 {offsets = [0, 0], sizes = [8, 32], strides = [1, 1]} : vector<8x128xf32> to vector<8x32xf32>
    %168 = arith.truncf %167 : vector<8x32xf32> to vector<8x32xbf16>
    %cst_69 = arith.constant dense<0.000000e+00> : vector<8x8xf32>
    %169 = tpu.matmul %164, %166, %cst_69 {dimension_numbers = #tpu.dot_dimension_numbers<[1], [1], [0], [0], [0, 0, 1, 0], [], []>} : vector<8x32xbf16>, vector<8x32xbf16>, vector<8x8xf32> -> vector<8x8xf32>
    %cst_70 = arith.constant 0.176776692 : f32
    %170 = vector.broadcast %cst_70 : f32 to vector<8x8xf32>
    %171 = arith.mulf %169, %170 : vector<8x8xf32>
    %172 = vector.broadcast %162 : vector<1x8xf32> to vector<8x8xf32>
    %173 = arith.addf %171, %172 : vector<8x8xf32>
    %cst_71 = arith.constant dense<0xFF800000> : vector<8xf32>
    %174 = vector.multi_reduction <maximumf>, %173, %cst_71 [1] : vector<8x8xf32> to vector<8xf32>
    %175 = vector.shape_cast %174 : vector<8xf32> to vector<8x1xf32>
    %176 = vector.broadcast %175 : vector<8x1xf32> to vector<8x8xf32>
    %177 = arith.subf %173, %176 : vector<8x8xf32>
    %178 = math.exp %177 : vector<8x8xf32>
    %cst_72 = arith.constant dense<0.000000e+00> : vector<8xf32>
    %179 = vector.multi_reduction <add>, %178, %cst_72 [1] : vector<8x8xf32> to vector<8xf32>
    %180 = vector.shape_cast %179 : vector<8xf32> to vector<8x1xf32>
    %181 = tpu.reciprocal %180 {approx = true} : vector<8x1xf32> -> vector<8x1xf32>
    %182 = vector.broadcast %181 : vector<8x1xf32> to vector<8x8xf32>
    %183 = arith.mulf %178, %182 : vector<8x8xf32>
    %184 = arith.truncf %183 : vector<8x8xf32> to vector<8x8xbf16>
    %cst_73 = arith.constant dense<0.000000e+00> : vector<8x32xf32>
    %185 = tpu.matmul %184, %168, %cst_73 {dimension_numbers = #tpu.dot_dimension_numbers<[1], [0], [0], [1], [0, 0, 1, 1], [], []>} : vector<8x8xbf16>, vector<8x32xbf16>, vector<8x32xf32> -> vector<8x32xf32>
    %186 = vector.extract_strided_slice %150 {offsets = [0, 32], sizes = [8, 32], strides = [1, 1]} : vector<8x128xf32> to vector<8x32xf32>
    %187 = arith.truncf %186 : vector<8x32xf32> to vector<8x32xbf16>
    %188 = vector.extract_strided_slice %159 {offsets = [0, 32], sizes = [8, 32], strides = [1, 1]} : vector<8x128xf32> to vector<8x32xf32>
    %189 = arith.truncf %188 : vector<8x32xf32> to vector<8x32xbf16>
    %190 = vector.extract_strided_slice %160 {offsets = [0, 32], sizes = [8, 32], strides = [1, 1]} : vector<8x128xf32> to vector<8x32xf32>
    %191 = arith.truncf %190 : vector<8x32xf32> to vector<8x32xbf16>
    %cst_74 = arith.constant dense<0.000000e+00> : vector<8x8xf32>
    %192 = tpu.matmul %187, %189, %cst_74 {dimension_numbers = #tpu.dot_dimension_numbers<[1], [1], [0], [0], [0, 0, 1, 0], [], []>} : vector<8x32xbf16>, vector<8x32xbf16>, vector<8x8xf32> -> vector<8x8xf32>
    %cst_75 = arith.constant 0.176776692 : f32
    %193 = vector.broadcast %cst_75 : f32 to vector<8x8xf32>
    %194 = arith.mulf %192, %193 : vector<8x8xf32>
    %195 = vector.broadcast %162 : vector<1x8xf32> to vector<8x8xf32>
    %196 = arith.addf %194, %195 : vector<8x8xf32>
    %cst_76 = arith.constant dense<0xFF800000> : vector<8xf32>
    %197 = vector.multi_reduction <maximumf>, %196, %cst_76 [1] : vector<8x8xf32> to vector<8xf32>
    %198 = vector.shape_cast %197 : vector<8xf32> to vector<8x1xf32>
    %199 = vector.broadcast %198 : vector<8x1xf32> to vector<8x8xf32>
    %200 = arith.subf %196, %199 : vector<8x8xf32>
    %201 = math.exp %200 : vector<8x8xf32>
    %cst_77 = arith.constant dense<0.000000e+00> : vector<8xf32>
    %202 = vector.multi_reduction <add>, %201, %cst_77 [1] : vector<8x8xf32> to vector<8xf32>
    %203 = vector.shape_cast %202 : vector<8xf32> to vector<8x1xf32>
    %204 = tpu.reciprocal %203 {approx = true} : vector<8x1xf32> -> vector<8x1xf32>
    %205 = vector.broadcast %204 : vector<8x1xf32> to vector<8x8xf32>
    %206 = arith.mulf %201, %205 : vector<8x8xf32>
    %207 = arith.truncf %206 : vector<8x8xf32> to vector<8x8xbf16>
    %cst_78 = arith.constant dense<0.000000e+00> : vector<8x32xf32>
    %208 = tpu.matmul %207, %191, %cst_78 {dimension_numbers = #tpu.dot_dimension_numbers<[1], [0], [0], [1], [0, 0, 1, 1], [], []>} : vector<8x8xbf16>, vector<8x32xbf16>, vector<8x32xf32> -> vector<8x32xf32>
    %209 = vector.extract_strided_slice %150 {offsets = [0, 64], sizes = [8, 32], strides = [1, 1]} : vector<8x128xf32> to vector<8x32xf32>
    %210 = arith.truncf %209 : vector<8x32xf32> to vector<8x32xbf16>
    %211 = vector.extract_strided_slice %159 {offsets = [0, 64], sizes = [8, 32], strides = [1, 1]} : vector<8x128xf32> to vector<8x32xf32>
    %212 = arith.truncf %211 : vector<8x32xf32> to vector<8x32xbf16>
    %213 = vector.extract_strided_slice %160 {offsets = [0, 64], sizes = [8, 32], strides = [1, 1]} : vector<8x128xf32> to vector<8x32xf32>
    %214 = arith.truncf %213 : vector<8x32xf32> to vector<8x32xbf16>
    %cst_79 = arith.constant dense<0.000000e+00> : vector<8x8xf32>
    %215 = tpu.matmul %210, %212, %cst_79 {dimension_numbers = #tpu.dot_dimension_numbers<[1], [1], [0], [0], [0, 0, 1, 0], [], []>} : vector<8x32xbf16>, vector<8x32xbf16>, vector<8x8xf32> -> vector<8x8xf32>
    %cst_80 = arith.constant 0.176776692 : f32
    %216 = vector.broadcast %cst_80 : f32 to vector<8x8xf32>
    %217 = arith.mulf %215, %216 : vector<8x8xf32>
    %218 = vector.broadcast %162 : vector<1x8xf32> to vector<8x8xf32>
    %219 = arith.addf %217, %218 : vector<8x8xf32>
    %cst_81 = arith.constant dense<0xFF800000> : vector<8xf32>
    %220 = vector.multi_reduction <maximumf>, %219, %cst_81 [1] : vector<8x8xf32> to vector<8xf32>
    %221 = vector.shape_cast %220 : vector<8xf32> to vector<8x1xf32>
    %222 = vector.broadcast %221 : vector<8x1xf32> to vector<8x8xf32>
    %223 = arith.subf %219, %222 : vector<8x8xf32>
    %224 = math.exp %223 : vector<8x8xf32>
    %cst_82 = arith.constant dense<0.000000e+00> : vector<8xf32>
    %225 = vector.multi_reduction <add>, %224, %cst_82 [1] : vector<8x8xf32> to vector<8xf32>
    %226 = vector.shape_cast %225 : vector<8xf32> to vector<8x1xf32>
    %227 = tpu.reciprocal %226 {approx = true} : vector<8x1xf32> -> vector<8x1xf32>
    %228 = vector.broadcast %227 : vector<8x1xf32> to vector<8x8xf32>
    %229 = arith.mulf %224, %228 : vector<8x8xf32>
    %230 = arith.truncf %229 : vector<8x8xf32> to vector<8x8xbf16>
    %cst_83 = arith.constant dense<0.000000e+00> : vector<8x32xf32>
    %231 = tpu.matmul %230, %214, %cst_83 {dimension_numbers = #tpu.dot_dimension_numbers<[1], [0], [0], [1], [0, 0, 1, 1], [], []>} : vector<8x8xbf16>, vector<8x32xbf16>, vector<8x32xf32> -> vector<8x32xf32>
    %232 = vector.extract_strided_slice %150 {offsets = [0, 96], sizes = [8, 32], strides = [1, 1]} : vector<8x128xf32> to vector<8x32xf32>
    %233 = arith.truncf %232 : vector<8x32xf32> to vector<8x32xbf16>
    %234 = vector.extract_strided_slice %159 {offsets = [0, 96], sizes = [8, 32], strides = [1, 1]} : vector<8x128xf32> to vector<8x32xf32>
    %235 = arith.truncf %234 : vector<8x32xf32> to vector<8x32xbf16>
    %236 = vector.extract_strided_slice %160 {offsets = [0, 96], sizes = [8, 32], strides = [1, 1]} : vector<8x128xf32> to vector<8x32xf32>
    %237 = arith.truncf %236 : vector<8x32xf32> to vector<8x32xbf16>
    %cst_84 = arith.constant dense<0.000000e+00> : vector<8x8xf32>
    %238 = tpu.matmul %233, %235, %cst_84 {dimension_numbers = #tpu.dot_dimension_numbers<[1], [1], [0], [0], [0, 0, 1, 0], [], []>} : vector<8x32xbf16>, vector<8x32xbf16>, vector<8x8xf32> -> vector<8x8xf32>
    %cst_85 = arith.constant 0.176776692 : f32
    %239 = vector.broadcast %cst_85 : f32 to vector<8x8xf32>
    %240 = arith.mulf %238, %239 : vector<8x8xf32>
    %241 = vector.broadcast %162 : vector<1x8xf32> to vector<8x8xf32>
    %242 = arith.addf %240, %241 : vector<8x8xf32>
    %cst_86 = arith.constant dense<0xFF800000> : vector<8xf32>
    %243 = vector.multi_reduction <maximumf>, %242, %cst_86 [1] : vector<8x8xf32> to vector<8xf32>
    %244 = vector.shape_cast %243 : vector<8xf32> to vector<8x1xf32>
    %245 = vector.broadcast %244 : vector<8x1xf32> to vector<8x8xf32>
    %246 = arith.subf %242, %245 : vector<8x8xf32>
    %247 = math.exp %246 : vector<8x8xf32>
    %cst_87 = arith.constant dense<0.000000e+00> : vector<8xf32>
    %248 = vector.multi_reduction <add>, %247, %cst_87 [1] : vector<8x8xf32> to vector<8xf32>
    %249 = vector.shape_cast %248 : vector<8xf32> to vector<8x1xf32>
    %250 = tpu.reciprocal %249 {approx = true} : vector<8x1xf32> -> vector<8x1xf32>
    %251 = vector.broadcast %250 : vector<8x1xf32> to vector<8x8xf32>
    %252 = arith.mulf %247, %251 : vector<8x8xf32>
    %253 = arith.truncf %252 : vector<8x8xf32> to vector<8x8xbf16>
    %cst_88 = arith.constant dense<0.000000e+00> : vector<8x32xf32>
    %254 = tpu.matmul %253, %237, %cst_88 {dimension_numbers = #tpu.dot_dimension_numbers<[1], [0], [0], [1], [0, 0, 1, 1], [], []>} : vector<8x8xbf16>, vector<8x32xbf16>, vector<8x32xf32> -> vector<8x32xf32>
    %255 = tpu.concatenate %185, %208, %231, %254 in 1 : vector<8x32xf32>, vector<8x32xf32>, vector<8x32xf32>, vector<8x32xf32> -> vector<8x128xf32>
    %256 = arith.truncf %255 : vector<8x128xf32> to vector<8x128xbf16>
    %c0_89 = arith.constant 0 : index
    %c0_90 = arith.constant 0 : index
    %c0_91 = arith.constant 0 : index
    %257 = vector.load %arg16[%c0_89, %c0_90, %c0_91] : memref<1x128x128xbf16, #tpu.memory_space<vmem>>, vector<1x128x128xbf16>
    %258 = vector.shape_cast %257 : vector<1x128x128xbf16> to vector<128x128xbf16>
    %cst_92 = arith.constant dense<0.000000e+00> : vector<8x128xf32>
    %259 = tpu.matmul %256, %258, %cst_92 {dimension_numbers = #tpu.dot_dimension_numbers<[1], [0], [0], [1], [0, 0, 1, 1], [], []>} : vector<8x128xbf16>, vector<128x128xbf16>, vector<8x128xf32> -> vector<8x128xf32>
    %c0_93 = arith.constant 0 : index
    %c0_94 = arith.constant 0 : index
    %c0_95 = arith.constant 0 : index
    %260 = vector.load %arg17[%c0_93, %c0_94, %c0_95] : memref<1x1x128xf32, #tpu.memory_space<vmem>>, vector<1x1x128xf32>
    %261 = vector.shape_cast %260 : vector<1x1x128xf32> to vector<1x128xf32>
    %262 = vector.broadcast %261 : vector<1x128xf32> to vector<8x128xf32>
    %263 = arith.addf %259, %262 : vector<8x128xf32>
    %264 = arith.addf %142, %263 : vector<8x128xf32>
    %c0_96 = arith.constant 0 : index
    %c0_97 = arith.constant 0 : index
    %c0_98 = arith.constant 0 : index
    %265 = vector.load %arg18[%c0_96, %c0_97, %c0_98] : memref<1x1x128xf32, #tpu.memory_space<vmem>>, vector<1x1x128xf32>
    %266 = vector.shape_cast %265 : vector<1x1x128xf32> to vector<1x128xf32>
    %c0_99 = arith.constant 0 : index
    %c0_100 = arith.constant 0 : index
    %c0_101 = arith.constant 0 : index
    %267 = vector.load %arg19[%c0_99, %c0_100, %c0_101] : memref<1x1x128xf32, #tpu.memory_space<vmem>>, vector<1x1x128xf32>
    %268 = vector.shape_cast %267 : vector<1x1x128xf32> to vector<1x128xf32>
    %cst_102 = arith.constant dense<0.000000e+00> : vector<8xf32>
    %269 = vector.multi_reduction <add>, %264, %cst_102 [1] : vector<8x128xf32> to vector<8xf32>
    %270 = vector.shape_cast %269 : vector<8xf32> to vector<8x1xf32>
    %cst_103 = arith.constant 1.280000e+02 : f32
    %271 = vector.broadcast %cst_103 : f32 to vector<8x1xf32>
    %272 = arith.divf %270, %271 : vector<8x1xf32>
    %273 = vector.broadcast %272 : vector<8x1xf32> to vector<8x128xf32>
    %274 = arith.subf %264, %273 : vector<8x128xf32>
    %275 = arith.mulf %274, %274 : vector<8x128xf32>
    %cst_104 = arith.constant dense<0.000000e+00> : vector<8xf32>
    %276 = vector.multi_reduction <add>, %275, %cst_104 [1] : vector<8x128xf32> to vector<8xf32>
    %277 = vector.shape_cast %276 : vector<8xf32> to vector<8x1xf32>
    %cst_105 = arith.constant 1.280000e+02 : f32
    %278 = vector.broadcast %cst_105 : f32 to vector<8x1xf32>
    %279 = arith.divf %277, %278 : vector<8x1xf32>
    %280 = vector.broadcast %272 : vector<8x1xf32> to vector<8x128xf32>
    %281 = arith.subf %264, %280 : vector<8x128xf32>
    %cst_106 = arith.constant 9.99999974E-6 : f32
    %282 = vector.broadcast %cst_106 : f32 to vector<8x1xf32>
    %283 = arith.addf %279, %282 : vector<8x1xf32>
    %284 = math.rsqrt %283 : vector<8x1xf32>
    %285 = vector.broadcast %284 : vector<8x1xf32> to vector<8x128xf32>
    %286 = arith.mulf %281, %285 : vector<8x128xf32>
    %287 = vector.broadcast %266 : vector<1x128xf32> to vector<8x128xf32>
    %288 = arith.mulf %286, %287 : vector<8x128xf32>
    %289 = vector.broadcast %268 : vector<1x128xf32> to vector<8x128xf32>
    %290 = arith.addf %288, %289 : vector<8x128xf32>
    %291 = arith.truncf %290 : vector<8x128xf32> to vector<8x128xbf16>
    %c0_107 = arith.constant 0 : index
    %c0_108 = arith.constant 0 : index
    %c0_109 = arith.constant 0 : index
    %292 = vector.load %arg20[%c0_107, %c0_108, %c0_109] : memref<1x128x256xbf16, #tpu.memory_space<vmem>>, vector<1x128x256xbf16>
    %293 = vector.shape_cast %292 : vector<1x128x256xbf16> to vector<128x256xbf16>
    %cst_110 = arith.constant dense<0.000000e+00> : vector<8x256xf32>
    %294 = tpu.matmul %291, %293, %cst_110 {dimension_numbers = #tpu.dot_dimension_numbers<[1], [0], [0], [1], [0, 0, 1, 1], [], []>} : vector<8x128xbf16>, vector<128x256xbf16>, vector<8x256xf32> -> vector<8x256xf32>
    %c0_111 = arith.constant 0 : index
    %c0_112 = arith.constant 0 : index
    %c0_113 = arith.constant 0 : index
    %295 = vector.load %arg21[%c0_111, %c0_112, %c0_113] : memref<1x1x256xf32, #tpu.memory_space<vmem>>, vector<1x1x256xf32>
    %296 = vector.shape_cast %295 : vector<1x1x256xf32> to vector<1x256xf32>
    %297 = vector.broadcast %296 : vector<1x256xf32> to vector<8x256xf32>
    %298 = arith.addf %294, %297 : vector<8x256xf32>
    %cst_114 = arith.constant 0.000000e+00 : f32
    %299 = vector.broadcast %cst_114 : f32 to vector<8x256xf32>
    %300 = arith.maximumf %298, %299 : vector<8x256xf32>
    %301 = arith.truncf %300 : vector<8x256xf32> to vector<8x256xbf16>
    %c0_115 = arith.constant 0 : index
    %c0_116 = arith.constant 0 : index
    %c0_117 = arith.constant 0 : index
    %302 = vector.load %arg22[%c0_115, %c0_116, %c0_117] : memref<1x256x128xbf16, #tpu.memory_space<vmem>>, vector<1x256x128xbf16>
    %303 = vector.shape_cast %302 : vector<1x256x128xbf16> to vector<256x128xbf16>
    %cst_118 = arith.constant dense<0.000000e+00> : vector<8x128xf32>
    %304 = tpu.matmul %301, %303, %cst_118 {dimension_numbers = #tpu.dot_dimension_numbers<[1], [0], [0], [1], [0, 0, 1, 1], [], []>} : vector<8x256xbf16>, vector<256x128xbf16>, vector<8x128xf32> -> vector<8x128xf32>
    %c0_119 = arith.constant 0 : index
    %c0_120 = arith.constant 0 : index
    %c0_121 = arith.constant 0 : index
    %305 = vector.load %arg23[%c0_119, %c0_120, %c0_121] : memref<1x1x128xf32, #tpu.memory_space<vmem>>, vector<1x1x128xf32>
    %306 = vector.shape_cast %305 : vector<1x1x128xf32> to vector<1x128xf32>
    %307 = vector.broadcast %306 : vector<1x128xf32> to vector<8x128xf32>
    %308 = arith.addf %304, %307 : vector<8x128xf32>
    %309 = arith.addf %290, %308 : vector<8x128xf32>
    %c0_122 = arith.constant 0 : index
    %c0_123 = arith.constant 0 : index
    %c0_124 = arith.constant 0 : index
    %310 = vector.load %arg24[%c0_122, %c0_123, %c0_124] : memref<1x1x128xf32, #tpu.memory_space<vmem>>, vector<1x1x128xf32>
    %311 = vector.shape_cast %310 : vector<1x1x128xf32> to vector<1x128xf32>
    %c0_125 = arith.constant 0 : index
    %c0_126 = arith.constant 0 : index
    %c0_127 = arith.constant 0 : index
    %312 = vector.load %arg25[%c0_125, %c0_126, %c0_127] : memref<1x1x128xf32, #tpu.memory_space<vmem>>, vector<1x1x128xf32>
    %313 = vector.shape_cast %312 : vector<1x1x128xf32> to vector<1x128xf32>
    %cst_128 = arith.constant dense<0.000000e+00> : vector<8xf32>
    %314 = vector.multi_reduction <add>, %309, %cst_128 [1] : vector<8x128xf32> to vector<8xf32>
    %315 = vector.shape_cast %314 : vector<8xf32> to vector<8x1xf32>
    %cst_129 = arith.constant 1.280000e+02 : f32
    %316 = vector.broadcast %cst_129 : f32 to vector<8x1xf32>
    %317 = arith.divf %315, %316 : vector<8x1xf32>
    %318 = vector.broadcast %317 : vector<8x1xf32> to vector<8x128xf32>
    %319 = arith.subf %309, %318 : vector<8x128xf32>
    %320 = arith.mulf %319, %319 : vector<8x128xf32>
    %cst_130 = arith.constant dense<0.000000e+00> : vector<8xf32>
    %321 = vector.multi_reduction <add>, %320, %cst_130 [1] : vector<8x128xf32> to vector<8xf32>
    %322 = vector.shape_cast %321 : vector<8xf32> to vector<8x1xf32>
    %cst_131 = arith.constant 1.280000e+02 : f32
    %323 = vector.broadcast %cst_131 : f32 to vector<8x1xf32>
    %324 = arith.divf %322, %323 : vector<8x1xf32>
    %325 = vector.broadcast %317 : vector<8x1xf32> to vector<8x128xf32>
    %326 = arith.subf %309, %325 : vector<8x128xf32>
    %cst_132 = arith.constant 9.99999974E-6 : f32
    %327 = vector.broadcast %cst_132 : f32 to vector<8x1xf32>
    %328 = arith.addf %324, %327 : vector<8x1xf32>
    %329 = math.rsqrt %328 : vector<8x1xf32>
    %330 = vector.broadcast %329 : vector<8x1xf32> to vector<8x128xf32>
    %331 = arith.mulf %326, %330 : vector<8x128xf32>
    %332 = vector.broadcast %311 : vector<1x128xf32> to vector<8x128xf32>
    %333 = arith.mulf %331, %332 : vector<8x128xf32>
    %334 = vector.broadcast %313 : vector<1x128xf32> to vector<8x128xf32>
    %335 = arith.addf %333, %334 : vector<8x128xf32>
    %c0_133 = arith.constant 0 : index
    %c0_134 = arith.constant 0 : index
    %336 = vector.load %arg29[%c0_133, %c0_134] : memref<8x128xf32, #tpu.memory_space<vmem>>, vector<8x128xf32>
    tpu.vector_store %arg29[%c0_133, %c0_134], %335 {strides = array<i32>} : memref<8x128xf32, #tpu.memory_space<vmem>>, vector<8x128xf32>,
    %c1_i32 = arith.constant 1 : i32
    %337 = arith.cmpi eq, %arg1, %c1_i32 : i32
    %338 = arith.extui %337 : i1 to i32
    %c0_i32_135 = arith.constant 0 : i32
    %339 = arith.cmpi ne, %338, %c0_i32_135 : i32
    scf.if %339 {
      %340 = arith.truncf %335 : vector<8x128xf32> to vector<8x128xbf16>
      %c0_136 = arith.constant 0 : index
      %c0_137 = arith.constant 0 : index
      %341 = vector.load %arg26[%c0_136, %c0_137] : memref<128x128xbf16, #tpu.memory_space<vmem>>, vector<128x128xbf16>
      %cst_138 = arith.constant dense<0.000000e+00> : vector<8x128xf32>
      %342 = tpu.matmul %340, %341, %cst_138 {dimension_numbers = #tpu.dot_dimension_numbers<[1], [0], [0], [1], [0, 0, 1, 1], [], []>} : vector<8x128xbf16>, vector<128x128xbf16>, vector<8x128xf32> -> vector<8x128xf32>
      %c0_139 = arith.constant 0 : index
      %c0_140 = arith.constant 0 : index
      %343 = vector.load %arg27[%c0_139, %c0_140] : memref<1x128xf32, #tpu.memory_space<vmem>>, vector<1x128xf32>
      %344 = vector.broadcast %343 : vector<1x128xf32> to vector<8x128xf32>
      %345 = arith.addf %342, %344 : vector<8x128xf32>
      %c0_141 = arith.constant 0 : index
      %c0_142 = arith.constant 0 : index
      %c0_143 = arith.constant 0 : index
      %346 = vector.load %arg28[%c0_141, %c0_142, %c0_143] : memref<1x8x128xf32, #tpu.memory_space<vmem>>, vector<1x8x128xf32>
      %347 = vector.shape_cast %346 : vector<1x8x128xf32> to vector<8x128xf32>
      %348 = vector.shape_cast %345 : vector<8x128xf32> to vector<1x8x128xf32>
      tpu.vector_store %arg28[%c0_141, %c0_142, %c0_143], %348 {strides = array<i32>} : memref<1x8x128xf32, #tpu.memory_space<vmem>>, vector<1x8x128xf32>,
    } else {
    }
    return
  }
  func.func @transform_0(%arg0: i32, %arg1: i32) -> (i32, i32, i32) {
    %c0_i32 = arith.constant 0 : i32
    %c0_i32_0 = arith.constant 0 : i32
    %c0_i32_1 = arith.constant 0 : i32
    return %arg0, %c0_i32, %c0_i32_0 : i32, i32, i32
  }
  func.func @transform_1(%arg0: i32, %arg1: i32) -> (i32, i32, i32) {
    %c0_i32 = arith.constant 0 : i32
    %c0_i32_0 = arith.constant 0 : i32
    %c0_i32_1 = arith.constant 0 : i32
    return %arg0, %c0_i32, %c0_i32_0 : i32, i32, i32
  }
  func.func @transform_2(%arg0: i32, %arg1: i32) -> (i32, i32, i32) {
    %c0_i32 = arith.constant 0 : i32
    %c0_i32_0 = arith.constant 0 : i32
    %c0_i32_1 = arith.constant 0 : i32
    return %arg0, %c0_i32, %c0_i32_0 : i32, i32, i32
  }
  func.func @transform_3(%arg0: i32, %arg1: i32) -> (i32, i32, i32) {
    %c0_i32 = arith.constant 0 : i32
    %c0_i32_0 = arith.constant 0 : i32
    %c0_i32_1 = arith.constant 0 : i32
    return %arg0, %c0_i32, %c0_i32_0 : i32, i32, i32
  }
  func.func @transform_4(%arg0: i32, %arg1: i32) -> (i32, i32, i32) {
    %c0_i32 = arith.constant 0 : i32
    %c0_i32_0 = arith.constant 0 : i32
    %c0_i32_1 = arith.constant 0 : i32
    return %arg1, %c0_i32, %c0_i32_0 : i32, i32, i32
  }
  func.func @transform_5(%arg0: i32, %arg1: i32) -> (i32, i32, i32) {
    %c0_i32 = arith.constant 0 : i32
    %c0_i32_0 = arith.constant 0 : i32
    %c0_i32_1 = arith.constant 0 : i32
    return %arg1, %c0_i32, %c0_i32_0 : i32, i32, i32
  }
  func.func @transform_6(%arg0: i32, %arg1: i32) -> (i32, i32, i32) {
    %c0_i32 = arith.constant 0 : i32
    %c0_i32_0 = arith.constant 0 : i32
    %c0_i32_1 = arith.constant 0 : i32
    return %arg1, %c0_i32, %c0_i32_0 : i32, i32, i32
  }
  func.func @transform_7(%arg0: i32, %arg1: i32) -> (i32, i32, i32) {
    %c0_i32 = arith.constant 0 : i32
    %c0_i32_0 = arith.constant 0 : i32
    %c0_i32_1 = arith.constant 0 : i32
    return %arg1, %c0_i32, %c0_i32_0 : i32, i32, i32
  }
  func.func @transform_8(%arg0: i32, %arg1: i32) -> (i32, i32, i32) {
    %c0_i32 = arith.constant 0 : i32
    %c0_i32_0 = arith.constant 0 : i32
    %c0_i32_1 = arith.constant 0 : i32
    return %arg1, %c0_i32, %c0_i32_0 : i32, i32, i32
  }
  func.func @transform_9(%arg0: i32, %arg1: i32) -> (i32, i32, i32) {
    %c0_i32 = arith.constant 0 : i32
    %c0_i32_0 = arith.constant 0 : i32
    %c0_i32_1 = arith.constant 0 : i32
    return %arg1, %c0_i32, %c0_i32_0 : i32, i32, i32
  }
  func.func @transform_10(%arg0: i32, %arg1: i32) -> (i32, i32, i32) {
    %c0_i32 = arith.constant 0 : i32
    %c0_i32_0 = arith.constant 0 : i32
    %c0_i32_1 = arith.constant 0 : i32
    return %arg1, %c0_i32, %c0_i32_0 : i32, i32, i32
  }
  func.func @transform_11(%arg0: i32, %arg1: i32) -> (i32, i32, i32) {
    %c0_i32 = arith.constant 0 : i32
    %c0_i32_0 = arith.constant 0 : i32
    %c0_i32_1 = arith.constant 0 : i32
    return %arg1, %c0_i32, %c0_i32_0 : i32, i32, i32
  }
  func.func @transform_12(%arg0: i32, %arg1: i32) -> (i32, i32, i32) {
    %c0_i32 = arith.constant 0 : i32
    %c0_i32_0 = arith.constant 0 : i32
    %c0_i32_1 = arith.constant 0 : i32
    return %arg1, %c0_i32, %c0_i32_0 : i32, i32, i32
  }
  func.func @transform_13(%arg0: i32, %arg1: i32) -> (i32, i32, i32) {
    %c0_i32 = arith.constant 0 : i32
    %c0_i32_0 = arith.constant 0 : i32
    %c0_i32_1 = arith.constant 0 : i32
    return %arg1, %c0_i32, %c0_i32_0 : i32, i32, i32
  }
  func.func @transform_14(%arg0: i32, %arg1: i32) -> (i32, i32, i32) {
    %c0_i32 = arith.constant 0 : i32
    %c0_i32_0 = arith.constant 0 : i32
    %c0_i32_1 = arith.constant 0 : i32
    return %arg1, %c0_i32, %c0_i32_0 : i32, i32, i32
  }
  func.func @transform_15(%arg0: i32, %arg1: i32) -> (i32, i32, i32) {
    %c0_i32 = arith.constant 0 : i32
    %c0_i32_0 = arith.constant 0 : i32
    %c0_i32_1 = arith.constant 0 : i32
    return %arg1, %c0_i32, %c0_i32_0 : i32, i32, i32
  }
  func.func @transform_16(%arg0: i32, %arg1: i32) -> (i32, i32, i32) {
    %c0_i32 = arith.constant 0 : i32
    %c0_i32_0 = arith.constant 0 : i32
    %c0_i32_1 = arith.constant 0 : i32
    return %arg1, %c0_i32, %c0_i32_0 : i32, i32, i32
  }
  func.func @transform_17(%arg0: i32, %arg1: i32) -> (i32, i32, i32) {
    %c0_i32 = arith.constant 0 : i32
    %c0_i32_0 = arith.constant 0 : i32
    %c0_i32_1 = arith.constant 0 : i32
    return %arg1, %c0_i32, %c0_i32_0 : i32, i32, i32
  }
  func.func @transform_18(%arg0: i32, %arg1: i32) -> (i32, i32, i32) {
    %c0_i32 = arith.constant 0 : i32
    %c0_i32_0 = arith.constant 0 : i32
    %c0_i32_1 = arith.constant 0 : i32
    return %arg1, %c0_i32, %c0_i32_0 : i32, i32, i32
  }
  func.func @transform_19(%arg0: i32, %arg1: i32) -> (i32, i32, i32) {
    %c0_i32 = arith.constant 0 : i32
    %c0_i32_0 = arith.constant 0 : i32
    %c0_i32_1 = arith.constant 0 : i32
    return %arg1, %c0_i32, %c0_i32_0 : i32, i32, i32
  }
  func.func @transform_20(%arg0: i32, %arg1: i32) -> (i32, i32, i32) {
    %c0_i32 = arith.constant 0 : i32
    %c0_i32_0 = arith.constant 0 : i32
    %c0_i32_1 = arith.constant 0 : i32
    return %arg1, %c0_i32, %c0_i32_0 : i32, i32, i32
  }
  func.func @transform_21(%arg0: i32, %arg1: i32) -> (i32, i32, i32) {
    %c0_i32 = arith.constant 0 : i32
    %c0_i32_0 = arith.constant 0 : i32
    %c0_i32_1 = arith.constant 0 : i32
    return %arg1, %c0_i32, %c0_i32_0 : i32, i32, i32
  }
  func.func @transform_22(%arg0: i32, %arg1: i32) -> (i32, i32, i32) {
    %c0_i32 = arith.constant 0 : i32
    %c0_i32_0 = arith.constant 0 : i32
    %c0_i32_1 = arith.constant 0 : i32
    return %arg1, %c0_i32, %c0_i32_0 : i32, i32, i32
  }
  func.func @transform_23(%arg0: i32, %arg1: i32) -> (i32, i32, i32) {
    %c0_i32 = arith.constant 0 : i32
    %c0_i32_0 = arith.constant 0 : i32
    %c0_i32_1 = arith.constant 0 : i32
    return %arg1, %c0_i32, %c0_i32_0 : i32, i32, i32
  }
  func.func @transform_24(%arg0: i32, %arg1: i32) -> (i32, i32) {
    %c0_i32 = arith.constant 0 : i32
    %c0_i32_0 = arith.constant 0 : i32
    %c0_i32_1 = arith.constant 0 : i32
    return %c0_i32, %c0_i32_0 : i32, i32
  }
  func.func @transform_25(%arg0: i32, %arg1: i32) -> (i32, i32) {
    %c0_i32 = arith.constant 0 : i32
    %c0_i32_0 = arith.constant 0 : i32
    %c0_i32_1 = arith.constant 0 : i32
    return %c0_i32, %c0_i32_0 : i32, i32
  }
  func.func @transform_26(%arg0: i32, %arg1: i32) -> (i32, i32, i32) {
    %c0_i32 = arith.constant 0 : i32
    %c0_i32_0 = arith.constant 0 : i32
    %c0_i32_1 = arith.constant 0 : i32
    return %arg0, %c0_i32, %c0_i32_0 : i32, i32, i32
  }
}

</mosaic_0001>

<llo_original>
// kernel: _lambda_.2
$region0: #{_lambda_.2}
  #allocation0 [shape = 'u32[]', space=smem, size = 0x4, offset = 0x4, fixed_abs, tag = 'smem constant byte address 0x4 - core index']
  #allocation1 [shape = 'u32[72,128]{1,0:T(1,128)}', space=vmem, size = 0x9000, scoped, tag = 'internal scratch']
  #allocation2 [shape = 'f32[8,128]{1,0:T(8,128)}', space=vmem, size = 0x1000, scoped, tag = 'scratch operand']
  %s0 = inlined_call_operand.vmem [shape: f32[2,8,128], index: 0, kind: input, shape index: {}]
  %s1 = inlined_call_operand.vmem [shape: f32[2,1,8], index: 1, kind: input, shape index: {}]
  %s2 = inlined_call_operand.hbm [shape: bf16[2,128,384], index: 2, kind: input, shape index: {}]
  %s3 = inlined_call_operand.vmem [shape: f32[2,1,384], index: 3, kind: input, shape index: {}]
  %s4 = inlined_call_operand.hbm [shape: bf16[2,128,128], index: 4, kind: input, shape index: {}]
  %s5 = inlined_call_operand.vmem [shape: f32[2,1,128], index: 5, kind: input, shape index: {}, may-alias: {5,7,11,13}]
  %s6 = inlined_call_operand.vmem [shape: f32[2,1,128], index: 6, kind: input, shape index: {}, may-alias: {6,12}]
  %s7 = inlined_call_operand.vmem [shape: f32[2,1,128], index: 7, kind: input, shape index: {}, may-alias: {5,7,11,13}]
  %s8 = inlined_call_operand.hbm [shape: bf16[2,128,256], index: 8, kind: input, shape index: {}]
  %s9 = inlined_call_operand.vmem [shape: f32[2,1,256], index: 9, kind: input, shape index: {}]
  %s10 = inlined_call_operand.hbm [shape: bf16[2,256,128], index: 10, kind: input, shape index: {}]
  %s11 = inlined_call_operand.vmem [shape: f32[2,1,128], index: 11, kind: input, shape index: {}, may-alias: {5,7,11,13}]
  %s12 = inlined_call_operand.vmem [shape: f32[2,1,128], index: 12, kind: input, shape index: {}, may-alias: {6,12}]
  %s13 = inlined_call_operand.vmem [shape: f32[2,1,128], index: 13, kind: input, shape index: {}, may-alias: {5,7,11,13}]
  %s14 = inlined_call_operand.vmem [shape: f32[2,8,128], index: 14, kind: output, shape index: {}]
  %s15 = sld [smem:[#allocation0]]
  $region113: #{_lambda_.2} parent=0
    _
  %s17 = ssub.s32 1, %s15
  %s18 = scalar_select 0, %s17, %s15
  $region1: #{_lambda_.2} parent=0
    #allocation3 [shape = 'u8[196608]{0}', space=vmem, size = 0x30000, scoped, tag = 'input window, operand 2']
    #allocation4 [shape = 's32[2]{0}', space=sflag, size = 0x8, scoped, tag = 'scoped memory for _lambda_.2']
    #allocation5 [shape = 'u8[65536]{0}', space=vmem, size = 0x10000, scoped, tag = 'input window, operand 4']
    #allocation6 [shape = 's32[2]{0}', space=sflag, size = 0x8, scoped, tag = 'scoped memory for _lambda_.2']
    #allocation7 [shape = 'u8[131072]{0}', space=vmem, size = 0x20000, scoped, tag = 'input window, operand 8']
    #allocation8 [shape = 'u8[131072]{0}', space=vmem, size = 0x20000, scoped, tag = 'input window, operand 10']
    #allocation9 [shape = 's32[2]{0}', space=sflag, size = 0x8, scoped, tag = 'scoped memory for _lambda_.2']
    %19 = vsyncpa [#allocation4], 0
    %s20 = scalar_lea.sflag [#allocation4], 1
    %21 = vsyncpa %s20, 0
    %22 = vsyncpa [#allocation6], 0
    %s23 = scalar_lea.sflag [#allocation6], 1
    %24 = vsyncpa %s23, 0
    %25 = vsyncpa [#allocation9], 0
    %s26 = scalar_lea.sflag [#allocation9], 1
    %27 = vsyncpa %s26, 0
    loop: start=0, step=1, limit=6
    $region2: #{_lambda_.2} parent=1 // loop_pre_header
      _
    $region3: #{_lambda_.2} parent=1 // loop_header
      %s29 = sphi 0, %s33
      %p30 = scmp.ge.s32.totalorder %s29, 6
      %s36 = sphi 0, %s48
      %s37 = sphi 0, %s44
      %s38 = sphi 0, %s36
      %s39 = sphi 0, %s37
      %s40 = sphi 0, %s38
      %s41 = sphi 0, %s39
      %s51 = sphi 0, %s53
      %s54 = sphi 0, %s51
      %s55 = sphi 0, %s54
      %s71 = sphi 0, %s55
      %s77 = sphi 0, %s79
      %s80 = sphi 0, %s77
      %s81 = sphi 0, %s80
      %s97 = sphi 0, %s81
      %s103 = sphi 0, %s105
      %s106 = sphi 0, %s103
      %s107 = sphi 0, %s106
      %s123 = sphi 0, %s107
      %s129 = sphi 0, %s131
      %s132 = sphi 0, %s129
      %s133 = sphi 0, %s132
      %s149 = sphi 0, %s133
      %s155 = sphi 0, %s157
      %s158 = sphi 0, %s155
      %s159 = sphi 0, %s158
      %s175 = sphi 0, %s159
      %s181 = sphi 0, %s183
      %s184 = sphi 0, %s181
      %s185 = sphi 0, %s184
      %s201 = sphi 0, %s185
      %s207 = sphi 0, %s209
      %s210 = sphi 0, %s207
      %s211 = sphi 0, %s210
      %s227 = sphi 0, %s211
      %s233 = sphi 0, %s235
      %s236 = sphi 0, %s233
      %s237 = sphi 0, %s236
      %s253 = sphi 0, %s237
      %s259 = sphi 0, %s261
      %s262 = sphi 0, %s259
      %s263 = sphi 0, %s262
      %s279 = sphi 0, %s263
      %s285 = sphi 0, %s287
      %s288 = sphi 0, %s285
      %s289 = sphi 0, %s288
      %s305 = sphi 0, %s289
      %s311 = sphi 0, %s313
      %s314 = sphi 0, %s311
      %s315 = sphi 0, %s314
      %s331 = sphi 0, %s315
      %s337 = sphi 0, %s339
      %s340 = sphi 0, %s337
      %s341 = sphi 0, %s340
      %s357 = sphi 0, %s341
      %s363 = sphi 0, %s365
      %s366 = sphi 0, %s363
      %s367 = sphi 0, %s366
      %s383 = sphi 0, %s367
      %s389 = sphi 0, %s391
      %s392 = sphi 0, %s389
      %s393 = sphi 0, %s392
      %s409 = sphi 0, %s393
      %s415 = sphi 0, %s417
      %s418 = sphi 0, %s415
      %s419 = sphi 0, %s418
      %s435 = sphi 0, %s419
    $region4: #{_lambda_.2} parent=1 // loop_header_branch
      %32 = sbr.rel (%p30) target = $region8
    $region5: #{_lambda_.2} parent=1 // loop_body
      %s34 = ssub.s32 %s29, 1
      %s35 = ssub.s32 %s29, 2
      %s42 = sadd.s32 1, %s37
      %p43 = scmp.ge.s32.totalorder %s42, 2
      %s44 = scalar_select %p43, 0, %s42
      %s45 = sadd.s32 1, %s36
      %s46 = scalar_select %p43, %s45, %s36
      %p47 = scmp.ge.s32.totalorder %s46, 2
      %s48 = scalar_select %p47, 0, %s46
      %s49 = ssub.s32 %s36, %s48
      %p50 = scmp.eq.s32.totalorder %s49, 0
      %s52 = sadd.s32 %s51, 1
      %s53 = scalar_select %p50, %s51, %s52
      %p56 = pneg %p50
      %p57 = scmp.eq.s32.totalorder %s29, 3
      %p58 = por %p56, %p57
      %p59 = scmp.ne.s32.totalorder %s51, %s54
      %p60 = scmp.eq.s32.totalorder %s29, 0
      %p61 = por %p59, %p60
      %p62 = scmp.ne.s32.totalorder %s51, %s54
      %p63 = scmp.eq.s32.totalorder %s34, 3
      %p64 = por %p62, %p63
      %p65 = scmp.ne.s32.totalorder %s54, %s55
      %p66 = scmp.eq.s32.totalorder %s34, 0
      %p67 = por %p65, %p66
      %p68 = scmp.ne.s32.totalorder %s54, %s55
      %p69 = scmp.eq.s32.totalorder %s35, 3
      %p70 = por %p68, %p69
      %p72 = scmp.ne.s32.totalorder %s55, %s71
      %p73 = scmp.eq.s32.totalorder %s35, 0
      %p74 = por %p72, %p73
      %s75 = ssub.s32 %s36, %s48
      %p76 = scmp.eq.s32.totalorder %s75, 0
      %s78 = sadd.s32 %s77, 1
      %s79 = scalar_select %p76, %s77, %s78
      %p82 = pneg %p76
      %p83 = scmp.eq.s32.totalorder %s29, 3
      %p84 = por %p82, %p83
      %p85 = scmp.ne.s32.totalorder %s77, %s80
      %p86 = scmp.eq.s32.totalorder %s29, 0
      %p87 = por %p85, %p86
      %p88 = scmp.ne.s32.totalorder %s77, %s80
      %p89 = scmp.eq.s32.totalorder %s34, 3
      %p90 = por %p88, %p89
      %p91 = scmp.ne.s32.totalorder %s80, %s81
      %p92 = scmp.eq.s32.totalorder %s34, 0
      %p93 = por %p91, %p92
      %p94 = scmp.ne.s32.totalorder %s80, %s81
      %p95 = scmp.eq.s32.totalorder %s35, 3
      %p96 = por %p94, %p95
      %p98 = scmp.ne.s32.totalorder %s81, %s97
      %p99 = scmp.eq.s32.totalorder %s35, 0
      %p100 = por %p98, %p99
      %s101 = ssub.s32 %s37, %s44
      %p102 = scmp.eq.s32.totalorder %s101, 0
      %s104 = sadd.s32 %s103, 1
      %s105 = scalar_select %p102, %s103, %s104
      %p108 = pneg %p102
      %p109 = scmp.eq.s32.totalorder %s29, 3
      %p110 = por %p108, %p109
      %p111 = scmp.ne.s32.totalorder %s103, %s106
      %p112 = scmp.eq.s32.totalorder %s29, 0
      %p113 = por %p111, %p112
      %p114 = scmp.ne.s32.totalorder %s103, %s106
      %p115 = scmp.eq.s32.totalorder %s34, 3
      %p116 = por %p114, %p115
      %p117 = scmp.ne.s32.totalorder %s106, %s107
      %p118 = scmp.eq.s32.totalorder %s34, 0
      %p119 = por %p117, %p118
      %p120 = scmp.ne.s32.totalorder %s106, %s107
      %p121 = scmp.eq.s32.totalorder %s35, 3
      %p122 = por %p120, %p121
      %p124 = scmp.ne.s32.totalorder %s107, %s123
      %p125 = scmp.eq.s32.totalorder %s35, 0
      %p126 = por %p124, %p125
      %s127 = ssub.s32 %s37, %s44
      %p128 = scmp.eq.s32.totalorder %s127, 0
      %s130 = sadd.s32 %s129, 1
      %s131 = scalar_select %p128, %s129, %s130
      %p134 = pneg %p128
      %p135 = scmp.eq.s32.totalorder %s29, 3
      %p136 = por %p134, %p135
      %p137 = scmp.ne.s32.totalorder %s129, %s132
      %p138 = scmp.eq.s32.totalorder %s29, 0
      %p139 = por %p137, %p138
      %p140 = scmp.ne.s32.totalorder %s129, %s132
      %p141 = scmp.eq.s32.totalorder %s34, 3
      %p142 = por %p140, %p141
      %p143 = scmp.ne.s32.totalorder %s132, %s133
      %p144 = scmp.eq.s32.totalorder %s34, 0
      %p145 = por %p143, %p144
      %p146 = scmp.ne.s32.totalorder %s132, %s133
      %p147 = scmp.eq.s32.totalorder %s35, 3
      %p148 = por %p146, %p147
      %p150 = scmp.ne.s32.totalorder %s133, %s149
      %p151 = scmp.eq.s32.totalorder %s35, 0
      %p152 = por %p150, %p151
      %s153 = ssub.s32 %s37, %s44
      %p154 = scmp.eq.s32.totalorder %s153, 0
      %s156 = sadd.s32 %s155, 1
      %s157 = scalar_select %p154, %s155, %s156
      %p160 = pneg %p154
      %p161 = scmp.eq.s32.totalorder %s29, 3
      %p162 = por %p160, %p161
      %p163 = scmp.ne.s32.totalorder %s155, %s158
      %p164 = scmp.eq.s32.totalorder %s29, 0
      %p165 = por %p163, %p164
      %p166 = scmp.ne.s32.totalorder %s155, %s158
      %p167 = scmp.eq.s32.totalorder %s34, 3
      %p168 = por %p166, %p167
      %p169 = scmp.ne.s32.totalorder %s158, %s159
      %p170 = scmp.eq.s32.totalorder %s34, 0
      %p171 = por %p169, %p170
      %p172 = scmp.ne.s32.totalorder %s158, %s159
      %p173 = scmp.eq.s32.totalorder %s35, 3
      %p174 = por %p172, %p173
      %p176 = scmp.ne.s32.totalorder %s159, %s175
      %p177 = scmp.eq.s32.totalorder %s35, 0
      %p178 = por %p176, %p177
      %s179 = ssub.s32 %s37, %s44
      %p180 = scmp.eq.s32.totalorder %s179, 0
      %s182 = sadd.s32 %s181, 1
      %s183 = scalar_select %p180, %s181, %s182
      %p186 = pneg %p180
      %p187 = scmp.eq.s32.totalorder %s29, 3
      %p188 = por %p186, %p187
      %p189 = scmp.ne.s32.totalorder %s181, %s184
      %p190 = scmp.eq.s32.totalorder %s29, 0
      %p191 = por %p189, %p190
      %p192 = scmp.ne.s32.totalorder %s181, %s184
      %p193 = scmp.eq.s32.totalorder %s34, 3
      %p194 = por %p192, %p193
      %p195 = scmp.ne.s32.totalorder %s184, %s185
      %p196 = scmp.eq.s32.totalorder %s34, 0
      %p197 = por %p195, %p196
      %p198 = scmp.ne.s32.totalorder %s184, %s185
      %p199 = scmp.eq.s32.totalorder %s35, 3
      %p200 = por %p198, %p199
      %p202 = scmp.ne.s32.totalorder %s185, %s201
      %p203 = scmp.eq.s32.totalorder %s35, 0
      %p204 = por %p202, %p203
      %s205 = ssub.s32 %s37, %s44
      %p206 = scmp.eq.s32.totalorder %s205, 0
      %s208 = sadd.s32 %s207, 1
      %s209 = scalar_select %p206, %s207, %s208
      %p212 = pneg %p206
      %p213 = scmp.eq.s32.totalorder %s29, 3
      %p214 = por %p212, %p213
      %p215 = scmp.ne.s32.totalorder %s207, %s210
      %p216 = scmp.eq.s32.totalorder %s29, 0
      %p217 = por %p215, %p216
      %p218 = scmp.ne.s32.totalorder %s207, %s210
      %p219 = scmp.eq.s32.totalorder %s34, 3
      %p220 = por %p218, %p219
      %p221 = scmp.ne.s32.totalorder %s210, %s211
      %p222 = scmp.eq.s32.totalorder %s34, 0
      %p223 = por %p221, %p222
      %p224 = scmp.ne.s32.totalorder %s210, %s211
      %p225 = scmp.eq.s32.totalorder %s35, 3
      %p226 = por %p224, %p225
      %p228 = scmp.ne.s32.totalorder %s211, %s227
      %p229 = scmp.eq.s32.totalorder %s35, 0
      %p230 = por %p228, %p229
      %s231 = ssub.s32 %s37, %s44
      %p232 = scmp.eq.s32.totalorder %s231, 0
      %s234 = sadd.s32 %s233, 1
      %s235 = scalar_select %p232, %s233, %s234
      %p238 = pneg %p232
      %p239 = scmp.eq.s32.totalorder %s29, 3
      %p240 = por %p238, %p239
      %p241 = scmp.ne.s32.totalorder %s233, %s236
      %p242 = scmp.eq.s32.totalorder %s29, 0
      %p243 = por %p241, %p242
      %p244 = scmp.ne.s32.totalorder %s233, %s236
      %p245 = scmp.eq.s32.totalorder %s34, 3
      %p246 = por %p244, %p245
      %p247 = scmp.ne.s32.totalorder %s236, %s237
      %p248 = scmp.eq.s32.totalorder %s34, 0
      %p249 = por %p247, %p248
      %p250 = scmp.ne.s32.totalorder %s236, %s237
      %p251 = scmp.eq.s32.totalorder %s35, 3
      %p252 = por %p250, %p251
      %p254 = scmp.ne.s32.totalorder %s237, %s253
      %p255 = scmp.eq.s32.totalorder %s35, 0
      %p256 = por %p254, %p255
      %s257 = ssub.s32 %s37, %s44
      %p258 = scmp.eq.s32.totalorder %s257, 0
      %s260 = sadd.s32 %s259, 1
      %s261 = scalar_select %p258, %s259, %s260
      %p264 = pneg %p258
      %p265 = scmp.eq.s32.totalorder %s29, 3
      %p266 = por %p264, %p265
      %p267 = scmp.ne.s32.totalorder %s259, %s262
      %p268 = scmp.eq.s32.totalorder %s29, 0
      %p269 = por %p267, %p268
      %p270 = scmp.ne.s32.totalorder %s259, %s262
      %p271 = scmp.eq.s32.totalorder %s34, 3
      %p272 = por %p270, %p271
      %p273 = scmp.ne.s32.totalorder %s262, %s263
      %p274 = scmp.eq.s32.totalorder %s34, 0
      %p275 = por %p273, %p274
      %p276 = scmp.ne.s32.totalorder %s262, %s263
      %p277 = scmp.eq.s32.totalorder %s35, 3
      %p278 = por %p276, %p277
      %p280 = scmp.ne.s32.totalorder %s263, %s279
      %p281 = scmp.eq.s32.totalorder %s35, 0
      %p282 = por %p280, %p281
      %s283 = ssub.s32 %s37, %s44
      %p284 = scmp.eq.s32.totalorder %s283, 0
      %s286 = sadd.s32 %s285, 1
      %s287 = scalar_select %p284, %s285, %s286
      %p290 = pneg %p284
      %p291 = scmp.eq.s32.totalorder %s29, 3
      %p292 = por %p290, %p291
      %p293 = scmp.ne.s32.totalorder %s285, %s288
      %p294 = scmp.eq.s32.totalorder %s29, 0
      %p295 = por %p293, %p294
      %p296 = scmp.ne.s32.totalorder %s285, %s288
      %p297 = scmp.eq.s32.totalorder %s34, 3
      %p298 = por %p296, %p297
      %p299 = scmp.ne.s32.totalorder %s288, %s289
      %p300 = scmp.eq.s32.totalorder %s34, 0
      %p301 = por %p299, %p300
      %p302 = scmp.ne.s32.totalorder %s288, %s289
      %p303 = scmp.eq.s32.totalorder %s35, 3
      %p304 = por %p302, %p303
      %p306 = scmp.ne.s32.totalorder %s289, %s305
      %p307 = scmp.eq.s32.totalorder %s35, 0
      %p308 = por %p306, %p307
      %s309 = ssub.s32 %s37, %s44
      %p310 = scmp.eq.s32.totalorder %s309, 0
      %s312 = sadd.s32 %s311, 1
      %s313 = scalar_select %p310, %s311, %s312
      %p316 = pneg %p310
      %p317 = scmp.eq.s32.totalorder %s29, 3
      %p318 = por %p316, %p317
      %p319 = scmp.ne.s32.totalorder %s311, %s314
      %p320 = scmp.eq.s32.totalorder %s29, 0
      %p321 = por %p319, %p320
      %p322 = scmp.ne.s32.totalorder %s311, %s314
      %p323 = scmp.eq.s32.totalorder %s34, 3
      %p324 = por %p322, %p323
      %p325 = scmp.ne.s32.totalorder %s314, %s315
      %p326 = scmp.eq.s32.totalorder %s34, 0
      %p327 = por %p325, %p326
      %p328 = scmp.ne.s32.totalorder %s314, %s315
      %p329 = scmp.eq.s32.totalorder %s35, 3
      %p330 = por %p328, %p329
      %p332 = scmp.ne.s32.totalorder %s315, %s331
      %p333 = scmp.eq.s32.totalorder %s35, 0
      %p334 = por %p332, %p333
      %s335 = ssub.s32 %s37, %s44
      %p336 = scmp.eq.s32.totalorder %s335, 0
      %s338 = sadd.s32 %s337, 1
      %s339 = scalar_select %p336, %s337, %s338
      %p342 = pneg %p336
      %p343 = scmp.eq.s32.totalorder %s29, 3
      %p344 = por %p342, %p343
      %p345 = scmp.ne.s32.totalorder %s337, %s340
      %p346 = scmp.eq.s32.totalorder %s29, 0
      %p347 = por %p345, %p346
      %p348 = scmp.ne.s32.totalorder %s337, %s340
      %p349 = scmp.eq.s32.totalorder %s34, 3
      %p350 = por %p348, %p349
      %p351 = scmp.ne.s32.totalorder %s340, %s341
      %p352 = scmp.eq.s32.totalorder %s34, 0
      %p353 = por %p351, %p352
      %p354 = scmp.ne.s32.totalorder %s340, %s341
      %p355 = scmp.eq.s32.totalorder %s35, 3
      %p356 = por %p354, %p355
      %p358 = scmp.ne.s32.totalorder %s341, %s357
      %p359 = scmp.eq.s32.totalorder %s35, 0
      %p360 = por %p358, %p359
      %s361 = ssub.s32 %s37, %s44
      %p362 = scmp.eq.s32.totalorder %s361, 0
      %s364 = sadd.s32 %s363, 1
      %s365 = scalar_select %p362, %s363, %s364
      %p368 = pneg %p362
      %p369 = scmp.eq.s32.totalorder %s29, 3
      %p370 = por %p368, %p369
      %p371 = scmp.ne.s32.totalorder %s363, %s366
      %p372 = scmp.eq.s32.totalorder %s29, 0
      %p373 = por %p371, %p372
      %p374 = scmp.ne.s32.totalorder %s363, %s366
      %p375 = scmp.eq.s32.totalorder %s34, 3
      %p376 = por %p374, %p375
      %p377 = scmp.ne.s32.totalorder %s366, %s367
      %p378 = scmp.eq.s32.totalorder %s34, 0
      %p379 = por %p377, %p378
      %p380 = scmp.ne.s32.totalorder %s366, %s367
      %p381 = scmp.eq.s32.totalorder %s35, 3
      %p382 = por %p380, %p381
      %p384 = scmp.ne.s32.totalorder %s367, %s383
      %p385 = scmp.eq.s32.totalorder %s35, 0
      %p386 = por %p384, %p385
      %s387 = ssub.s32 %s37, %s44
      %p388 = scmp.eq.s32.totalorder %s387, 0
      %s390 = sadd.s32 %s389, 1
      %s391 = scalar_select %p388, %s389, %s390
      %p394 = pneg %p388
      %p395 = scmp.eq.s32.totalorder %s29, 3
      %p396 = por %p394, %p395
      %p397 = scmp.ne.s32.totalorder %s389, %s392
      %p398 = scmp.eq.s32.totalorder %s29, 0
      %p399 = por %p397, %p398
      %p400 = scmp.ne.s32.totalorder %s389, %s392
      %p401 = scmp.eq.s32.totalorder %s34, 3
      %p402 = por %p400, %p401
      %p403 = scmp.ne.s32.totalorder %s392, %s393
      %p404 = scmp.eq.s32.totalorder %s34, 0
      %p405 = por %p403, %p404
      %p406 = scmp.ne.s32.totalorder %s392, %s393
      %p407 = scmp.eq.s32.totalorder %s35, 3
      %p408 = por %p406, %p407
      %p410 = scmp.ne.s32.totalorder %s393, %s409
      %p411 = scmp.eq.s32.totalorder %s35, 0
      %p412 = por %p410, %p411
      %s413 = ssub.s32 %s36, %s48
      %p414 = scmp.eq.s32.totalorder %s413, 0
      %s416 = sadd.s32 %s415, 1
      %s417 = scalar_select %p414, %s415, %s416
      %p420 = pneg %p414
      %p421 = scmp.eq.s32.totalorder %s29, 3
      %p422 = por %p420, %p421
      %p423 = scmp.ne.s32.totalorder %s415, %s418
      %p424 = scmp.eq.s32.totalorder %s29, 0
      %p425 = por %p423, %p424
      %p426 = scmp.ne.s32.totalorder %s415, %s418
      %p427 = scmp.eq.s32.totalorder %s34, 3
      %p428 = por %p426, %p427
      %p429 = scmp.ne.s32.totalorder %s418, %s419
      %p430 = scmp.eq.s32.totalorder %s34, 0
      %p431 = por %p429, %p430
      %p432 = scmp.ne.s32.totalorder %s418, %s419
      %p433 = scmp.eq.s32.totalorder %s35, 3
      %p434 = por %p432, %p433
      %p436 = scmp.ne.s32.totalorder %s419, %s435
      %p437 = scmp.eq.s32.totalorder %s35, 0
      %p438 = por %p436, %p437
      %p439 = scmp.le.s32.totalorder 1, %s29
      %p440 = scmp.lt.s32.totalorder %s29, 5
      %p441 = pnand %p439, %p440
      %p442 = pneg %p441
      // Predicated region
      $region9: #{_lambda_.2} parent=5 // pred_check
        _
      $region10: #{_lambda_.2} parent=5 // pred_check_branch
        %444 = sbr.rel (%p441) target = $region12
      $region11: #{_lambda_.2} parent=5 // pred_region
        %s445 = ssub.s32 %s29, 1
      $region12: #{_lambda_.2} parent=5 // pred_fallthru
        _
      %p446 = scmp.lt.s32.totalorder %s29, 4
      // Predicated region
      $region13: #{_lambda_.2} parent=5 // pred_check
        %p447 = pneg %p446
      $region14: #{_lambda_.2} parent=5 // pred_check_branch
        %449 = sbr.rel (%p447) target = $region16
      $region15: #{_lambda_.2} parent=5 // pred_region
        // Predicated region
        $region17: #{_lambda_.2} parent=15 // pred_check
          %p450 = pneg %p61
        $region18: #{_lambda_.2} parent=15 // pred_check_branch
          %452 = sbr.rel (%p450) target = $region20
        $region19: #{_lambda_.2} parent=15 // pred_region
          %p453 = scmp.lt.s32.totalorder %s36, 1
          %s454 = scalar_select %p453, %s36, 1
          %s455 = smul.addr %s454, 8
          %s456 = scalar_lea.vmem %s0, %s455
        $region20: #{_lambda_.2} parent=15 // pred_fallthru
          _
        // Predicated region
        $region21: #{_lambda_.2} parent=15 // pred_check
          %p457 = pneg %p87
        $region22: #{_lambda_.2} parent=15 // pred_check_branch
          %459 = sbr.rel (%p457) target = $region24
        $region23: #{_lambda_.2} parent=15 // pred_region
          %p460 = scmp.lt.s32.totalorder %s36, 1
          %s461 = scalar_select %p460, %s36, 1
          %s462 = scalar_lea.vmem %s1, %s461
        $region24: #{_lambda_.2} parent=15 // pred_fallthru
          _
        // Predicated region
        $region25: #{_lambda_.2} parent=15 // pred_check
          %p463 = pneg %p113
        $region26: #{_lambda_.2} parent=15 // pred_check_branch
          %465 = sbr.rel (%p463) target = $region28
        $region27: #{_lambda_.2} parent=15 // pred_region
          %s466 = sand.u32 %s103, 1
          %s467 = scalar_lea.sflag [#allocation4], %s466
          %s468 = sand.u32 %s103, 1
          %s469 = smul.addr %s468, 192
          %s470 = scalar_lea.vmem [#allocation3], %s469
          %472 = vsyncadd %s467, 0
          %s473 = smul.addr %s37, 48
          %s474 = smul.addr %s473, 4
          %s475 = scalar_lea.hbm %s2, %s474
          %s476 = sshll.u32 %s475, 4
          %s477 = int_to_ptr.hbm [resolvable:$true] %s476
          %s478 = sshll.u32 %s470, 4
          %s479 = int_to_ptr.vmem [resolvable:$true] %s478
          %484 = dma.hbm_to_vmem [thread:$0]  %s477, 3072, %s479, %s467, 192, 192, 12
        $region28: #{_lambda_.2} parent=15 // pred_fallthru
          _
        // Predicated region
        $region29: #{_lambda_.2} parent=15 // pred_check
          %p485 = pneg %p139
        $region30: #{_lambda_.2} parent=15 // pred_check_branch
          %487 = sbr.rel (%p485) target = $region32
        $region31: #{_lambda_.2} parent=15 // pred_region
          %p488 = scmp.lt.s32.totalorder %s37, 1
          %s489 = scalar_select %p488, %s37, 1
          %s490 = smul.addr %s489, 3
          %s491 = scalar_lea.vmem %s3, %s490
        $region32: #{_lambda_.2} parent=15 // pred_fallthru
          _
        // Predicated region
        $region33: #{_lambda_.2} parent=15 // pred_check
          %p492 = pneg %p165
        $region34: #{_lambda_.2} parent=15 // pred_check_branch
          %494 = sbr.rel (%p492) target = $region36
        $region35: #{_lambda_.2} parent=15 // pred_region
          %s495 = sand.u32 %s29, 1
          %s496 = scalar_lea.sflag [#allocation6], %s495
          %s497 = sand.u32 %s155, 1
          %s498 = smul.addr %s497, 64
          %s499 = scalar_lea.vmem [#allocation5], %s498
          %501 = vsyncadd %s496, 0
          %s502 = smul.addr %s37, 16
          %s503 = smul.addr %s502, 4
          %s504 = scalar_lea.hbm %s4, %s503
          %s505 = sshll.u32 %s504, 4
          %s506 = int_to_ptr.hbm [resolvable:$true] %s505
          %s507 = sshll.u32 %s499, 4
          %s508 = int_to_ptr.vmem [resolvable:$true] %s507
          %513 = dma.hbm_to_vmem [thread:$0]  %s506, 1024, %s508, %s496, 64, 64, 4
        $region36: #{_lambda_.2} parent=15 // pred_fallthru
          _
        // Predicated region
        $region37: #{_lambda_.2} parent=15 // pred_check
          %p514 = pneg %p191
        $region38: #{_lambda_.2} parent=15 // pred_check_branch
          %516 = sbr.rel (%p514) target = $region40
        $region39: #{_lambda_.2} parent=15 // pred_region
          %p517 = scmp.lt.s32.totalorder %s37, 1
          %s518 = scalar_select %p517, %s37, 1
          %s519 = scalar_lea.vmem %s5, %s518
        $region40: #{_lambda_.2} parent=15 // pred_fallthru
          _
        // Predicated region
        $region41: #{_lambda_.2} parent=15 // pred_check
          %p520 = pneg %p217
        $region42: #{_lambda_.2} parent=15 // pred_check_branch
          %522 = sbr.rel (%p520) target = $region44
        $region43: #{_lambda_.2} parent=15 // pred_region
          %p523 = scmp.lt.s32.totalorder %s37, 1
          %s524 = scalar_select %p523, %s37, 1
          %s525 = scalar_lea.vmem %s6, %s524
        $region44: #{_lambda_.2} parent=15 // pred_fallthru
          _
        // Predicated region
        $region45: #{_lambda_.2} parent=15 // pred_check
          %p526 = pneg %p243
        $region46: #{_lambda_.2} parent=15 // pred_check_branch
          %528 = sbr.rel (%p526) target = $region48
        $region47: #{_lambda_.2} parent=15 // pred_region
          %p529 = scmp.lt.s32.totalorder %s37, 1
          %s530 = scalar_select %p529, %s37, 1
          %s531 = scalar_lea.vmem %s7, %s530
        $region48: #{_lambda_.2} parent=15 // pred_fallthru
          _
        // Predicated region
        $region49: #{_lambda_.2} parent=15 // pred_check
          %p532 = pneg %p269
        $region50: #{_lambda_.2} parent=15 // pred_check_branch
          %534 = sbr.rel (%p532) target = $region52
        $region51: #{_lambda_.2} parent=15 // pred_region
          %s535 = sand.u32 %s29, 1
          %s536 = scalar_lea.sflag [#allocation6], %s535
          %s537 = sand.u32 %s259, 1
          %s538 = smul.addr %s537, 128
          %s539 = scalar_lea.vmem [#allocation7], %s538
          %541 = vsyncadd %s536, 0
          %s542 = smul.addr %s37, 32
          %s543 = smul.addr %s542, 4
          %s544 = scalar_lea.hbm %s8, %s543
          %s545 = sshll.u32 %s544, 4
          %s546 = int_to_ptr.hbm [resolvable:$true] %s545
          %s547 = sshll.u32 %s539, 4
          %s548 = int_to_ptr.vmem [resolvable:$true] %s547
          %553 = dma.hbm_to_vmem [thread:$0]  %s546, 2048, %s548, %s536, 128, 128, 8
        $region52: #{_lambda_.2} parent=15 // pred_fallthru
          _
        // Predicated region
        $region53: #{_lambda_.2} parent=15 // pred_check
          %p554 = pneg %p295
        $region54: #{_lambda_.2} parent=15 // pred_check_branch
          %556 = sbr.rel (%p554) target = $region56
        $region55: #{_lambda_.2} parent=15 // pred_region
          %p557 = scmp.lt.s32.totalorder %s37, 1
          %s558 = scalar_select %p557, %s37, 1
          %s559 = smul.addr %s558, 2
          %s560 = scalar_lea.vmem %s9, %s559
        $region56: #{_lambda_.2} parent=15 // pred_fallthru
          _
        // Predicated region
        $region57: #{_lambda_.2} parent=15 // pred_check
          %p561 = pneg %p321
        $region58: #{_lambda_.2} parent=15 // pred_check_branch
          %563 = sbr.rel (%p561) target = $region60
        $region59: #{_lambda_.2} parent=15 // pred_region
          %s564 = sand.u32 %s311, 1
          %s565 = scalar_lea.sflag [#allocation9], %s564
          %s566 = sand.u32 %s311, 1
          %s567 = smul.addr %s566, 128
          %s568 = scalar_lea.vmem [#allocation8], %s567
          %570 = vsyncadd %s565, 0
          %s571 = smul.addr %s37, 32
          %s572 = smul.addr %s571, 4
          %s573 = scalar_lea.hbm %s10, %s572
          %s574 = sshll.u32 %s573, 4
          %s575 = int_to_ptr.hbm [resolvable:$true] %s574
          %s576 = sshll.u32 %s568, 4
          %s577 = int_to_ptr.vmem [resolvable:$true] %s576
          %582 = dma.hbm_to_vmem [thread:$0]  %s575, 2048, %s577, %s565, 64, 64, 4
        $region60: #{_lambda_.2} parent=15 // pred_fallthru
          _
        // Predicated region
        $region61: #{_lambda_.2} parent=15 // pred_check
          %p583 = pneg %p347
        $region62: #{_lambda_.2} parent=15 // pred_check_branch
          %585 = sbr.rel (%p583) target = $region64
        $region63: #{_lambda_.2} parent=15 // pred_region
          %p586 = scmp.lt.s32.totalorder %s37, 1
          %s587 = scalar_select %p586, %s37, 1
          %s588 = scalar_lea.vmem %s11, %s587
        $region64: #{_lambda_.2} parent=15 // pred_fallthru
          _
        // Predicated region
        $region65: #{_lambda_.2} parent=15 // pred_check
          %p589 = pneg %p373
        $region66: #{_lambda_.2} parent=15 // pred_check_branch
          %591 = sbr.rel (%p589) target = $region68
        $region67: #{_lambda_.2} parent=15 // pred_region
          %p592 = scmp.lt.s32.totalorder %s37, 1
          %s593 = scalar_select %p592, %s37, 1
          %s594 = scalar_lea.vmem %s12, %s593
        $region68: #{_lambda_.2} parent=15 // pred_fallthru
          _
        // Predicated region
        $region69: #{_lambda_.2} parent=15 // pred_check
          %p595 = pneg %p399
        $region70: #{_lambda_.2} parent=15 // pred_check_branch
          %597 = sbr.rel (%p595) target = $region72
        $region71: #{_lambda_.2} parent=15 // pred_region
          %p598 = scmp.lt.s32.totalorder %s37, 1
          %s599 = scalar_select %p598, %s37, 1
          %s600 = scalar_lea.vmem %s13, %s599
        $region72: #{_lambda_.2} parent=15 // pred_fallthru
          _
      $region16: #{_lambda_.2} parent=5 // pred_fallthru
        _
      %p601 = scmp.le.s32.totalorder 1, %s29
      %p602 = scmp.lt.s32.totalorder %s29, 5
      %p603 = pnand %p601, %p602
      %p604 = pneg %p603
      // Predicated region
      $region73: #{_lambda_.2} parent=5 // pred_check
        _
      $region74: #{_lambda_.2} parent=5 // pred_check_branch
        %606 = sbr.rel (%p603) target = $region76
      $region75: #{_lambda_.2} parent=5 // pred_region
        %s607 = ssub.s32 %s29, 1
        %s608 = sand.u32 %s106, 1
        %s609 = scalar_lea.sflag [#allocation4], %s608
        %s610 = sand.u32 %s106, 1
        %s611 = smul.addr %s610, 192
        %s612 = scalar_lea.vmem [#allocation3], %s611
        // Predicated region
        $region77: #{_lambda_.2} parent=75 // pred_check
          %p613 = pneg %p119
        $region78: #{_lambda_.2} parent=75 // pred_check_branch
          %615 = sbr.rel (%p613) target = $region80
        $region79: #{_lambda_.2} parent=75 // pred_region
          %617 = dma.done %s609, 3072
        $region80: #{_lambda_.2} parent=75 // pred_fallthru
          _
        %s618 = sand.u32 %s34, 1
        %s619 = scalar_lea.sflag [#allocation6], %s618
        %s620 = sand.u32 %s158, 1
        %s621 = smul.addr %s620, 64
        %s622 = scalar_lea.vmem [#allocation5], %s621
        // Predicated region
        $region81: #{_lambda_.2} parent=75 // pred_check
          %p623 = pneg %p171
        $region82: #{_lambda_.2} parent=75 // pred_check_branch
          %625 = sbr.rel (%p623) target = $region84
        $region83: #{_lambda_.2} parent=75 // pred_region
          %627 = dma.done %s619, 1024
        $region84: #{_lambda_.2} parent=75 // pred_fallthru
          _
        %s628 = sand.u32 %s34, 1
        %s629 = scalar_lea.sflag [#allocation6], %s628
        %s630 = sand.u32 %s262, 1
        %s631 = smul.addr %s630, 128
        %s632 = scalar_lea.vmem [#allocation7], %s631
        // Predicated region
        $region85: #{_lambda_.2} parent=75 // pred_check
          %p633 = pneg %p275
        $region86: #{_lambda_.2} parent=75 // pred_check_branch
          %635 = sbr.rel (%p633) target = $region88
        $region87: #{_lambda_.2} parent=75 // pred_region
          %637 = dma.done %s629, 2048
        $region88: #{_lambda_.2} parent=75 // pred_fallthru
          _
        %s638 = sand.u32 %s314, 1
        %s639 = scalar_lea.sflag [#allocation9], %s638
        %s640 = sand.u32 %s314, 1
        %s641 = smul.addr %s640, 128
        %s642 = scalar_lea.vmem [#allocation8], %s641
        // Predicated region
        $region89: #{_lambda_.2} parent=75 // pred_check
          %p643 = pneg %p327
        $region90: #{_lambda_.2} parent=75 // pred_check_branch
          %645 = sbr.rel (%p643) target = $region92
        $region91: #{_lambda_.2} parent=75 // pred_region
          %647 = dma.done %s639, 2048
        $region92: #{_lambda_.2} parent=75 // pred_fallthru
          _
        %p648 = scmp.lt.s32.totalorder %s38, 1
        %s649 = scalar_select %p648, %s38, 1
        %s650 = smul.addr %s649, 8
        %s651 = scalar_lea.vmem %s0, %s650
        %p652 = pneg %p67
        %p653 = pneg %p64
        %p654 = scmp.lt.s32.totalorder %s38, 1
        %s655 = scalar_select %p654, %s38, 1
        %s656 = scalar_lea.vmem %s1, %s655
        %p657 = pneg %p93
        %p658 = pneg %p90
        %s659 = sand.u32 %s106, 1
        %s660 = scalar_lea.sflag [#allocation4], %s659
        %s661 = sand.u32 %s106, 1
        %s662 = smul.addr %s661, 192
        %s663 = scalar_lea.vmem [#allocation3], %s662
        %p664 = pneg %p119
        %p665 = pneg %p116
        %p666 = scmp.lt.s32.totalorder %s39, 1
        %s667 = scalar_select %p666, %s39, 1
        %s668 = smul.addr %s667, 3
        %s669 = scalar_lea.vmem %s3, %s668
        %p670 = pneg %p145
        %p671 = pneg %p142
        %s672 = sand.u32 %s34, 1
        %s673 = scalar_lea.sflag [#allocation6], %s672
        %s674 = sand.u32 %s158, 1
        %s675 = smul.addr %s674, 64
        %s676 = scalar_lea.vmem [#allocation5], %s675
        %p677 = pneg %p171
        %p678 = pneg %p168
        %p679 = scmp.lt.s32.totalorder %s39, 1
        %s680 = scalar_select %p679, %s39, 1
        %s681 = scalar_lea.vmem %s5, %s680
        %p682 = pneg %p197
        %p683 = pneg %p194
        %p684 = scmp.lt.s32.totalorder %s39, 1
        %s685 = scalar_select %p684, %s39, 1
        %s686 = scalar_lea.vmem %s6, %s685
        %p687 = pneg %p223
        %p688 = pneg %p220
        %p689 = scmp.lt.s32.totalorder %s39, 1
        %s690 = scalar_select %p689, %s39, 1
        %s691 = scalar_lea.vmem %s7, %s690
        %p692 = pneg %p249
        %p693 = pneg %p246
        %s694 = sand.u32 %s34, 1
        %s695 = scalar_lea.sflag [#allocation6], %s694
        %s696 = sand.u32 %s262, 1
        %s697 = smul.addr %s696, 128
        %s698 = scalar_lea.vmem [#allocation7], %s697
        %p699 = pneg %p275
        %p700 = pneg %p272
        %p701 = scmp.lt.s32.totalorder %s39, 1
        %s702 = scalar_select %p701, %s39, 1
        %s703 = smul.addr %s702, 2
        %s704 = scalar_lea.vmem %s9, %s703
        %p705 = pneg %p301
        %p706 = pneg %p298
        %s707 = sand.u32 %s314, 1
        %s708 = scalar_lea.sflag [#allocation9], %s707
        %s709 = sand.u32 %s314, 1
        %s710 = smul.addr %s709, 128
        %s711 = scalar_lea.vmem [#allocation8], %s710
        %p712 = pneg %p327
        %p713 = pneg %p324
        %p714 = scmp.lt.s32.totalorder %s39, 1
        %s715 = scalar_select %p714, %s39, 1
        %s716 = scalar_lea.vmem %s11, %s715
        %p717 = pneg %p353
        %p718 = pneg %p350
        %p719 = scmp.lt.s32.totalorder %s39, 1
        %s720 = scalar_select %p719, %s39, 1
        %s721 = scalar_lea.vmem %s12, %s720
        %p722 = pneg %p379
        %p723 = pneg %p376
        %p724 = scmp.lt.s32.totalorder %s39, 1
        %s725 = scalar_select %p724, %s39, 1
        %s726 = scalar_lea.vmem %s13, %s725
        %p727 = pneg %p405
        %p728 = pneg %p402
        %p729 = pneg %p431
        %p730 = pneg %p428
        %p731 = scmp.lt.s32.totalorder %s38, 1
        %s732 = scalar_select %p731, %s38, 1
        %s733 = smul.addr %s732, 8
        %s734 = scalar_lea.vmem %s14, %s733
        %p735 = scmp.lt.s32.totalorder %s38, 1
        %s736 = scalar_select %p735, %s38, 1
        %s737 = smul.addr %s736, 8
        %s738 = scalar_lea.vmem %s0, %s737
        %p739 = scmp.lt.s32.totalorder %s38, 1
        %s740 = scalar_select %p739, %s38, 1
        %s741 = scalar_lea.vmem %s1, %s740
        %p742 = scmp.lt.s32.totalorder %s39, 1
        %s743 = scalar_select %p742, %s39, 1
        %s744 = smul.addr %s743, 3
        %s745 = scalar_lea.vmem %s3, %s744
        %p746 = scmp.lt.s32.totalorder %s39, 1
        %s747 = scalar_select %p746, %s39, 1
        %s748 = scalar_lea.vmem %s5, %s747
        %p749 = scmp.lt.s32.totalorder %s39, 1
        %s750 = scalar_select %p749, %s39, 1
        %s751 = scalar_lea.vmem %s6, %s750
        %p752 = scmp.lt.s32.totalorder %s39, 1
        %s753 = scalar_select %p752, %s39, 1
        %s754 = scalar_lea.vmem %s7, %s753
        %p755 = scmp.lt.s32.totalorder %s39, 1
        %s756 = scalar_select %p755, %s39, 1
        %s757 = smul.addr %s756, 2
        %s758 = scalar_lea.vmem %s9, %s757
        %p759 = scmp.lt.s32.totalorder %s39, 1
        %s760 = scalar_select %p759, %s39, 1
        %s761 = scalar_lea.vmem %s11, %s760
        %p762 = scmp.lt.s32.totalorder %s39, 1
        %s763 = scalar_select %p762, %s39, 1
        %s764 = scalar_lea.vmem %s12, %s763
        %p765 = scmp.lt.s32.totalorder %s39, 1
        %s766 = scalar_select %p765, %s39, 1
        %s767 = scalar_lea.vmem %s13, %s766
        %p768 = scmp.lt.s32.totalorder %s38, 1
        %s769 = scalar_select %p768, %s38, 1
        %s770 = smul.addr %s769, 8
        %s771 = scalar_lea.vmem %s14, %s770
        %p773 = scmp.eq.s32.totalorder %s39, 0
        // Predicated region
        $region93: #{_lambda_.2} parent=75 // pred_check
          %p774 = pneg %p773
        $region94: #{_lambda_.2} parent=75 // pred_check_branch
          %776 = sbr.rel (%p774) target = $region96
        $region95: #{_lambda_.2} parent=75 // pred_region
          %v777 = vld [vmem:[%s738] sm:$0xff]
          %778 = vst [vmem:[#allocation2] sm:$0xff] %v777
        $region96: #{_lambda_.2} parent=75 // pred_fallthru
          _
        %v779 = vld [vmem:[#allocation2] sm:$0xff]
        %v780 = vpack.c.bf16 %v779, %v779
        %v781 = vld [vmem:[%s612] sm:$0xff]
        %v782 = vld [vmem:[%s612 + $0x8] sm:$0xf]
        %v783 = vld [vmem:[%s612 + $0xc] sm:$0xff]
        %v784 = vld [vmem:[%s612 + $0x14] sm:$0xf]
        %v785 = vld [vmem:[%s612 + $0x18] sm:$0xff]
        %v786 = vld [vmem:[%s612 + $0x20] sm:$0xf]
        %v787 = vld [vmem:[%s612 + $0x24] sm:$0xff]
        %v788 = vld [vmem:[%s612 + $0x2c] sm:$0xf]
        %v789 = vld [vmem:[%s612 + $0x30] sm:$0xff]
        %v790 = vld [vmem:[%s612 + $0x38] sm:$0xf]
        %v791 = vld [vmem:[%s612 + $0x3c] sm:$0xff]
        %v792 = vld [vmem:[%s612 + $0x44] sm:$0xf]
        %v793 = vld [vmem:[%s612 + $0x48] sm:$0xff]
        %v794 = vld [vmem:[%s612 + $0x50] sm:$0xf]
        %v795 = vld [vmem:[%s612 + $0x54] sm:$0xff]
        %v796 = vld [vmem:[%s612 + $0x5c] sm:$0xf]
        %v797 = vld [vmem:[%s612 + $0x60] sm:$0xff]
        %v798 = vld [vmem:[%s612 + $0x68] sm:$0xf]
        %v799 = vld [vmem:[%s612 + $0x6c] sm:$0xff]
        %v800 = vld [vmem:[%s612 + $0x74] sm:$0xf]
        %v801 = vld [vmem:[%s612 + $0x78] sm:$0xff]
        %v802 = vld [vmem:[%s612 + $0x80] sm:$0xf]
        %v803 = vld [vmem:[%s612 + $0x84] sm:$0xff]
        %v804 = vld [vmem:[%s612 + $0x8c] sm:$0xf]
        %v805 = vld [vmem:[%s612 + $0x90] sm:$0xff]
        %v806 = vld [vmem:[%s612 + $0x98] sm:$0xf]
        %v807 = vld [vmem:[%s612 + $0x9c] sm:$0xff]
        %v808 = vld [vmem:[%s612 + $0xa4] sm:$0xf]
        %v809 = vld [vmem:[%s612 + $0xa8] sm:$0xff]
        %v810 = vld [vmem:[%s612 + $0xb0] sm:$0xf]
        %v811 = vld [vmem:[%s612 + $0xb4] sm:$0xff]
        %v812 = vld [vmem:[%s612 + $0xbc] sm:$0xf]
        %v813 = vld [vmem:[%s745] sm:$0x7]
        %v815 = vperm.slane %v813, 0
        %v816 = vperm.slane %v813, 1
        %v817 = vperm.slane %v813, 2
        %v853 = vunpack.c.l.b16 %v781
        %v854 = vunpack.c.h.b16 %v781
        %v855 = vunpack.c.l.b16 %v782
        %v856 = vunpack.c.l.b16 %v783
        %v857 = vunpack.c.h.b16 %v783
        %v858 = vunpack.c.l.b16 %v784
        %v859 = vunpack.c.l.b16 %v785
        %v860 = vunpack.c.h.b16 %v785
        %v861 = vunpack.c.l.b16 %v786
        %v862 = vunpack.c.l.b16 %v787
        %v863 = vunpack.c.h.b16 %v787
        %v864 = vunpack.c.l.b16 %v788
        %v865 = vunpack.c.l.b16 %v789
        %v866 = vunpack.c.h.b16 %v789
        %v867 = vunpack.c.l.b16 %v790
        %v868 = vunpack.c.l.b16 %v791
        %v869 = vunpack.c.h.b16 %v791
        %v870 = vunpack.c.l.b16 %v792
        %v871 = vunpack.c.l.b16 %v793
        %v872 = vunpack.c.h.b16 %v793
        %v873 = vunpack.c.l.b16 %v794
        %v874 = vunpack.c.l.b16 %v795
        %v875 = vunpack.c.h.b16 %v795
        %v876 = vunpack.c.l.b16 %v796
        %v877 = vunpack.c.l.b16 %v797
        %v878 = vunpack.c.h.b16 %v797
        %v879 = vunpack.c.l.b16 %v798
        %v880 = vunpack.c.l.b16 %v799
        %v881 = vunpack.c.h.b16 %v799
        %v882 = vunpack.c.l.b16 %v800
        %v883 = vunpack.c.l.b16 %v801
        %v884 = vunpack.c.h.b16 %v801
        %v885 = vunpack.c.l.b16 %v802
        %v886 = vunpack.c.l.b16 %v803
        %v887 = vunpack.c.h.b16 %v803
        %v888 = vunpack.c.l.b16 %v804
        %v889 = vunpack.c.l.b16 %v805
        %v890 = vunpack.c.h.b16 %v805
        %v891 = vunpack.c.l.b16 %v806
        %v892 = vunpack.c.l.b16 %v807
        %v893 = vunpack.c.h.b16 %v807
        %v894 = vunpack.c.l.b16 %v808
        %v895 = vunpack.c.l.b16 %v809
        %v896 = vunpack.c.h.b16 %v809
        %v897 = vunpack.c.l.b16 %v810
        %v898 = vunpack.c.l.b16 %v811
        %v899 = vunpack.c.h.b16 %v811
        %v900 = vunpack.c.l.b16 %v812
        %v901 = vpack.c.b16 %v856, %v853
        %v902 = vpack.c.b16 %v857, %v854
        %v903 = vpack.c.b16 %v858, %v855
        %v904 = vpack.c.b16 %v862, %v859
        %v905 = vpack.c.b16 %v863, %v860
        %v906 = vpack.c.b16 %v864, %v861
        %v907 = vpack.c.b16 %v868, %v865
        %v908 = vpack.c.b16 %v869, %v866
        %v909 = vpack.c.b16 %v870, %v867
        %v910 = vpack.c.b16 %v874, %v871
        %v911 = vpack.c.b16 %v875, %v872
        %v912 = vpack.c.b16 %v876, %v873
        %v913 = vpack.c.b16 %v880, %v877
        %v914 = vpack.c.b16 %v881, %v878
        %v915 = vpack.c.b16 %v882, %v879
        %v916 = vpack.c.b16 %v886, %v883
        %v917 = vpack.c.b16 %v887, %v884
        %v918 = vpack.c.b16 %v888, %v885
        %v919 = vpack.c.b16 %v892, %v889
        %v920 = vpack.c.b16 %v893, %v890
        %v921 = vpack.c.b16 %v894, %v891
        %v922 = vpack.c.b16 %v898, %v895
        %v923 = vpack.c.b16 %v899, %v896
        %v924 = vpack.c.b16 %v900, %v897
        %949 = vmatpush.bf16.msra.mxu0 %v922
        %950 = vmatpush.bf16.msra.mxu0 %v919
        %951 = vmatpush.bf16.msra.mxu0 %v916
        %952 = vmatpush.bf16.msra.mxu0 %v913
        %953 = vmatpush.bf16.msra.mxu0 %v910
        %954 = vmatpush.bf16.msra.mxu0 %v907
        %955 = vmatpush.bf16.msra.mxu0 %v904
        %956 = vmatpush.bf16.msra.mxu0 %v901
        %957 = vmatmul.bf16.gmra.mxu0 %v780
        %v958 = vpop.f32.mrf.mxu0
        %v959 = vadd.f32 %v815, %v958
        %v960 = vpop.f32.mrf.mxu0
        %961 = vdwg.mxu0
        %962 = vmatpush.bf16.msra.mxu0 %v923
        %963 = vmatpush.bf16.msra.mxu0 %v920
        %964 = vmatpush.bf16.msra.mxu0 %v917
        %965 = vmatpush.bf16.msra.mxu0 %v914
        %966 = vmatpush.bf16.msra.mxu0 %v911
        %967 = vmatpush.bf16.msra.mxu0 %v908
        %968 = vmatpush.bf16.msra.mxu0 %v905
        %969 = vmatpush.bf16.msra.mxu0 %v902
        %970 = vmatmul.bf16.gmra.mxu0 %v780
        %v971 = vpop.f32.mrf.mxu0
        %v972 = vadd.f32 %v816, %v971
        %v973 = vpop.f32.mrf.mxu0
        %974 = vdwg.mxu0
        %975 = vmatpush.bf16.msra.mxu0 %v924
        %976 = vmatpush.bf16.msra.mxu0 %v921
        %977 = vmatpush.bf16.msra.mxu0 %v918
        %978 = vmatpush.bf16.msra.mxu0 %v915
        %979 = vmatpush.bf16.msra.mxu0 %v912
        %980 = vmatpush.bf16.msra.mxu0 %v909
        %981 = vmatpush.bf16.msra.mxu0 %v906
        %982 = vmatpush.bf16.msra.mxu0 %v903
        %983 = vmatmul.bf16.gmra.mxu0 %v780
        %v984 = vpop.f32.mrf.mxu0
        %v985 = vadd.f32 %v817, %v984
        %v986 = vpop.f32.mrf.mxu0
        %987 = vdwg.mxu0
        %v988 = vld [vmem:[%s741] sm:$0x1]
        %v989 = vpack.c.bf16 %v959, %v959
        %v990 = vpack.c.bf16 %v972, %v972
        %v991 = vpack.c.bf16 %v985, %v985
        %vm992 = vcmask 261120
        %v994 = vsel %vm992, %v989, 0
        %v997 = vsel %vm992, %v990, 0
        %999 = vmatpush.bf16.xpose.msra.mxu0 0
        %1000 = vmatpush.bf16.xpose.msra.mxu0 0
        %1001 = vmatpush.bf16.xpose.msra.mxu0 0
        %1002 = vmatpush.bf16.xpose.msra.mxu0 0
        %1003 = vmatpush.bf16.xpose.msra.mxu0 0
        %1004 = vmatpush.bf16.xpose.msra.mxu0 0
        %1005 = vmatpush.bf16.xpose.msra.mxu0 0
        %1006 = vmatpush.bf16.xpose.msra.mxu0 %v997
        %1007 = vmatmul.bf16.gmra.mxu0 %v994
        %v1008 = vpop.f32.mrf.mxu0
        %v1009 = vadd.f32 0.0, %v1008
        %v1010 = vpop.f32.mrf.mxu0
        %1011 = vdwg.mxu0
        %v1012 = vmul.f32 %v1009, 0.17677669
        %v1014 = vperm.slane %v988, 0
        %v1016 = vadd.f32 %v1012, %v1014
        %vm1017 = vcmask 64512
        %v1018 = vsel %vm1017, %v1016, -inf
        %1019 = vmax.xlane.f32.xlu0 %v1018
        %v1020 = vpop.xlane.xlu0 %1019
        %v1021 = vsub.f32 %v1016, %v1020
        %v1022 = vmul.f32 %v1021, 1.442695
        %v1023 = vpow.pop %v1022
        %v1024 = vsel %vm1017, %v1023, 0.0
        %1025 = vadd.xlane.f32.xlu0 %v1024
        %v1026 = vpop.xlane.xlu0 %1025
        %v1027 = vrcp.pop %v1026
        %v1028 = vmul.f32 %v1023, %v1027
        %v1029 = vpack.c.bf16 %v1028, %v1028
        %v1031 = vsel %vm1017, %v1029, 0
        %vm1033 = vcmask 1043456
        %v1035 = vsel %vm1033, %v991, 0
        %1037 = vmatpush.bf16.msra.mxu0 0
        %1038 = vmatpush.bf16.msra.mxu0 0
        %1039 = vmatpush.bf16.msra.mxu0 0
        %1040 = vmatpush.bf16.msra.mxu0 0
        %1041 = vmatpush.bf16.msra.mxu0 0
        %1042 = vmatpush.bf16.msra.mxu0 0
        %1043 = vmatpush.bf16.msra.mxu0 0
        %1044 = vmatpush.bf16.msra.mxu0 %v1035
        %1045 = vmatmul.bf16.gmra.mxu0 %v1031
        %v1046 = vpop.f32.mrf.mxu0
        %v1047 = vadd.f32 0.0, %v1046
        %v1048 = vpop.f32.mrf.mxu0
        %1049 = vdwg.mxu0
        %1051 = vrot.lane.b32.xlu0 %v989, 96
        %v1052 = vpop.permute.xlu0 %1051
        %1054 = vrot.lane.b32.xlu0 %v990, 96
        %v1055 = vpop.permute.xlu0 %1054
        %v1057 = vsel %vm992, %v1052, 0
        %v1060 = vsel %vm992, %v1055, 0
        %1062 = vmatpush.bf16.xpose.msra.mxu0 0
        %1063 = vmatpush.bf16.xpose.msra.mxu0 0
        %1064 = vmatpush.bf16.xpose.msra.mxu0 0
        %1065 = vmatpush.bf16.xpose.msra.mxu0 0
        %1066 = vmatpush.bf16.xpose.msra.mxu0 0
        %1067 = vmatpush.bf16.xpose.msra.mxu0 0
        %1068 = vmatpush.bf16.xpose.msra.mxu0 0
        %1069 = vmatpush.bf16.xpose.msra.mxu0 %v1060
        %1070 = vmatmul.bf16.gmra.mxu0 %v1057
        %v1071 = vpop.f32.mrf.mxu0
        %v1072 = vadd.f32 0.0, %v1071
        %v1073 = vpop.f32.mrf.mxu0
        %1074 = vdwg.mxu0
        %v1075 = vmul.f32 %v1072, 0.17677669
        %v1076 = vadd.f32 %v1075, %v1014
        %v1077 = vsel %vm1017, %v1076, -inf
        %1078 = vmax.xlane.f32.xlu0 %v1077
        %v1079 = vpop.xlane.xlu0 %1078
        %v1080 = vsub.f32 %v1076, %v1079
        %v1081 = vmul.f32 %v1080, 1.442695
        %v1082 = vpow.pop %v1081
        %v1083 = vsel %vm1017, %v1082, 0.0
        %1084 = vadd.xlane.f32.xlu0 %v1083
        %v1085 = vpop.xlane.xlu0 %1084
        %v1086 = vrcp.pop %v1085
        %v1087 = vmul.f32 %v1082, %v1086
        %v1088 = vpack.c.bf16 %v1087, %v1087
        %1090 = vrot.lane.b32.xlu0 %v991, 96
        %v1091 = vpop.permute.xlu0 %1090
        %v1093 = vsel %vm1017, %v1088, 0
        %v1096 = vsel %vm1033, %v1091, 0
        %1098 = vmatpush.bf16.msra.mxu0 0
        %1099 = vmatpush.bf16.msra.mxu0 0
        %1100 = vmatpush.bf16.msra.mxu0 0
        %1101 = vmatpush.bf16.msra.mxu0 0
        %1102 = vmatpush.bf16.msra.mxu0 0
        %1103 = vmatpush.bf16.msra.mxu0 0
        %1104 = vmatpush.bf16.msra.mxu0 0
        %1105 = vmatpush.bf16.msra.mxu0 %v1096
        %1106 = vmatmul.bf16.gmra.mxu0 %v1093
        %v1107 = vpop.f32.mrf.mxu0
        %v1108 = vadd.f32 0.0, %v1107
        %v1109 = vpop.f32.mrf.mxu0
        %1110 = vdwg.mxu0
        %1111 = vrot.lane.b32.xlu0 %v989, 64
        %v1112 = vpop.permute.xlu0 %1111
        %1113 = vrot.lane.b32.xlu0 %v990, 64
        %v1114 = vpop.permute.xlu0 %1113
        %v1116 = vsel %vm992, %v1112, 0
        %v1119 = vsel %vm992, %v1114, 0
        %1121 = vmatpush.bf16.xpose.msra.mxu0 0
        %1122 = vmatpush.bf16.xpose.msra.mxu0 0
        %1123 = vmatpush.bf16.xpose.msra.mxu0 0
        %1124 = vmatpush.bf16.xpose.msra.mxu0 0
        %1125 = vmatpush.bf16.xpose.msra.mxu0 0
        %1126 = vmatpush.bf16.xpose.msra.mxu0 0
        %1127 = vmatpush.bf16.xpose.msra.mxu0 0
        %1128 = vmatpush.bf16.xpose.msra.mxu0 %v1119
        %1129 = vmatmul.bf16.gmra.mxu0 %v1116
        %v1130 = vpop.f32.mrf.mxu0
        %v1131 = vadd.f32 0.0, %v1130
        %v1132 = vpop.f32.mrf.mxu0
        %1133 = vdwg.mxu0
        %v1134 = vmul.f32 %v1131, 0.17677669
        %v1135 = vadd.f32 %v1134, %v1014
        %v1136 = vsel %vm1017, %v1135, -inf
        %1137 = vmax.xlane.f32.xlu0 %v1136
        %v1138 = vpop.xlane.xlu0 %1137
        %v1139 = vsub.f32 %v1135, %v1138
        %v1140 = vmul.f32 %v1139, 1.442695
        %v1141 = vpow.pop %v1140
        %v1142 = vsel %vm1017, %v1141, 0.0
        %1143 = vadd.xlane.f32.xlu0 %v1142
        %v1144 = vpop.xlane.xlu0 %1143
        %v1145 = vrcp.pop %v1144
        %v1146 = vmul.f32 %v1141, %v1145
        %v1147 = vpack.c.bf16 %v1146, %v1146
        %1148 = vrot.lane.b32.xlu0 %v991, 64
        %v1149 = vpop.permute.xlu0 %1148
        %v1151 = vsel %vm1017, %v1147, 0
        %v1154 = vsel %vm1033, %v1149, 0
        %1156 = vmatpush.bf16.msra.mxu0 0
        %1157 = vmatpush.bf16.msra.mxu0 0
        %1158 = vmatpush.bf16.msra.mxu0 0
        %1159 = vmatpush.bf16.msra.mxu0 0
        %1160 = vmatpush.bf16.msra.mxu0 0
        %1161 = vmatpush.bf16.msra.mxu0 0
        %1162 = vmatpush.bf16.msra.mxu0 0
        %1163 = vmatpush.bf16.msra.mxu0 %v1154
        %1164 = vmatmul.bf16.gmra.mxu0 %v1151
        %v1165 = vpop.f32.mrf.mxu0
        %v1166 = vadd.f32 0.0, %v1165
        %v1167 = vpop.f32.mrf.mxu0
        %1168 = vdwg.mxu0
        %1169 = vrot.lane.b32.xlu0 %v989, 32
        %v1170 = vpop.permute.xlu0 %1169
        %1171 = vrot.lane.b32.xlu0 %v990, 32
        %v1172 = vpop.permute.xlu0 %1171
        %v1174 = vsel %vm992, %v1170, 0
        %v1177 = vsel %vm992, %v1172, 0
        %1179 = vmatpush.bf16.xpose.msra.mxu0 0
        %1180 = vmatpush.bf16.xpose.msra.mxu0 0
        %1181 = vmatpush.bf16.xpose.msra.mxu0 0
        %1182 = vmatpush.bf16.xpose.msra.mxu0 0
        %1183 = vmatpush.bf16.xpose.msra.mxu0 0
        %1184 = vmatpush.bf16.xpose.msra.mxu0 0
        %1185 = vmatpush.bf16.xpose.msra.mxu0 0
        %1186 = vmatpush.bf16.xpose.msra.mxu0 %v1177
        %1187 = vmatmul.bf16.gmra.mxu0 %v1174
        %v1188 = vpop.f32.mrf.mxu0
        %v1189 = vadd.f32 0.0, %v1188
        %v1190 = vpop.f32.mrf.mxu0
        %1191 = vdwg.mxu0
        %v1192 = vmul.f32 %v1189, 0.17677669
        %v1193 = vadd.f32 %v1192, %v1014
        %v1194 = vsel %vm1017, %v1193, -inf
        %1195 = vmax.xlane.f32.xlu0 %v1194
        %v1196 = vpop.xlane.xlu0 %1195
        %v1197 = vsub.f32 %v1193, %v1196
        %v1198 = vmul.f32 %v1197, 1.442695
        %v1199 = vpow.pop %v1198
        %v1200 = vsel %vm1017, %v1199, 0.0
        %1201 = vadd.xlane.f32.xlu0 %v1200
        %v1202 = vpop.xlane.xlu0 %1201
        %v1203 = vrcp.pop %v1202
        %v1204 = vmul.f32 %v1199, %v1203
        %v1205 = vpack.c.bf16 %v1204, %v1204
        %1206 = vrot.lane.b32.xlu0 %v991, 32
        %v1207 = vpop.permute.xlu0 %1206
        %v1209 = vsel %vm1017, %v1205, 0
        %v1212 = vsel %vm1033, %v1207, 0
        %1214 = vmatpush.bf16.msra.mxu0 0
        %1215 = vmatpush.bf16.msra.mxu0 0
        %1216 = vmatpush.bf16.msra.mxu0 0
        %1217 = vmatpush.bf16.msra.mxu0 0
        %1218 = vmatpush.bf16.msra.mxu0 0
        %1219 = vmatpush.bf16.msra.mxu0 0
        %1220 = vmatpush.bf16.msra.mxu0 0
        %1221 = vmatpush.bf16.msra.mxu0 %v1212
        %1222 = vmatmul.bf16.gmra.mxu0 %v1209
        %v1223 = vpop.f32.mrf.mxu0
        %v1224 = vadd.f32 0.0, %v1223
        %v1225 = vpop.f32.mrf.mxu0
        %1226 = vdwg.mxu0
        %1228 = vrot.lane.b32.xlu0 %v1108, 32
        %v1229 = vpop.permute.xlu0 %1228
        %1232 = vrot.lane.b32.xlu0 %v1166, 64
        %v1233 = vpop.permute.xlu0 %1232
        %1236 = vrot.lane.b32.xlu0 %v1224, 96
        %v1237 = vpop.permute.xlu0 %1236
        %v1239 = vsel %vm992, %v1047, %v1229
        %vm1240 = vcmask 523264
        %v1241 = vsel %vm1240, %v1239, %v1233
        %vm1242 = vcmask 785408
        %v1243 = vsel %vm1242, %v1241, %v1237
        %v1244 = vpack.c.bf16 %v1243, %v1243
        %v1245 = vld [vmem:[%s622] sm:$0xf]
        %v1246 = vld [vmem:[%s622 + $0x4] sm:$0xf]
        %v1247 = vld [vmem:[%s622 + $0x8] sm:$0xf]
        %v1248 = vld [vmem:[%s622 + $0xc] sm:$0xf]
        %v1249 = vld [vmem:[%s622 + $0x10] sm:$0xf]
        %v1250 = vld [vmem:[%s622 + $0x14] sm:$0xf]
        %v1251 = vld [vmem:[%s622 + $0x18] sm:$0xf]
        %v1252 = vld [vmem:[%s622 + $0x1c] sm:$0xf]
        %v1253 = vld [vmem:[%s622 + $0x20] sm:$0xf]
        %v1254 = vld [vmem:[%s622 + $0x24] sm:$0xf]
        %v1255 = vld [vmem:[%s622 + $0x28] sm:$0xf]
        %v1256 = vld [vmem:[%s622 + $0x2c] sm:$0xf]
        %v1257 = vld [vmem:[%s622 + $0x30] sm:$0xf]
        %v1258 = vld [vmem:[%s622 + $0x34] sm:$0xf]
        %v1259 = vld [vmem:[%s622 + $0x38] sm:$0xf]
        %v1260 = vld [vmem:[%s622 + $0x3c] sm:$0xf]
        %v1261 = vld [vmem:[%s748] sm:$0x1]
        %v1263 = vperm.slane %v1261, 0
        %v1281 = vunpack.c.l.b16 %v1245
        %v1282 = vunpack.c.l.b16 %v1246
        %v1283 = vunpack.c.l.b16 %v1247
        %v1284 = vunpack.c.l.b16 %v1248
        %v1285 = vunpack.c.l.b16 %v1249
        %v1286 = vunpack.c.l.b16 %v1250
        %v1287 = vunpack.c.l.b16 %v1251
        %v1288 = vunpack.c.l.b16 %v1252
        %v1289 = vunpack.c.l.b16 %v1253
        %v1290 = vunpack.c.l.b16 %v1254
        %v1291 = vunpack.c.l.b16 %v1255
        %v1292 = vunpack.c.l.b16 %v1256
        %v1293 = vunpack.c.l.b16 %v1257
        %v1294 = vunpack.c.l.b16 %v1258
        %v1295 = vunpack.c.l.b16 %v1259
        %v1296 = vunpack.c.l.b16 %v1260
        %v1297 = vpack.c.b16 %v1282, %v1281
        %v1298 = vpack.c.b16 %v1284, %v1283
        %v1299 = vpack.c.b16 %v1286, %v1285
        %v1300 = vpack.c.b16 %v1288, %v1287
        %v1301 = vpack.c.b16 %v1290, %v1289
        %v1302 = vpack.c.b16 %v1292, %v1291
        %v1303 = vpack.c.b16 %v1294, %v1293
        %v1304 = vpack.c.b16 %v1296, %v1295
        %1313 = vmatpush.bf16.msra.mxu0 %v1304
        %1314 = vmatpush.bf16.msra.mxu0 %v1303
        %1315 = vmatpush.bf16.msra.mxu0 %v1302
        %1316 = vmatpush.bf16.msra.mxu0 %v1301
        %1317 = vmatpush.bf16.msra.mxu0 %v1300
        %1318 = vmatpush.bf16.msra.mxu0 %v1299
        %1319 = vmatpush.bf16.msra.mxu0 %v1298
        %1320 = vmatpush.bf16.msra.mxu0 %v1297
        %1321 = vmatmul.bf16.gmra.mxu0 %v1244
        %v1322 = vpop.f32.mrf.mxu0
        %v1323 = vadd.f32 %v1263, %v1322
        %v1324 = vpop.f32.mrf.mxu0
        %1325 = vdwg.mxu0
        %v1326 = vadd.f32 %v779, %v1323
        %v1327 = vld [vmem:[%s751] sm:$0x1]
        %v1328 = vld [vmem:[%s754] sm:$0x1]
        %1329 = vadd.xlane.f32.xlu0 %v1326
        %v1330 = vpop.xlane.xlu0 %1329
        %v1331 = vrcp.pop 128.0
        %v1332 = vmul.f32 128.0, %v1331
        %v1333 = vsub.f32 1.0, %v1332
        %v1334 = vmul.f32 %v1331, %v1333
        %v1335 = vadd.f32 %v1331, %v1334
        %vm1336 = vweird.f32 %v1331
        %v1337 = vsel %vm1336, %v1331, %v1335
        %v1338 = vmul.f32 %v1330, %v1337
        %v1339 = vsub.f32 %v1326, %v1338
        %v1340 = vmul.f32 %v1339, %v1339
        %1341 = vadd.xlane.f32.xlu0 %v1340
        %v1342 = vpop.xlane.xlu0 %1341
        %v1343 = vmul.f32 %v1342, %v1337
        %v1344 = vadd.f32 %v1343, 1e-05
        %v1345 = vrsqrt.pop %v1344
        %v1346 = vmul.f32 %v1345, %v1344
        %v1347 = vmul.f32 %v1346, %v1345
        %v1348 = vmul.f32 0.5, %v1347
        %v1349 = vsub.f32 1.5, %v1348
        %v1350 = vmul.f32 %v1345, %v1349
        %vm1351 = vweird.f32 %v1344
        %vm1352 = vweird.f32 %v1345
        %vm1353 = vmor %vm1351, %vm1352
        %v1354 = vsel %vm1353, %v1345, %v1350
        %v1355 = vmul.f32 %v1339, %v1354
        %v1357 = vperm.slane %v1327, 0
        %v1359 = vmul.f32 %v1355, %v1357
        %v1361 = vperm.slane %v1328, 0
        %v1363 = vadd.f32 %v1359, %v1361
        %v1364 = vpack.c.bf16 %v1363, %v1363
        %v1365 = vld [vmem:[%s632] sm:$0xff]
        %v1366 = vld [vmem:[%s632 + $0x8] sm:$0xff]
        %v1367 = vld [vmem:[%s632 + $0x10] sm:$0xff]
        %v1368 = vld [vmem:[%s632 + $0x18] sm:$0xff]
        %v1369 = vld [vmem:[%s632 + $0x20] sm:$0xff]
        %v1370 = vld [vmem:[%s632 + $0x28] sm:$0xff]
        %v1371 = vld [vmem:[%s632 + $0x30] sm:$0xff]
        %v1372 = vld [vmem:[%s632 + $0x38] sm:$0xff]
        %v1373 = vld [vmem:[%s632 + $0x40] sm:$0xff]
        %v1374 = vld [vmem:[%s632 + $0x48] sm:$0xff]
        %v1375 = vld [vmem:[%s632 + $0x50] sm:$0xff]
        %v1376 = vld [vmem:[%s632 + $0x58] sm:$0xff]
        %v1377 = vld [vmem:[%s632 + $0x60] sm:$0xff]
        %v1378 = vld [vmem:[%s632 + $0x68] sm:$0xff]
        %v1379 = vld [vmem:[%s632 + $0x70] sm:$0xff]
        %v1380 = vld [vmem:[%s632 + $0x78] sm:$0xff]
        %v1381 = vld [vmem:[%s758] sm:$0x3]
        %v1383 = vperm.slane %v1381, 0
        %v1384 = vperm.slane %v1381, 1
        %v1403 = vunpack.c.l.b16 %v1365
        %v1404 = vunpack.c.h.b16 %v1365
        %v1405 = vunpack.c.l.b16 %v1366
        %v1406 = vunpack.c.h.b16 %v1366
        %v1407 = vunpack.c.l.b16 %v1367
        %v1408 = vunpack.c.h.b16 %v1367
        %v1409 = vunpack.c.l.b16 %v1368
        %v1410 = vunpack.c.h.b16 %v1368
        %v1411 = vunpack.c.l.b16 %v1369
        %v1412 = vunpack.c.h.b16 %v1369
        %v1413 = vunpack.c.l.b16 %v1370
        %v1414 = vunpack.c.h.b16 %v1370
        %v1415 = vunpack.c.l.b16 %v1371
        %v1416 = vunpack.c.h.b16 %v1371
        %v1417 = vunpack.c.l.b16 %v1372
        %v1418 = vunpack.c.h.b16 %v1372
        %v1419 = vunpack.c.l.b16 %v1373
        %v1420 = vunpack.c.h.b16 %v1373
        %v1421 = vunpack.c.l.b16 %v1374
        %v1422 = vunpack.c.h.b16 %v1374
        %v1423 = vunpack.c.l.b16 %v1375
        %v1424 = vunpack.c.h.b16 %v1375
        %v1425 = vunpack.c.l.b16 %v1376
        %v1426 = vunpack.c.h.b16 %v1376
        %v1427 = vunpack.c.l.b16 %v1377
        %v1428 = vunpack.c.h.b16 %v1377
        %v1429 = vunpack.c.l.b16 %v1378
        %v1430 = vunpack.c.h.b16 %v1378
        %v1431 = vunpack.c.l.b16 %v1379
        %v1432 = vunpack.c.h.b16 %v1379
        %v1433 = vunpack.c.l.b16 %v1380
        %v1434 = vunpack.c.h.b16 %v1380
        %v1435 = vpack.c.b16 %v1405, %v1403
        %v1436 = vpack.c.b16 %v1406, %v1404
        %v1437 = vpack.c.b16 %v1409, %v1407
        %v1438 = vpack.c.b16 %v1410, %v1408
        %v1439 = vpack.c.b16 %v1413, %v1411
        %v1440 = vpack.c.b16 %v1414, %v1412
        %v1441 = vpack.c.b16 %v1417, %v1415
        %v1442 = vpack.c.b16 %v1418, %v1416
        %v1443 = vpack.c.b16 %v1421, %v1419
        %v1444 = vpack.c.b16 %v1422, %v1420
        %v1445 = vpack.c.b16 %v1425, %v1423
        %v1446 = vpack.c.b16 %v1426, %v1424
        %v1447 = vpack.c.b16 %v1429, %v1427
        %v1448 = vpack.c.b16 %v1430, %v1428
        %v1449 = vpack.c.b16 %v1433, %v1431
        %v1450 = vpack.c.b16 %v1434, %v1432
        %1467 = vmatpush.bf16.msra.mxu0 %v1449
        %1468 = vmatpush.bf16.msra.mxu0 %v1447
        %1469 = vmatpush.bf16.msra.mxu0 %v1445
        %1470 = vmatpush.bf16.msra.mxu0 %v1443
        %1471 = vmatpush.bf16.msra.mxu0 %v1441
        %1472 = vmatpush.bf16.msra.mxu0 %v1439
        %1473 = vmatpush.bf16.msra.mxu0 %v1437
        %1474 = vmatpush.bf16.msra.mxu0 %v1435
        %1475 = vmatmul.bf16.gmra.mxu0 %v1364
        %v1476 = vpop.f32.mrf.mxu0
        %v1477 = vadd.f32 %v1383, %v1476
        %v1478 = vpop.f32.mrf.mxu0
        %1479 = vdwg.mxu0
        %1480 = vmatpush.bf16.msra.mxu0 %v1450
        %1481 = vmatpush.bf16.msra.mxu0 %v1448
        %1482 = vmatpush.bf16.msra.mxu0 %v1446
        %1483 = vmatpush.bf16.msra.mxu0 %v1444
        %1484 = vmatpush.bf16.msra.mxu0 %v1442
        %1485 = vmatpush.bf16.msra.mxu0 %v1440
        %1486 = vmatpush.bf16.msra.mxu0 %v1438
        %1487 = vmatpush.bf16.msra.mxu0 %v1436
        %1488 = vmatmul.bf16.gmra.mxu0 %v1364
        %v1489 = vpop.f32.mrf.mxu0
        %v1490 = vadd.f32 %v1384, %v1489
        %v1491 = vpop.f32.mrf.mxu0
        %1492 = vdwg.mxu0
        %v1493 = vmax.f32 %v1477, 0.0
        %v1494 = vmax.f32 %v1490, 0.0
        %v1495 = vpack.c.bf16 %v1493, %v1493
        %v1496 = vpack.c.bf16 %v1494, %v1494
        %v1497 = vld [vmem:[%s642] sm:$0xf]
        %v1498 = vld [vmem:[%s642 + $0x4] sm:$0xf]
        %v1499 = vld [vmem:[%s642 + $0x8] sm:$0xf]
        %v1500 = vld [vmem:[%s642 + $0xc] sm:$0xf]
        %v1501 = vld [vmem:[%s642 + $0x10] sm:$0xf]
        %v1502 = vld [vmem:[%s642 + $0x14] sm:$0xf]
        %v1503 = vld [vmem:[%s642 + $0x18] sm:$0xf]
        %v1504 = vld [vmem:[%s642 + $0x1c] sm:$0xf]
        %v1505 = vld [vmem:[%s642 + $0x20] sm:$0xf]
        %v1506 = vld [vmem:[%s642 + $0x24] sm:$0xf]
        %v1507 = vld [vmem:[%s642 + $0x28] sm:$0xf]
        %v1508 = vld [vmem:[%s642 + $0x2c] sm:$0xf]
        %v1509 = vld [vmem:[%s642 + $0x30] sm:$0xf]
        %v1510 = vld [vmem:[%s642 + $0x34] sm:$0xf]
        %v1511 = vld [vmem:[%s642 + $0x38] sm:$0xf]
        %v1512 = vld [vmem:[%s642 + $0x3c] sm:$0xf]
        %v1513 = vld [vmem:[%s642 + $0x40] sm:$0xf]
        %v1514 = vld [vmem:[%s642 + $0x44] sm:$0xf]
        %v1515 = vld [vmem:[%s642 + $0x48] sm:$0xf]
        %v1516 = vld [vmem:[%s642 + $0x4c] sm:$0xf]
        %v1517 = vld [vmem:[%s642 + $0x50] sm:$0xf]
        %v1518 = vld [vmem:[%s642 + $0x54] sm:$0xf]
        %v1519 = vld [vmem:[%s642 + $0x58] sm:$0xf]
        %v1520 = vld [vmem:[%s642 + $0x5c] sm:$0xf]
        %v1521 = vld [vmem:[%s642 + $0x60] sm:$0xf]
        %v1522 = vld [vmem:[%s642 + $0x64] sm:$0xf]
        %v1523 = vld [vmem:[%s642 + $0x68] sm:$0xf]
        %v1524 = vld [vmem:[%s642 + $0x6c] sm:$0xf]
        %v1525 = vld [vmem:[%s642 + $0x70] sm:$0xf]
        %v1526 = vld [vmem:[%s642 + $0x74] sm:$0xf]
        %v1527 = vld [vmem:[%s642 + $0x78] sm:$0xf]
        %v1528 = vld [vmem:[%s642 + $0x7c] sm:$0xf]
        %v1529 = vld [vmem:[%s761] sm:$0x1]
        %v1531 = vperm.slane %v1529, 0
        %v1565 = vunpack.c.l.b16 %v1497
        %v1566 = vunpack.c.l.b16 %v1498
        %v1567 = vunpack.c.l.b16 %v1499
        %v1568 = vunpack.c.l.b16 %v1500
        %v1569 = vunpack.c.l.b16 %v1501
        %v1570 = vunpack.c.l.b16 %v1502
        %v1571 = vunpack.c.l.b16 %v1503
        %v1572 = vunpack.c.l.b16 %v1504
        %v1573 = vunpack.c.l.b16 %v1505
        %v1574 = vunpack.c.l.b16 %v1506
        %v1575 = vunpack.c.l.b16 %v1507
        %v1576 = vunpack.c.l.b16 %v1508
        %v1577 = vunpack.c.l.b16 %v1509
        %v1578 = vunpack.c.l.b16 %v1510
        %v1579 = vunpack.c.l.b16 %v1511
        %v1580 = vunpack.c.l.b16 %v1512
        %v1581 = vunpack.c.l.b16 %v1513
        %v1582 = vunpack.c.l.b16 %v1514
        %v1583 = vunpack.c.l.b16 %v1515
        %v1584 = vunpack.c.l.b16 %v1516
        %v1585 = vunpack.c.l.b16 %v1517
        %v1586 = vunpack.c.l.b16 %v1518
        %v1587 = vunpack.c.l.b16 %v1519
        %v1588 = vunpack.c.l.b16 %v1520
        %v1589 = vunpack.c.l.b16 %v1521
        %v1590 = vunpack.c.l.b16 %v1522
        %v1591 = vunpack.c.l.b16 %v1523
        %v1592 = vunpack.c.l.b16 %v1524
        %v1593 = vunpack.c.l.b16 %v1525
        %v1594 = vunpack.c.l.b16 %v1526
        %v1595 = vunpack.c.l.b16 %v1527
        %v1596 = vunpack.c.l.b16 %v1528
        %v1597 = vpack.c.b16 %v1566, %v1565
        %v1598 = vpack.c.b16 %v1568, %v1567
        %v1599 = vpack.c.b16 %v1570, %v1569
        %v1600 = vpack.c.b16 %v1572, %v1571
        %v1601 = vpack.c.b16 %v1574, %v1573
        %v1602 = vpack.c.b16 %v1576, %v1575
        %v1603 = vpack.c.b16 %v1578, %v1577
        %v1604 = vpack.c.b16 %v1580, %v1579
        %v1605 = vpack.c.b16 %v1582, %v1581
        %v1606 = vpack.c.b16 %v1584, %v1583
        %v1607 = vpack.c.b16 %v1586, %v1585
        %v1608 = vpack.c.b16 %v1588, %v1587
        %v1609 = vpack.c.b16 %v1590, %v1589
        %v1610 = vpack.c.b16 %v1592, %v1591
        %v1611 = vpack.c.b16 %v1594, %v1593
        %v1612 = vpack.c.b16 %v1596, %v1595
        %1629 = vmatpush.bf16.msra.mxu0 %v1604
        %1630 = vmatpush.bf16.msra.mxu0 %v1603
        %1631 = vmatpush.bf16.msra.mxu0 %v1602
        %1632 = vmatpush.bf16.msra.mxu0 %v1601
        %1633 = vmatpush.bf16.msra.mxu0 %v1600
        %1634 = vmatpush.bf16.msra.mxu0 %v1599
        %1635 = vmatpush.bf16.msra.mxu0 %v1598
        %1636 = vmatpush.bf16.msra.mxu0 %v1597
        %1637 = vmatmul.bf16.gmra.mxu0 %v1495
        %v1638 = vpop.f32.mrf.mxu0
        %v1639 = vadd.f32 %v1531, %v1638
        %v1640 = vpop.f32.mrf.mxu0
        %1641 = vdwg.mxu0
        %1642 = vmatpush.bf16.msra.mxu0 %v1612
        %1643 = vmatpush.bf16.msra.mxu0 %v1611
        %1644 = vmatpush.bf16.msra.mxu0 %v1610
        %1645 = vmatpush.bf16.msra.mxu0 %v1609
        %1646 = vmatpush.bf16.msra.mxu0 %v1608
        %1647 = vmatpush.bf16.msra.mxu0 %v1607
        %1648 = vmatpush.bf16.msra.mxu0 %v1606
        %1649 = vmatpush.bf16.msra.mxu0 %v1605
        %1650 = vmatmul.bf16.gmra.mxu0 %v1496
        %v1651 = vpop.f32.mrf.mxu0
        %v1652 = vadd.f32 %v1639, %v1651
        %v1653 = vpop.f32.mrf.mxu0
        %1654 = vdwg.mxu0
        %v1655 = vadd.f32 %v1363, %v1652
        %v1656 = vld [vmem:[%s764] sm:$0x1]
        %v1657 = vld [vmem:[%s767] sm:$0x1]
        %1658 = vadd.xlane.f32.xlu0 %v1655
        %v1659 = vpop.xlane.xlu0 %1658
        %v1660 = vmul.f32 %v1659, %v1337
        %v1661 = vsub.f32 %v1655, %v1660
        %v1662 = vmul.f32 %v1661, %v1661
        %1663 = vadd.xlane.f32.xlu0 %v1662
        %v1664 = vpop.xlane.xlu0 %1663
        %v1665 = vmul.f32 %v1664, %v1337
        %v1666 = vadd.f32 %v1665, 1e-05
        %v1667 = vrsqrt.pop %v1666
        %v1668 = vmul.f32 %v1667, %v1666
        %v1669 = vmul.f32 %v1668, %v1667
        %v1670 = vmul.f32 0.5, %v1669
        %v1671 = vsub.f32 1.5, %v1670
        %v1672 = vmul.f32 %v1667, %v1671
        %vm1673 = vweird.f32 %v1666
        %vm1674 = vweird.f32 %v1667
        %vm1675 = vmor %vm1673, %vm1674
        %v1676 = vsel %vm1675, %v1667, %v1672
        %v1677 = vmul.f32 %v1661, %v1676
        %v1679 = vperm.slane %v1656, 0
        %v1681 = vmul.f32 %v1677, %v1679
        %v1683 = vperm.slane %v1657, 0
        %v1685 = vadd.f32 %v1681, %v1683
        %1686 = vst [vmem:[#allocation2] sm:$0xff] %v1685
        %p1687 = scmp.eq.s32.totalorder %s39, 1
        // Predicated region
        $region97: #{_lambda_.2} parent=75 // pred_check
          %p1688 = pneg %p1687
        $region98: #{_lambda_.2} parent=75 // pred_check_branch
          %1690 = sbr.rel (%p1688) target = $region100
        $region99: #{_lambda_.2} parent=75 // pred_region
          %1691 = vst [vmem:[%s771] sm:$0xff] %v1685
        $region100: #{_lambda_.2} parent=75 // pred_fallthru
          _
        %p1692 = scmp.lt.s32.totalorder %s38, 1
        %s1693 = scalar_select %p1692, %s38, 1
        %s1694 = smul.addr %s1693, 8
        %s1695 = scalar_lea.vmem %s14, %s1694
        // Predicated region
        $region101: #{_lambda_.2} parent=75 // pred_check
          %p1696 = pneg %p428
        $region102: #{_lambda_.2} parent=75 // pred_check_branch
          %1698 = sbr.rel (%p1696) target = $region104
        $region103: #{_lambda_.2} parent=75 // pred_region
          _
        $region104: #{_lambda_.2} parent=75 // pred_fallthru
          _
      $region76: #{_lambda_.2} parent=5 // pred_fallthru
        _
      %p1699 = scmp.le.s32.totalorder 2, %s29
      // Predicated region
      $region105: #{_lambda_.2} parent=5 // pred_check
        %p1700 = pneg %p1699
      $region106: #{_lambda_.2} parent=5 // pred_check_branch
        %1702 = sbr.rel (%p1700) target = $region108
      $region107: #{_lambda_.2} parent=5 // pred_region
        %s1703 = ssub.s32 %s29, 2
        // Predicated region
        $region109: #{_lambda_.2} parent=107 // pred_check
          %p1704 = pneg %p434
        $region110: #{_lambda_.2} parent=107 // pred_check_branch
          %1706 = sbr.rel (%p1704) target = $region112
        $region111: #{_lambda_.2} parent=107 // pred_region
          %p1707 = scmp.lt.s32.totalorder %s40, 1
          %s1708 = scalar_select %p1707, %s40, 1
          %s1709 = smul.addr %s1708, 8
          %s1710 = scalar_lea.vmem %s14, %s1709
        $region112: #{_lambda_.2} parent=107 // pred_fallthru
          _
      $region108: #{_lambda_.2} parent=5 // pred_fallthru
        _
    $region6: #{_lambda_.2} parent=1 // loop_footer
      %s33 = sadd.s32 1, %s29
    $region7: #{_lambda_.2} parent=1 // loop_footer_branch
      %28 = sbr.rel target = $region3
    $region8: #{_lambda_.2} parent=1 // loop_exit
      _
    %1711 = vsyncpa [#allocation4], 1
    %s1712 = scalar_lea.sflag [#allocation4], 1
    %1713 = vsyncpa %s1712, 1
    %1714 = vsyncpa [#allocation6], 1
    %s1715 = scalar_lea.sflag [#allocation6], 1
    %1716 = vsyncpa %s1715, 1
    %1717 = vsyncpa [#allocation9], 1
    %s1718 = scalar_lea.sflag [#allocation9], 1
    %1719 = vsyncpa %s1718, 1

// kernel: _lambda_.3
$region0: #{_lambda_.3}
  #allocation0 [shape = 'u32[]', space=smem, size = 0x4, offset = 0x4, fixed_abs, tag = 'smem constant byte address 0x4 - core index']
  #allocation1 [shape = 'u32[72,128]{1,0:T(1,128)}', space=vmem, size = 0x9000, scoped, tag = 'internal scratch']
  #allocation2 [shape = 'f32[8,128]{1,0:T(8,128)}', space=vmem, size = 0x1000, scoped, tag = 'scratch operand']
  %s0 = inlined_call_operand.vmem [shape: f32[2,8,128], index: 0, kind: input, shape index: {}]
  %s1 = inlined_call_operand.vmem [shape: f32[2,8,128], index: 1, kind: input, shape index: {}]
  %s2 = inlined_call_operand.vmem [shape: f32[2,8,8], index: 2, kind: input, shape index: {}]
  %s3 = inlined_call_operand.vmem [shape: f32[2,1,8], index: 3, kind: input, shape index: {}]
  %s4 = inlined_call_operand.vmem [shape: bf16[2,128,384], index: 4, kind: input, shape index: {}]
  %s5 = inlined_call_operand.vmem [shape: f32[2,1,384], index: 5, kind: input, shape index: {}]
  %s6 = inlined_call_operand.hbm [shape: bf16[2,128,128], index: 6, kind: input, shape index: {}]
  %s7 = inlined_call_operand.vmem [shape: f32[2,1,128], index: 7, kind: input, shape index: {}, may-alias: {7,9,11,15,17,21,23}]
  %s8 = inlined_call_operand.vmem [shape: f32[2,1,128], index: 8, kind: input, shape index: {}, may-alias: {8,16,22}]
  %s9 = inlined_call_operand.vmem [shape: f32[2,1,128], index: 9, kind: input, shape index: {}, may-alias: {7,9,11,15,17,21,23}]
  %s10 = inlined_call_operand.hbm [shape: bf16[2,128,128], index: 10, kind: input, shape index: {}]
  %s11 = inlined_call_operand.vmem [shape: f32[2,1,128], index: 11, kind: input, shape index: {}, may-alias: {7,9,11,15,17,21,23}]
  %s12 = inlined_call_operand.hbm [shape: bf16[2,128,256], index: 12, kind: input, shape index: {}]
  %s13 = inlined_call_operand.vmem [shape: f32[2,1,256], index: 13, kind: input, shape index: {}, may-alias: {13,19}]
  %s14 = inlined_call_operand.hbm [shape: bf16[2,128,128], index: 14, kind: input, shape index: {}]
  %s15 = inlined_call_operand.vmem [shape: f32[2,1,128], index: 15, kind: input, shape index: {}, may-alias: {7,9,11,15,17,21,23}]
  %s16 = inlined_call_operand.vmem [shape: f32[2,1,128], index: 16, kind: input, shape index: {}, may-alias: {8,16,22}]
  %s17 = inlined_call_operand.vmem [shape: f32[2,1,128], index: 17, kind: input, shape index: {}, may-alias: {7,9,11,15,17,21,23}]
  %s18 = inlined_call_operand.hbm [shape: bf16[2,128,256], index: 18, kind: input, shape index: {}]
  %s19 = inlined_call_operand.vmem [shape: f32[2,1,256], index: 19, kind: input, shape index: {}, may-alias: {13,19}]
  %s20 = inlined_call_operand.hbm [shape: bf16[2,256,128], index: 20, kind: input, shape index: {}]
  %s21 = inlined_call_operand.vmem [shape: f32[2,1,128], index: 21, kind: input, shape index: {}, may-alias: {7,9,11,15,17,21,23}]
  %s22 = inlined_call_operand.vmem [shape: f32[2,1,128], index: 22, kind: input, shape index: {}, may-alias: {8,16,22}]
  %s23 = inlined_call_operand.vmem [shape: f32[2,1,128], index: 23, kind: input, shape index: {}, may-alias: {7,9,11,15,17,21,23}]
  %s24 = inlined_call_operand.hbm [shape: bf16[128,128], index: 24, kind: input, shape index: {}]
  %s25 = inlined_call_operand.vmem [shape: f32[1,128], index: 25, kind: input, shape index: {}]
  %s26 = inlined_call_operand.hbm [shape: f32[2,8,128], index: 26, kind: output, shape index: {}]
  %s27 = sld [smem:[#allocation0]]
  $region173: #{_lambda_.3} parent=0
    _
  %s29 = ssub.s32 1, %s27
  %s30 = scalar_select 0, %s29, %s27
  $region1: #{_lambda_.3} parent=0
    #allocation3 [shape = 'u8[65536]{0}', space=vmem, size = 0x10000, scoped, tag = 'input window, operand 6']
    #allocation4 [shape = 's32[2]{0}', space=sflag, size = 0x8, scoped, tag = 'scoped memory for _lambda_.3']
    #allocation5 [shape = 's32[2]{0}', space=sflag, size = 0x8, scoped, tag = 'scoped memory for _lambda_.3']
    #allocation6 [shape = 'u8[65536]{0}', space=vmem, size = 0x10000, scoped, tag = 'input window, operand 10']
    #allocation7 [shape = 's32[2]{0}', space=sflag, size = 0x8, scoped, tag = 'scoped memory for _lambda_.3']
    #allocation8 [shape = 'u8[131072]{0}', space=vmem, size = 0x20000, scoped, tag = 'input window, operand 12']
    #allocation9 [shape = 'u8[65536]{0}', space=vmem, size = 0x10000, scoped, tag = 'input window, operand 14']
    #allocation10 [shape = 's32[2]{0}', space=sflag, size = 0x8, scoped, tag = 'scoped memory for _lambda_.3']
    #allocation11 [shape = 'u8[131072]{0}', space=vmem, size = 0x20000, scoped, tag = 'input window, operand 18']
    #allocation12 [shape = 'u8[131072]{0}', space=vmem, size = 0x20000, scoped, tag = 'input window, operand 20']
    #allocation13 [shape = 's32[2]{0}', space=sflag, size = 0x8, scoped, tag = 'scoped memory for _lambda_.3']
    #allocation14 [shape = 'u8[32768]{0}', space=vmem, size = 0x8000, scoped, tag = 'input window, operand 24, single buffered']
    #allocation15 [shape = 'u8[8192]{0}', space=vmem, size = 0x2000, scoped, tag = 'output window, operand 0']
    %31 = vsyncpa [#allocation4], 0
    %s32 = scalar_lea.sflag [#allocation4], 1
    %33 = vsyncpa %s32, 0
    %34 = vsyncpa [#allocation7], 0
    %s35 = scalar_lea.sflag [#allocation7], 1
    %36 = vsyncpa %s35, 0
    %37 = vsyncpa [#allocation10], 0
    %s38 = scalar_lea.sflag [#allocation10], 1
    %39 = vsyncpa %s38, 0
    %40 = vsyncpa [#allocation13], 0
    %s41 = scalar_lea.sflag [#allocation13], 1
    %42 = vsyncpa %s41, 0
    %43 = vsyncpa [#allocation5], 0
    %s44 = scalar_lea.sflag [#allocation5], 1
    %45 = vsyncpa %s44, 0
    loop: start=0, step=1, limit=6
    $region2: #{_lambda_.3} parent=1 // loop_pre_header
      _
    $region3: #{_lambda_.3} parent=1 // loop_header
      %s47 = sphi 0, %s51
      %p48 = scmp.ge.s32.totalorder %s47, 6
      %s54 = sphi 0, %s66
      %s55 = sphi 0, %s62
      %s56 = sphi 0, %s54
      %s57 = sphi 0, %s55
      %s58 = sphi 0, %s56
      %s59 = sphi 0, %s57
      %s69 = sphi 0, %s71
      %s72 = sphi 0, %s69
      %s73 = sphi 0, %s72
      %s89 = sphi 0, %s73
      %s95 = sphi 0, %s97
      %s98 = sphi 0, %s95
      %s99 = sphi 0, %s98
      %s115 = sphi 0, %s99
      %s121 = sphi 0, %s123
      %s124 = sphi 0, %s121
      %s125 = sphi 0, %s124
      %s141 = sphi 0, %s125
      %s147 = sphi 0, %s149
      %s150 = sphi 0, %s147
      %s151 = sphi 0, %s150
      %s167 = sphi 0, %s151
      %s173 = sphi 0, %s175
      %s176 = sphi 0, %s173
      %s177 = sphi 0, %s176
      %s193 = sphi 0, %s177
      %s199 = sphi 0, %s201
      %s202 = sphi 0, %s199
      %s203 = sphi 0, %s202
      %s219 = sphi 0, %s203
      %s225 = sphi 0, %s227
      %s228 = sphi 0, %s225
      %s229 = sphi 0, %s228
      %s245 = sphi 0, %s229
      %s251 = sphi 0, %s253
      %s254 = sphi 0, %s251
      %s255 = sphi 0, %s254
      %s271 = sphi 0, %s255
      %s277 = sphi 0, %s279
      %s280 = sphi 0, %s277
      %s281 = sphi 0, %s280
      %s297 = sphi 0, %s281
      %s303 = sphi 0, %s305
      %s306 = sphi 0, %s303
      %s307 = sphi 0, %s306
      %s323 = sphi 0, %s307
      %s329 = sphi 0, %s331
      %s332 = sphi 0, %s329
      %s333 = sphi 0, %s332
      %s349 = sphi 0, %s333
      %s355 = sphi 0, %s357
      %s358 = sphi 0, %s355
      %s359 = sphi 0, %s358
      %s375 = sphi 0, %s359
      %s381 = sphi 0, %s383
      %s384 = sphi 0, %s381
      %s385 = sphi 0, %s384
      %s401 = sphi 0, %s385
      %s407 = sphi 0, %s409
      %s410 = sphi 0, %s407
      %s411 = sphi 0, %s410
      %s427 = sphi 0, %s411
      %s433 = sphi 0, %s435
      %s436 = sphi 0, %s433
      %s437 = sphi 0, %s436
      %s453 = sphi 0, %s437
      %s459 = sphi 0, %s461
      %s462 = sphi 0, %s459
      %s463 = sphi 0, %s462
      %s479 = sphi 0, %s463
      %s485 = sphi 0, %s487
      %s488 = sphi 0, %s485
      %s489 = sphi 0, %s488
      %s505 = sphi 0, %s489
      %s511 = sphi 0, %s513
      %s514 = sphi 0, %s511
      %s515 = sphi 0, %s514
      %s531 = sphi 0, %s515
      %s537 = sphi 0, %s539
      %s540 = sphi 0, %s537
      %s541 = sphi 0, %s540
      %s557 = sphi 0, %s541
      %s563 = sphi 0, %s565
      %s566 = sphi 0, %s563
      %s567 = sphi 0, %s566
      %s583 = sphi 0, %s567
      %s589 = sphi 0, %s591
      %s592 = sphi 0, %s589
      %s593 = sphi 0, %s592
      %s609 = sphi 0, %s593
      %s615 = sphi 0, %s617
      %s618 = sphi 0, %s615
      %s619 = sphi 0, %s618
      %s635 = sphi 0, %s619
      %s641 = sphi 0, %s643
      %s644 = sphi 0, %s641
      %s645 = sphi 0, %s644
      %s661 = sphi 0, %s645
      %s667 = sphi 0, %s669
      %s670 = sphi 0, %s667
      %s671 = sphi 0, %s670
      %s687 = sphi 0, %s671
      %s691 = sphi 0, %s691
      %s693 = sphi 0, %s691
      %s694 = sphi 0, %s693
      %s708 = sphi 0, %s694
      %s712 = sphi 0, %s712
      %s714 = sphi 0, %s712
      %s715 = sphi 0, %s714
      %s729 = sphi 0, %s715
      %s735 = sphi 0, %s737
      %s738 = sphi 0, %s735
      %s739 = sphi 0, %s738
      %s755 = sphi 0, %s739
    $region4: #{_lambda_.3} parent=1 // loop_header_branch
      %50 = sbr.rel (%p48) target = $region8
    $region5: #{_lambda_.3} parent=1 // loop_body
      %s52 = ssub.s32 %s47, 1
      %s53 = ssub.s32 %s47, 2
      %s60 = sadd.s32 1, %s55
      %p61 = scmp.ge.s32.totalorder %s60, 2
      %s62 = scalar_select %p61, 0, %s60
      %s63 = sadd.s32 1, %s54
      %s64 = scalar_select %p61, %s63, %s54
      %p65 = scmp.ge.s32.totalorder %s64, 2
      %s66 = scalar_select %p65, 0, %s64
      %s67 = ssub.s32 %s54, %s66
      %p68 = scmp.eq.s32.totalorder %s67, 0
      %s70 = sadd.s32 %s69, 1
      %s71 = scalar_select %p68, %s69, %s70
      %p74 = pneg %p68
      %p75 = scmp.eq.s32.totalorder %s47, 3
      %p76 = por %p74, %p75
      %p77 = scmp.ne.s32.totalorder %s69, %s72
      %p78 = scmp.eq.s32.totalorder %s47, 0
      %p79 = por %p77, %p78
      %p80 = scmp.ne.s32.totalorder %s69, %s72
      %p81 = scmp.eq.s32.totalorder %s52, 3
      %p82 = por %p80, %p81
      %p83 = scmp.ne.s32.totalorder %s72, %s73
      %p84 = scmp.eq.s32.totalorder %s52, 0
      %p85 = por %p83, %p84
      %p86 = scmp.ne.s32.totalorder %s72, %s73
      %p87 = scmp.eq.s32.totalorder %s53, 3
      %p88 = por %p86, %p87
      %p90 = scmp.ne.s32.totalorder %s73, %s89
      %p91 = scmp.eq.s32.totalorder %s53, 0
      %p92 = por %p90, %p91
      %s93 = ssub.s32 %s54, %s66
      %p94 = scmp.eq.s32.totalorder %s93, 0
      %s96 = sadd.s32 %s95, 1
      %s97 = scalar_select %p94, %s95, %s96
      %p100 = pneg %p94
      %p101 = scmp.eq.s32.totalorder %s47, 3
      %p102 = por %p100, %p101
      %p103 = scmp.ne.s32.totalorder %s95, %s98
      %p104 = scmp.eq.s32.totalorder %s47, 0
      %p105 = por %p103, %p104
      %p106 = scmp.ne.s32.totalorder %s95, %s98
      %p107 = scmp.eq.s32.totalorder %s52, 3
      %p108 = por %p106, %p107
      %p109 = scmp.ne.s32.totalorder %s98, %s99
      %p110 = scmp.eq.s32.totalorder %s52, 0
      %p111 = por %p109, %p110
      %p112 = scmp.ne.s32.totalorder %s98, %s99
      %p113 = scmp.eq.s32.totalorder %s53, 3
      %p114 = por %p112, %p113
      %p116 = scmp.ne.s32.totalorder %s99, %s115
      %p117 = scmp.eq.s32.totalorder %s53, 0
      %p118 = por %p116, %p117
      %s119 = ssub.s32 %s54, %s66
      %p120 = scmp.eq.s32.totalorder %s119, 0
      %s122 = sadd.s32 %s121, 1
      %s123 = scalar_select %p120, %s121, %s122
      %p126 = pneg %p120
      %p127 = scmp.eq.s32.totalorder %s47, 3
      %p128 = por %p126, %p127
      %p129 = scmp.ne.s32.totalorder %s121, %s124
      %p130 = scmp.eq.s32.totalorder %s47, 0
      %p131 = por %p129, %p130
      %p132 = scmp.ne.s32.totalorder %s121, %s124
      %p133 = scmp.eq.s32.totalorder %s52, 3
      %p134 = por %p132, %p133
      %p135 = scmp.ne.s32.totalorder %s124, %s125
      %p136 = scmp.eq.s32.totalorder %s52, 0
      %p137 = por %p135, %p136
      %p138 = scmp.ne.s32.totalorder %s124, %s125
      %p139 = scmp.eq.s32.totalorder %s53, 3
      %p140 = por %p138, %p139
      %p142 = scmp.ne.s32.totalorder %s125, %s141
      %p143 = scmp.eq.s32.totalorder %s53, 0
      %p144 = por %p142, %p143
      %s145 = ssub.s32 %s54, %s66
      %p146 = scmp.eq.s32.totalorder %s145, 0
      %s148 = sadd.s32 %s147, 1
      %s149 = scalar_select %p146, %s147, %s148
      %p152 = pneg %p146
      %p153 = scmp.eq.s32.totalorder %s47, 3
      %p154 = por %p152, %p153
      %p155 = scmp.ne.s32.totalorder %s147, %s150
      %p156 = scmp.eq.s32.totalorder %s47, 0
      %p157 = por %p155, %p156
      %p158 = scmp.ne.s32.totalorder %s147, %s150
      %p159 = scmp.eq.s32.totalorder %s52, 3
      %p160 = por %p158, %p159
      %p161 = scmp.ne.s32.totalorder %s150, %s151
      %p162 = scmp.eq.s32.totalorder %s52, 0
      %p163 = por %p161, %p162
      %p164 = scmp.ne.s32.totalorder %s150, %s151
      %p165 = scmp.eq.s32.totalorder %s53, 3
      %p166 = por %p164, %p165
      %p168 = scmp.ne.s32.totalorder %s151, %s167
      %p169 = scmp.eq.s32.totalorder %s53, 0
      %p170 = por %p168, %p169
      %s171 = ssub.s32 %s55, %s62
      %p172 = scmp.eq.s32.totalorder %s171, 0
      %s174 = sadd.s32 %s173, 1
      %s175 = scalar_select %p172, %s173, %s174
      %p178 = pneg %p172
      %p179 = scmp.eq.s32.totalorder %s47, 3
      %p180 = por %p178, %p179
      %p181 = scmp.ne.s32.totalorder %s173, %s176
      %p182 = scmp.eq.s32.totalorder %s47, 0
      %p183 = por %p181, %p182
      %p184 = scmp.ne.s32.totalorder %s173, %s176
      %p185 = scmp.eq.s32.totalorder %s52, 3
      %p186 = por %p184, %p185
      %p187 = scmp.ne.s32.totalorder %s176, %s177
      %p188 = scmp.eq.s32.totalorder %s52, 0
      %p189 = por %p187, %p188
      %p190 = scmp.ne.s32.totalorder %s176, %s177
      %p191 = scmp.eq.s32.totalorder %s53, 3
      %p192 = por %p190, %p191
      %p194 = scmp.ne.s32.totalorder %s177, %s193
      %p195 = scmp.eq.s32.totalorder %s53, 0
      %p196 = por %p194, %p195
      %s197 = ssub.s32 %s55, %s62
      %p198 = scmp.eq.s32.totalorder %s197, 0
      %s200 = sadd.s32 %s199, 1
      %s201 = scalar_select %p198, %s199, %s200
      %p204 = pneg %p198
      %p205 = scmp.eq.s32.totalorder %s47, 3
      %p206 = por %p204, %p205
      %p207 = scmp.ne.s32.totalorder %s199, %s202
      %p208 = scmp.eq.s32.totalorder %s47, 0
      %p209 = por %p207, %p208
      %p210 = scmp.ne.s32.totalorder %s199, %s202
      %p211 = scmp.eq.s32.totalorder %s52, 3
      %p212 = por %p210, %p211
      %p213 = scmp.ne.s32.totalorder %s202, %s203
      %p214 = scmp.eq.s32.totalorder %s52, 0
      %p215 = por %p213, %p214
      %p216 = scmp.ne.s32.totalorder %s202, %s203
      %p217 = scmp.eq.s32.totalorder %s53, 3
      %p218 = por %p216, %p217
      %p220 = scmp.ne.s32.totalorder %s203, %s219
      %p221 = scmp.eq.s32.totalorder %s53, 0
      %p222 = por %p220, %p221
      %s223 = ssub.s32 %s55, %s62
      %p224 = scmp.eq.s32.totalorder %s223, 0
      %s226 = sadd.s32 %s225, 1
      %s227 = scalar_select %p224, %s225, %s226
      %p230 = pneg %p224
      %p231 = scmp.eq.s32.totalorder %s47, 3
      %p232 = por %p230, %p231
      %p233 = scmp.ne.s32.totalorder %s225, %s228
      %p234 = scmp.eq.s32.totalorder %s47, 0
      %p235 = por %p233, %p234
      %p236 = scmp.ne.s32.totalorder %s225, %s228
      %p237 = scmp.eq.s32.totalorder %s52, 3
      %p238 = por %p236, %p237
      %p239 = scmp.ne.s32.totalorder %s228, %s229
      %p240 = scmp.eq.s32.totalorder %s52, 0
      %p241 = por %p239, %p240
      %p242 = scmp.ne.s32.totalorder %s228, %s229
      %p243 = scmp.eq.s32.totalorder %s53, 3
      %p244 = por %p242, %p243
      %p246 = scmp.ne.s32.totalorder %s229, %s245
      %p247 = scmp.eq.s32.totalorder %s53, 0
      %p248 = por %p246, %p247
      %s249 = ssub.s32 %s55, %s62
      %p250 = scmp.eq.s32.totalorder %s249, 0
      %s252 = sadd.s32 %s251, 1
      %s253 = scalar_select %p250, %s251, %s252
      %p256 = pneg %p250
      %p257 = scmp.eq.s32.totalorder %s47, 3
      %p258 = por %p256, %p257
      %p259 = scmp.ne.s32.totalorder %s251, %s254
      %p260 = scmp.eq.s32.totalorder %s47, 0
      %p261 = por %p259, %p260
      %p262 = scmp.ne.s32.totalorder %s251, %s254
      %p263 = scmp.eq.s32.totalorder %s52, 3
      %p264 = por %p262, %p263
      %p265 = scmp.ne.s32.totalorder %s254, %s255
      %p266 = scmp.eq.s32.totalorder %s52, 0
      %p267 = por %p265, %p266
      %p268 = scmp.ne.s32.totalorder %s254, %s255
      %p269 = scmp.eq.s32.totalorder %s53, 3
      %p270 = por %p268, %p269
      %p272 = scmp.ne.s32.totalorder %s255, %s271
      %p273 = scmp.eq.s32.totalorder %s53, 0
      %p274 = por %p272, %p273
      %s275 = ssub.s32 %s55, %s62
      %p276 = scmp.eq.s32.totalorder %s275, 0
      %s278 = sadd.s32 %s277, 1
      %s279 = scalar_select %p276, %s277, %s278
      %p282 = pneg %p276
      %p283 = scmp.eq.s32.totalorder %s47, 3
      %p284 = por %p282, %p283
      %p285 = scmp.ne.s32.totalorder %s277, %s280
      %p286 = scmp.eq.s32.totalorder %s47, 0
      %p287 = por %p285, %p286
      %p288 = scmp.ne.s32.totalorder %s277, %s280
      %p289 = scmp.eq.s32.totalorder %s52, 3
      %p290 = por %p288, %p289
      %p291 = scmp.ne.s32.totalorder %s280, %s281
      %p292 = scmp.eq.s32.totalorder %s52, 0
      %p293 = por %p291, %p292
      %p294 = scmp.ne.s32.totalorder %s280, %s281
      %p295 = scmp.eq.s32.totalorder %s53, 3
      %p296 = por %p294, %p295
      %p298 = scmp.ne.s32.totalorder %s281, %s297
      %p299 = scmp.eq.s32.totalorder %s53, 0
      %p300 = por %p298, %p299
      %s301 = ssub.s32 %s55, %s62
      %p302 = scmp.eq.s32.totalorder %s301, 0
      %s304 = sadd.s32 %s303, 1
      %s305 = scalar_select %p302, %s303, %s304
      %p308 = pneg %p302
      %p309 = scmp.eq.s32.totalorder %s47, 3
      %p310 = por %p308, %p309
      %p311 = scmp.ne.s32.totalorder %s303, %s306
      %p312 = scmp.eq.s32.totalorder %s47, 0
      %p313 = por %p311, %p312
      %p314 = scmp.ne.s32.totalorder %s303, %s306
      %p315 = scmp.eq.s32.totalorder %s52, 3
      %p316 = por %p314, %p315
      %p317 = scmp.ne.s32.totalorder %s306, %s307
      %p318 = scmp.eq.s32.totalorder %s52, 0
      %p319 = por %p317, %p318
      %p320 = scmp.ne.s32.totalorder %s306, %s307
      %p321 = scmp.eq.s32.totalorder %s53, 3
      %p322 = por %p320, %p321
      %p324 = scmp.ne.s32.totalorder %s307, %s323
      %p325 = scmp.eq.s32.totalorder %s53, 0
      %p326 = por %p324, %p325
      %s327 = ssub.s32 %s55, %s62
      %p328 = scmp.eq.s32.totalorder %s327, 0
      %s330 = sadd.s32 %s329, 1
      %s331 = scalar_select %p328, %s329, %s330
      %p334 = pneg %p328
      %p335 = scmp.eq.s32.totalorder %s47, 3
      %p336 = por %p334, %p335
      %p337 = scmp.ne.s32.totalorder %s329, %s332
      %p338 = scmp.eq.s32.totalorder %s47, 0
      %p339 = por %p337, %p338
      %p340 = scmp.ne.s32.totalorder %s329, %s332
      %p341 = scmp.eq.s32.totalorder %s52, 3
      %p342 = por %p340, %p341
      %p343 = scmp.ne.s32.totalorder %s332, %s333
      %p344 = scmp.eq.s32.totalorder %s52, 0
      %p345 = por %p343, %p344
      %p346 = scmp.ne.s32.totalorder %s332, %s333
      %p347 = scmp.eq.s32.totalorder %s53, 3
      %p348 = por %p346, %p347
      %p350 = scmp.ne.s32.totalorder %s333, %s349
      %p351 = scmp.eq.s32.totalorder %s53, 0
      %p352 = por %p350, %p351
      %s353 = ssub.s32 %s55, %s62
      %p354 = scmp.eq.s32.totalorder %s353, 0
      %s356 = sadd.s32 %s355, 1
      %s357 = scalar_select %p354, %s355, %s356
      %p360 = pneg %p354
      %p361 = scmp.eq.s32.totalorder %s47, 3
      %p362 = por %p360, %p361
      %p363 = scmp.ne.s32.totalorder %s355, %s358
      %p364 = scmp.eq.s32.totalorder %s47, 0
      %p365 = por %p363, %p364
      %p366 = scmp.ne.s32.totalorder %s355, %s358
      %p367 = scmp.eq.s32.totalorder %s52, 3
      %p368 = por %p366, %p367
      %p369 = scmp.ne.s32.totalorder %s358, %s359
      %p370 = scmp.eq.s32.totalorder %s52, 0
      %p371 = por %p369, %p370
      %p372 = scmp.ne.s32.totalorder %s358, %s359
      %p373 = scmp.eq.s32.totalorder %s53, 3
      %p374 = por %p372, %p373
      %p376 = scmp.ne.s32.totalorder %s359, %s375
      %p377 = scmp.eq.s32.totalorder %s53, 0
      %p378 = por %p376, %p377
      %s379 = ssub.s32 %s55, %s62
      %p380 = scmp.eq.s32.totalorder %s379, 0
      %s382 = sadd.s32 %s381, 1
      %s383 = scalar_select %p380, %s381, %s382
      %p386 = pneg %p380
      %p387 = scmp.eq.s32.totalorder %s47, 3
      %p388 = por %p386, %p387
      %p389 = scmp.ne.s32.totalorder %s381, %s384
      %p390 = scmp.eq.s32.totalorder %s47, 0
      %p391 = por %p389, %p390
      %p392 = scmp.ne.s32.totalorder %s381, %s384
      %p393 = scmp.eq.s32.totalorder %s52, 3
      %p394 = por %p392, %p393
      %p395 = scmp.ne.s32.totalorder %s384, %s385
      %p396 = scmp.eq.s32.totalorder %s52, 0
      %p397 = por %p395, %p396
      %p398 = scmp.ne.s32.totalorder %s384, %s385
      %p399 = scmp.eq.s32.totalorder %s53, 3
      %p400 = por %p398, %p399
      %p402 = scmp.ne.s32.totalorder %s385, %s401
      %p403 = scmp.eq.s32.totalorder %s53, 0
      %p404 = por %p402, %p403
      %s405 = ssub.s32 %s55, %s62
      %p406 = scmp.eq.s32.totalorder %s405, 0
      %s408 = sadd.s32 %s407, 1
      %s409 = scalar_select %p406, %s407, %s408
      %p412 = pneg %p406
      %p413 = scmp.eq.s32.totalorder %s47, 3
      %p414 = por %p412, %p413
      %p415 = scmp.ne.s32.totalorder %s407, %s410
      %p416 = scmp.eq.s32.totalorder %s47, 0
      %p417 = por %p415, %p416
      %p418 = scmp.ne.s32.totalorder %s407, %s410
      %p419 = scmp.eq.s32.totalorder %s52, 3
      %p420 = por %p418, %p419
      %p421 = scmp.ne.s32.totalorder %s410, %s411
      %p422 = scmp.eq.s32.totalorder %s52, 0
      %p423 = por %p421, %p422
      %p424 = scmp.ne.s32.totalorder %s410, %s411
      %p425 = scmp.eq.s32.totalorder %s53, 3
      %p426 = por %p424, %p425
      %p428 = scmp.ne.s32.totalorder %s411, %s427
      %p429 = scmp.eq.s32.totalorder %s53, 0
      %p430 = por %p428, %p429
      %s431 = ssub.s32 %s55, %s62
      %p432 = scmp.eq.s32.totalorder %s431, 0
      %s434 = sadd.s32 %s433, 1
      %s435 = scalar_select %p432, %s433, %s434
      %p438 = pneg %p432
      %p439 = scmp.eq.s32.totalorder %s47, 3
      %p440 = por %p438, %p439
      %p441 = scmp.ne.s32.totalorder %s433, %s436
      %p442 = scmp.eq.s32.totalorder %s47, 0
      %p443 = por %p441, %p442
      %p444 = scmp.ne.s32.totalorder %s433, %s436
      %p445 = scmp.eq.s32.totalorder %s52, 3
      %p446 = por %p444, %p445
      %p447 = scmp.ne.s32.totalorder %s436, %s437
      %p448 = scmp.eq.s32.totalorder %s52, 0
      %p449 = por %p447, %p448
      %p450 = scmp.ne.s32.totalorder %s436, %s437
      %p451 = scmp.eq.s32.totalorder %s53, 3
      %p452 = por %p450, %p451
      %p454 = scmp.ne.s32.totalorder %s437, %s453
      %p455 = scmp.eq.s32.totalorder %s53, 0
      %p456 = por %p454, %p455
      %s457 = ssub.s32 %s55, %s62
      %p458 = scmp.eq.s32.totalorder %s457, 0
      %s460 = sadd.s32 %s459, 1
      %s461 = scalar_select %p458, %s459, %s460
      %p464 = pneg %p458
      %p465 = scmp.eq.s32.totalorder %s47, 3
      %p466 = por %p464, %p465
      %p467 = scmp.ne.s32.totalorder %s459, %s462
      %p468 = scmp.eq.s32.totalorder %s47, 0
      %p469 = por %p467, %p468
      %p470 = scmp.ne.s32.totalorder %s459, %s462
      %p471 = scmp.eq.s32.totalorder %s52, 3
      %p472 = por %p470, %p471
      %p473 = scmp.ne.s32.totalorder %s462, %s463
      %p474 = scmp.eq.s32.totalorder %s52, 0
      %p475 = por %p473, %p474
      %p476 = scmp.ne.s32.totalorder %s462, %s463
      %p477 = scmp.eq.s32.totalorder %s53, 3
      %p478 = por %p476, %p477
      %p480 = scmp.ne.s32.totalorder %s463, %s479
      %p481 = scmp.eq.s32.totalorder %s53, 0
      %p482 = por %p480, %p481
      %s483 = ssub.s32 %s55, %s62
      %p484 = scmp.eq.s32.totalorder %s483, 0
      %s486 = sadd.s32 %s485, 1
      %s487 = scalar_select %p484, %s485, %s486
      %p490 = pneg %p484
      %p491 = scmp.eq.s32.totalorder %s47, 3
      %p492 = por %p490, %p491
      %p493 = scmp.ne.s32.totalorder %s485, %s488
      %p494 = scmp.eq.s32.totalorder %s47, 0
      %p495 = por %p493, %p494
      %p496 = scmp.ne.s32.totalorder %s485, %s488
      %p497 = scmp.eq.s32.totalorder %s52, 3
      %p498 = por %p496, %p497
      %p499 = scmp.ne.s32.totalorder %s488, %s489
      %p500 = scmp.eq.s32.totalorder %s52, 0
      %p501 = por %p499, %p500
      %p502 = scmp.ne.s32.totalorder %s488, %s489
      %p503 = scmp.eq.s32.totalorder %s53, 3
      %p504 = por %p502, %p503
      %p506 = scmp.ne.s32.totalorder %s489, %s505
      %p507 = scmp.eq.s32.totalorder %s53, 0
      %p508 = por %p506, %p507
      %s509 = ssub.s32 %s55, %s62
      %p510 = scmp.eq.s32.totalorder %s509, 0
      %s512 = sadd.s32 %s511, 1
      %s513 = scalar_select %p510, %s511, %s512
      %p516 = pneg %p510
      %p517 = scmp.eq.s32.totalorder %s47, 3
      %p518 = por %p516, %p517
      %p519 = scmp.ne.s32.totalorder %s511, %s514
      %p520 = scmp.eq.s32.totalorder %s47, 0
      %p521 = por %p519, %p520
      %p522 = scmp.ne.s32.totalorder %s511, %s514
      %p523 = scmp.eq.s32.totalorder %s52, 3
      %p524 = por %p522, %p523
      %p525 = scmp.ne.s32.totalorder %s514, %s515
      %p526 = scmp.eq.s32.totalorder %s52, 0
      %p527 = por %p525, %p526
      %p528 = scmp.ne.s32.totalorder %s514, %s515
      %p529 = scmp.eq.s32.totalorder %s53, 3
      %p530 = por %p528, %p529
      %p532 = scmp.ne.s32.totalorder %s515, %s531
      %p533 = scmp.eq.s32.totalorder %s53, 0
      %p534 = por %p532, %p533
      %s535 = ssub.s32 %s55, %s62
      %p536 = scmp.eq.s32.totalorder %s535, 0
      %s538 = sadd.s32 %s537, 1
      %s539 = scalar_select %p536, %s537, %s538
      %p542 = pneg %p536
      %p543 = scmp.eq.s32.totalorder %s47, 3
      %p544 = por %p542, %p543
      %p545 = scmp.ne.s32.totalorder %s537, %s540
      %p546 = scmp.eq.s32.totalorder %s47, 0
      %p547 = por %p545, %p546
      %p548 = scmp.ne.s32.totalorder %s537, %s540
      %p549 = scmp.eq.s32.totalorder %s52, 3
      %p550 = por %p548, %p549
      %p551 = scmp.ne.s32.totalorder %s540, %s541
      %p552 = scmp.eq.s32.totalorder %s52, 0
      %p553 = por %p551, %p552
      %p554 = scmp.ne.s32.totalorder %s540, %s541
      %p555 = scmp.eq.s32.totalorder %s53, 3
      %p556 = por %p554, %p555
      %p558 = scmp.ne.s32.totalorder %s541, %s557
      %p559 = scmp.eq.s32.totalorder %s53, 0
      %p560 = por %p558, %p559
      %s561 = ssub.s32 %s55, %s62
      %p562 = scmp.eq.s32.totalorder %s561, 0
      %s564 = sadd.s32 %s563, 1
      %s565 = scalar_select %p562, %s563, %s564
      %p568 = pneg %p562
      %p569 = scmp.eq.s32.totalorder %s47, 3
      %p570 = por %p568, %p569
      %p571 = scmp.ne.s32.totalorder %s563, %s566
      %p572 = scmp.eq.s32.totalorder %s47, 0
      %p573 = por %p571, %p572
      %p574 = scmp.ne.s32.totalorder %s563, %s566
      %p575 = scmp.eq.s32.totalorder %s52, 3
      %p576 = por %p574, %p575
      %p577 = scmp.ne.s32.totalorder %s566, %s567
      %p578 = scmp.eq.s32.totalorder %s52, 0
      %p579 = por %p577, %p578
      %p580 = scmp.ne.s32.totalorder %s566, %s567
      %p581 = scmp.eq.s32.totalorder %s53, 3
      %p582 = por %p580, %p581
      %p584 = scmp.ne.s32.totalorder %s567, %s583
      %p585 = scmp.eq.s32.totalorder %s53, 0
      %p586 = por %p584, %p585
      %s587 = ssub.s32 %s55, %s62
      %p588 = scmp.eq.s32.totalorder %s587, 0
      %s590 = sadd.s32 %s589, 1
      %s591 = scalar_select %p588, %s589, %s590
      %p594 = pneg %p588
      %p595 = scmp.eq.s32.totalorder %s47, 3
      %p596 = por %p594, %p595
      %p597 = scmp.ne.s32.totalorder %s589, %s592
      %p598 = scmp.eq.s32.totalorder %s47, 0
      %p599 = por %p597, %p598
      %p600 = scmp.ne.s32.totalorder %s589, %s592
      %p601 = scmp.eq.s32.totalorder %s52, 3
      %p602 = por %p600, %p601
      %p603 = scmp.ne.s32.totalorder %s592, %s593
      %p604 = scmp.eq.s32.totalorder %s52, 0
      %p605 = por %p603, %p604
      %p606 = scmp.ne.s32.totalorder %s592, %s593
      %p607 = scmp.eq.s32.totalorder %s53, 3
      %p608 = por %p606, %p607
      %p610 = scmp.ne.s32.totalorder %s593, %s609
      %p611 = scmp.eq.s32.totalorder %s53, 0
      %p612 = por %p610, %p611
      %s613 = ssub.s32 %s55, %s62
      %p614 = scmp.eq.s32.totalorder %s613, 0
      %s616 = sadd.s32 %s615, 1
      %s617 = scalar_select %p614, %s615, %s616
      %p620 = pneg %p614
      %p621 = scmp.eq.s32.totalorder %s47, 3
      %p622 = por %p620, %p621
      %p623 = scmp.ne.s32.totalorder %s615, %s618
      %p624 = scmp.eq.s32.totalorder %s47, 0
      %p625 = por %p623, %p624
      %p626 = scmp.ne.s32.totalorder %s615, %s618
      %p627 = scmp.eq.s32.totalorder %s52, 3
      %p628 = por %p626, %p627
      %p629 = scmp.ne.s32.totalorder %s618, %s619
      %p630 = scmp.eq.s32.totalorder %s52, 0
      %p631 = por %p629, %p630
      %p632 = scmp.ne.s32.totalorder %s618, %s619
      %p633 = scmp.eq.s32.totalorder %s53, 3
      %p634 = por %p632, %p633
      %p636 = scmp.ne.s32.totalorder %s619, %s635
      %p637 = scmp.eq.s32.totalorder %s53, 0
      %p638 = por %p636, %p637
      %s639 = ssub.s32 %s55, %s62
      %p640 = scmp.eq.s32.totalorder %s639, 0
      %s642 = sadd.s32 %s641, 1
      %s643 = scalar_select %p640, %s641, %s642
      %p646 = pneg %p640
      %p647 = scmp.eq.s32.totalorder %s47, 3
      %p648 = por %p646, %p647
      %p649 = scmp.ne.s32.totalorder %s641, %s644
      %p650 = scmp.eq.s32.totalorder %s47, 0
      %p651 = por %p649, %p650
      %p652 = scmp.ne.s32.totalorder %s641, %s644
      %p653 = scmp.eq.s32.totalorder %s52, 3
      %p654 = por %p652, %p653
      %p655 = scmp.ne.s32.totalorder %s644, %s645
      %p656 = scmp.eq.s32.totalorder %s52, 0
      %p657 = por %p655, %p656
      %p658 = scmp.ne.s32.totalorder %s644, %s645
      %p659 = scmp.eq.s32.totalorder %s53, 3
      %p660 = por %p658, %p659
      %p662 = scmp.ne.s32.totalorder %s645, %s661
      %p663 = scmp.eq.s32.totalorder %s53, 0
      %p664 = por %p662, %p663
      %s665 = ssub.s32 %s55, %s62
      %p666 = scmp.eq.s32.totalorder %s665, 0
      %s668 = sadd.s32 %s667, 1
      %s669 = scalar_select %p666, %s667, %s668
      %p672 = pneg %p666
      %p673 = scmp.eq.s32.totalorder %s47, 3
      %p674 = por %p672, %p673
      %p675 = scmp.ne.s32.totalorder %s667, %s670
      %p676 = scmp.eq.s32.totalorder %s47, 0
      %p677 = por %p675, %p676
      %p678 = scmp.ne.s32.totalorder %s667, %s670
      %p679 = scmp.eq.s32.totalorder %s52, 3
      %p680 = por %p678, %p679
      %p681 = scmp.ne.s32.totalorder %s670, %s671
      %p682 = scmp.eq.s32.totalorder %s52, 0
      %p683 = por %p681, %p682
      %p684 = scmp.ne.s32.totalorder %s670, %s671
      %p685 = scmp.eq.s32.totalorder %s53, 3
      %p686 = por %p684, %p685
      %p688 = scmp.ne.s32.totalorder %s671, %s687
      %p689 = scmp.eq.s32.totalorder %s53, 0
      %p690 = por %p688, %p689
      %s692 = sadd.s32 %s691, 1
      %p695 = scmp.eq.s32.totalorder %s47, 3
      %p696 = scmp.ne.s32.totalorder %s691, %s693
      %p697 = scmp.eq.s32.totalorder %s47, 0
      %p698 = por %p696, %p697
      %p699 = scmp.ne.s32.totalorder %s691, %s693
      %p700 = scmp.eq.s32.totalorder %s52, 3
      %p701 = por %p699, %p700
      %p702 = scmp.ne.s32.totalorder %s693, %s694
      %p703 = scmp.eq.s32.totalorder %s52, 0
      %p704 = por %p702, %p703
      %p705 = scmp.ne.s32.totalorder %s693, %s694
      %p706 = scmp.eq.s32.totalorder %s53, 3
      %p707 = por %p705, %p706
      %p709 = scmp.ne.s32.totalorder %s694, %s708
      %p710 = scmp.eq.s32.totalorder %s53, 0
      %p711 = por %p709, %p710
      %s713 = sadd.s32 %s712, 1
      %p716 = scmp.eq.s32.totalorder %s47, 3
      %p717 = scmp.ne.s32.totalorder %s712, %s714
      %p718 = scmp.eq.s32.totalorder %s47, 0
      %p719 = por %p717, %p718
      %p720 = scmp.ne.s32.totalorder %s712, %s714
      %p721 = scmp.eq.s32.totalorder %s52, 3
      %p722 = por %p720, %p721
      %p723 = scmp.ne.s32.totalorder %s714, %s715
      %p724 = scmp.eq.s32.totalorder %s52, 0
      %p725 = por %p723, %p724
      %p726 = scmp.ne.s32.totalorder %s714, %s715
      %p727 = scmp.eq.s32.totalorder %s53, 3
      %p728 = por %p726, %p727
      %p730 = scmp.ne.s32.totalorder %s715, %s729
      %p731 = scmp.eq.s32.totalorder %s53, 0
      %p732 = por %p730, %p731
      %s733 = ssub.s32 %s54, %s66
      %p734 = scmp.eq.s32.totalorder %s733, 0
      %s736 = sadd.s32 %s735, 1
      %s737 = scalar_select %p734, %s735, %s736
      %p740 = pneg %p734
      %p741 = scmp.eq.s32.totalorder %s47, 3
      %p742 = por %p740, %p741
      %p743 = scmp.ne.s32.totalorder %s735, %s738
      %p744 = scmp.eq.s32.totalorder %s47, 0
      %p745 = por %p743, %p744
      %p746 = scmp.ne.s32.totalorder %s735, %s738
      %p747 = scmp.eq.s32.totalorder %s52, 3
      %p748 = por %p746, %p747
      %p749 = scmp.ne.s32.totalorder %s738, %s739
      %p750 = scmp.eq.s32.totalorder %s52, 0
      %p751 = por %p749, %p750
      %p752 = scmp.ne.s32.totalorder %s738, %s739
      %p753 = scmp.eq.s32.totalorder %s53, 3
      %p754 = por %p752, %p753
      %p756 = scmp.ne.s32.totalorder %s739, %s755
      %p757 = scmp.eq.s32.totalorder %s53, 0
      %p758 = por %p756, %p757
      %p759 = scmp.le.s32.totalorder 1, %s47
      %p760 = scmp.lt.s32.totalorder %s47, 5
      %p761 = pnand %p759, %p760
      %p762 = pneg %p761
      // Predicated region
      $region9: #{_lambda_.3} parent=5 // pred_check
        _
      $region10: #{_lambda_.3} parent=5 // pred_check_branch
        %764 = sbr.rel (%p761) target = $region12
      $region11: #{_lambda_.3} parent=5 // pred_region
        %s765 = ssub.s32 %s47, 1
        // Predicated region
        $region13: #{_lambda_.3} parent=11 // pred_check
          %p766 = pneg %p704
        $region14: #{_lambda_.3} parent=11 // pred_check_branch
          %768 = sbr.rel (%p766) target = $region16
        $region15: #{_lambda_.3} parent=11 // pred_region
          %770 = vsyncadd [#allocation13], 0
          %s771 = sshll.u32 %s24, 4
          %s772 = int_to_ptr.hbm [resolvable:$true] %s771
          %s773 = sshll.u32 [#allocation14], 4
          %s774 = int_to_ptr.vmem [resolvable:$true] %s773
          %779 = dma.hbm_to_vmem [thread:$0]  %s772, 1024, %s774, [#allocation13], 64, 64, 4
        $region16: #{_lambda_.3} parent=11 // pred_fallthru
          _
        // Predicated region
        $region17: #{_lambda_.3} parent=11 // pred_check
          %p780 = pneg %p725
        $region18: #{_lambda_.3} parent=11 // pred_check_branch
          %782 = sbr.rel (%p780) target = $region20
        $region19: #{_lambda_.3} parent=11 // pred_region
          _
        $region20: #{_lambda_.3} parent=11 // pred_fallthru
          _
      $region12: #{_lambda_.3} parent=5 // pred_fallthru
        _
      %p783 = scmp.lt.s32.totalorder %s47, 4
      // Predicated region
      $region21: #{_lambda_.3} parent=5 // pred_check
        %p784 = pneg %p783
      $region22: #{_lambda_.3} parent=5 // pred_check_branch
        %786 = sbr.rel (%p784) target = $region24
      $region23: #{_lambda_.3} parent=5 // pred_region
        // Predicated region
        $region25: #{_lambda_.3} parent=23 // pred_check
          %p787 = pneg %p79
        $region26: #{_lambda_.3} parent=23 // pred_check_branch
          %789 = sbr.rel (%p787) target = $region28
        $region27: #{_lambda_.3} parent=23 // pred_region
          %p790 = scmp.lt.s32.totalorder %s54, 1
          %s791 = scalar_select %p790, %s54, 1
          %s792 = smul.addr %s791, 8
          %s793 = scalar_lea.vmem %s0, %s792
        $region28: #{_lambda_.3} parent=23 // pred_fallthru
          _
        // Predicated region
        $region29: #{_lambda_.3} parent=23 // pred_check
          %p794 = pneg %p105
        $region30: #{_lambda_.3} parent=23 // pred_check_branch
          %796 = sbr.rel (%p794) target = $region32
        $region31: #{_lambda_.3} parent=23 // pred_region
          %p797 = scmp.lt.s32.totalorder %s54, 1
          %s798 = scalar_select %p797, %s54, 1
          %s799 = smul.addr %s798, 8
          %s800 = scalar_lea.vmem %s1, %s799
        $region32: #{_lambda_.3} parent=23 // pred_fallthru
          _
        // Predicated region
        $region33: #{_lambda_.3} parent=23 // pred_check
          %p801 = pneg %p131
        $region34: #{_lambda_.3} parent=23 // pred_check_branch
          %803 = sbr.rel (%p801) target = $region36
        $region35: #{_lambda_.3} parent=23 // pred_region
          %p804 = scmp.lt.s32.totalorder %s54, 1
          %s805 = scalar_select %p804, %s54, 1
          %s806 = smul.addr %s805, 8
          %s807 = scalar_lea.vmem %s2, %s806
        $region36: #{_lambda_.3} parent=23 // pred_fallthru
          _
        // Predicated region
        $region37: #{_lambda_.3} parent=23 // pred_check
          %p808 = pneg %p157
        $region38: #{_lambda_.3} parent=23 // pred_check_branch
          %810 = sbr.rel (%p808) target = $region40
        $region39: #{_lambda_.3} parent=23 // pred_region
          %p811 = scmp.lt.s32.totalorder %s54, 1
          %s812 = scalar_select %p811, %s54, 1
          %s813 = scalar_lea.vmem %s3, %s812
        $region40: #{_lambda_.3} parent=23 // pred_fallthru
          _
        // Predicated region
        $region41: #{_lambda_.3} parent=23 // pred_check
          %p814 = pneg %p183
        $region42: #{_lambda_.3} parent=23 // pred_check_branch
          %816 = sbr.rel (%p814) target = $region44
        $region43: #{_lambda_.3} parent=23 // pred_region
          %p817 = scmp.lt.s32.totalorder %s55, 1
          %s818 = scalar_select %p817, %s55, 1
          %s819 = smul.addr %s818, 48
          %s820 = smul.addr %s819, 4
          %s821 = scalar_lea.vmem %s4, %s820
        $region44: #{_lambda_.3} parent=23 // pred_fallthru
          _
        // Predicated region
        $region45: #{_lambda_.3} parent=23 // pred_check
          %p822 = pneg %p209
        $region46: #{_lambda_.3} parent=23 // pred_check_branch
          %824 = sbr.rel (%p822) target = $region48
        $region47: #{_lambda_.3} parent=23 // pred_region
          %p825 = scmp.lt.s32.totalorder %s55, 1
          %s826 = scalar_select %p825, %s55, 1
          %s827 = smul.addr %s826, 3
          %s828 = scalar_lea.vmem %s5, %s827
        $region48: #{_lambda_.3} parent=23 // pred_fallthru
          _
        // Predicated region
        $region49: #{_lambda_.3} parent=23 // pred_check
          %p829 = pneg %p235
        $region50: #{_lambda_.3} parent=23 // pred_check_branch
          %831 = sbr.rel (%p829) target = $region52
        $region51: #{_lambda_.3} parent=23 // pred_region
          %s832 = sand.u32 %s225, 1
          %s833 = scalar_lea.sflag [#allocation4], %s832
          %s834 = sand.u32 %s225, 1
          %s835 = smul.addr %s834, 64
          %s836 = scalar_lea.vmem [#allocation3], %s835
          %838 = vsyncadd %s833, 0
          %s839 = smul.addr %s55, 16
          %s840 = smul.addr %s839, 4
          %s841 = scalar_lea.hbm %s6, %s840
          %s842 = sshll.u32 %s841, 4
          %s843 = int_to_ptr.hbm [resolvable:$true] %s842
          %s844 = sshll.u32 %s836, 4
          %s845 = int_to_ptr.vmem [resolvable:$true] %s844
          %850 = dma.hbm_to_vmem [thread:$0]  %s843, 1024, %s845, %s833, 64, 64, 4
        $region52: #{_lambda_.3} parent=23 // pred_fallthru
          _
        // Predicated region
        $region53: #{_lambda_.3} parent=23 // pred_check
          %p851 = pneg %p261
        $region54: #{_lambda_.3} parent=23 // pred_check_branch
          %853 = sbr.rel (%p851) target = $region56
        $region55: #{_lambda_.3} parent=23 // pred_region
          %p854 = scmp.lt.s32.totalorder %s55, 1
          %s855 = scalar_select %p854, %s55, 1
          %s856 = scalar_lea.vmem %s7, %s855
        $region56: #{_lambda_.3} parent=23 // pred_fallthru
          _
        // Predicated region
        $region57: #{_lambda_.3} parent=23 // pred_check
          %p857 = pneg %p287
        $region58: #{_lambda_.3} parent=23 // pred_check_branch
          %859 = sbr.rel (%p857) target = $region60
        $region59: #{_lambda_.3} parent=23 // pred_region
          %p860 = scmp.lt.s32.totalorder %s55, 1
          %s861 = scalar_select %p860, %s55, 1
          %s862 = scalar_lea.vmem %s8, %s861
        $region60: #{_lambda_.3} parent=23 // pred_fallthru
          _
        // Predicated region
        $region61: #{_lambda_.3} parent=23 // pred_check
          %p863 = pneg %p313
        $region62: #{_lambda_.3} parent=23 // pred_check_branch
          %865 = sbr.rel (%p863) target = $region64
        $region63: #{_lambda_.3} parent=23 // pred_region
          %p866 = scmp.lt.s32.totalorder %s55, 1
          %s867 = scalar_select %p866, %s55, 1
          %s868 = scalar_lea.vmem %s9, %s867
        $region64: #{_lambda_.3} parent=23 // pred_fallthru
          _
        // Predicated region
        $region65: #{_lambda_.3} parent=23 // pred_check
          %p869 = pneg %p339
        $region66: #{_lambda_.3} parent=23 // pred_check_branch
          %871 = sbr.rel (%p869) target = $region68
        $region67: #{_lambda_.3} parent=23 // pred_region
          %s872 = sand.u32 %s47, 1
          %s873 = scalar_lea.sflag [#allocation7], %s872
          %s874 = sand.u32 %s329, 1
          %s875 = smul.addr %s874, 64
          %s876 = scalar_lea.vmem [#allocation6], %s875
          %878 = vsyncadd %s873, 0
          %s879 = smul.addr %s55, 16
          %s880 = smul.addr %s879, 4
          %s881 = scalar_lea.hbm %s10, %s880
          %s882 = sshll.u32 %s881, 4
          %s883 = int_to_ptr.hbm [resolvable:$true] %s882
          %s884 = sshll.u32 %s876, 4
          %s885 = int_to_ptr.vmem [resolvable:$true] %s884
          %890 = dma.hbm_to_vmem [thread:$0]  %s883, 1024, %s885, %s873, 64, 64, 4
        $region68: #{_lambda_.3} parent=23 // pred_fallthru
          _
        // Predicated region
        $region69: #{_lambda_.3} parent=23 // pred_check
          %p891 = pneg %p365
        $region70: #{_lambda_.3} parent=23 // pred_check_branch
          %893 = sbr.rel (%p891) target = $region72
        $region71: #{_lambda_.3} parent=23 // pred_region
          %p894 = scmp.lt.s32.totalorder %s55, 1
          %s895 = scalar_select %p894, %s55, 1
          %s896 = scalar_lea.vmem %s11, %s895
        $region72: #{_lambda_.3} parent=23 // pred_fallthru
          _
        // Predicated region
        $region73: #{_lambda_.3} parent=23 // pred_check
          %p897 = pneg %p391
        $region74: #{_lambda_.3} parent=23 // pred_check_branch
          %899 = sbr.rel (%p897) target = $region76
        $region75: #{_lambda_.3} parent=23 // pred_region
          %s900 = sand.u32 %s47, 1
          %s901 = scalar_lea.sflag [#allocation7], %s900
          %s902 = sand.u32 %s381, 1
          %s903 = smul.addr %s902, 128
          %s904 = scalar_lea.vmem [#allocation8], %s903
          %906 = vsyncadd %s901, 0
          %s907 = smul.addr %s55, 32
          %s908 = smul.addr %s907, 4
          %s909 = scalar_lea.hbm %s12, %s908
          %s910 = sshll.u32 %s909, 4
          %s911 = int_to_ptr.hbm [resolvable:$true] %s910
          %s912 = sshll.u32 %s904, 4
          %s913 = int_to_ptr.vmem [resolvable:$true] %s912
          %918 = dma.hbm_to_vmem [thread:$0]  %s911, 2048, %s913, %s901, 128, 128, 8
        $region76: #{_lambda_.3} parent=23 // pred_fallthru
          _
        // Predicated region
        $region77: #{_lambda_.3} parent=23 // pred_check
          %p919 = pneg %p417
        $region78: #{_lambda_.3} parent=23 // pred_check_branch
          %921 = sbr.rel (%p919) target = $region80
        $region79: #{_lambda_.3} parent=23 // pred_region
          %p922 = scmp.lt.s32.totalorder %s55, 1
          %s923 = scalar_select %p922, %s55, 1
          %s924 = smul.addr %s923, 2
          %s925 = scalar_lea.vmem %s13, %s924
        $region80: #{_lambda_.3} parent=23 // pred_fallthru
          _
        // Predicated region
        $region81: #{_lambda_.3} parent=23 // pred_check
          %p926 = pneg %p443
        $region82: #{_lambda_.3} parent=23 // pred_check_branch
          %928 = sbr.rel (%p926) target = $region84
        $region83: #{_lambda_.3} parent=23 // pred_region
          %s929 = sand.u32 %s47, 1
          %s930 = scalar_lea.sflag [#allocation10], %s929
          %s931 = sand.u32 %s433, 1
          %s932 = smul.addr %s931, 64
          %s933 = scalar_lea.vmem [#allocation9], %s932
          %935 = vsyncadd %s930, 0
          %s936 = smul.addr %s55, 16
          %s937 = smul.addr %s936, 4
          %s938 = scalar_lea.hbm %s14, %s937
          %s939 = sshll.u32 %s938, 4
          %s940 = int_to_ptr.hbm [resolvable:$true] %s939
          %s941 = sshll.u32 %s933, 4
          %s942 = int_to_ptr.vmem [resolvable:$true] %s941
          %947 = dma.hbm_to_vmem [thread:$0]  %s940, 1024, %s942, %s930, 64, 64, 4
        $region84: #{_lambda_.3} parent=23 // pred_fallthru
          _
        // Predicated region
        $region85: #{_lambda_.3} parent=23 // pred_check
          %p948 = pneg %p469
        $region86: #{_lambda_.3} parent=23 // pred_check_branch
          %950 = sbr.rel (%p948) target = $region88
        $region87: #{_lambda_.3} parent=23 // pred_region
          %p951 = scmp.lt.s32.totalorder %s55, 1
          %s952 = scalar_select %p951, %s55, 1
          %s953 = scalar_lea.vmem %s15, %s952
        $region88: #{_lambda_.3} parent=23 // pred_fallthru
          _
        // Predicated region
        $region89: #{_lambda_.3} parent=23 // pred_check
          %p954 = pneg %p495
        $region90: #{_lambda_.3} parent=23 // pred_check_branch
          %956 = sbr.rel (%p954) target = $region92
        $region91: #{_lambda_.3} parent=23 // pred_region
          %p957 = scmp.lt.s32.totalorder %s55, 1
          %s958 = scalar_select %p957, %s55, 1
          %s959 = scalar_lea.vmem %s16, %s958
        $region92: #{_lambda_.3} parent=23 // pred_fallthru
          _
        // Predicated region
        $region93: #{_lambda_.3} parent=23 // pred_check
          %p960 = pneg %p521
        $region94: #{_lambda_.3} parent=23 // pred_check_branch
          %962 = sbr.rel (%p960) target = $region96
        $region95: #{_lambda_.3} parent=23 // pred_region
          %p963 = scmp.lt.s32.totalorder %s55, 1
          %s964 = scalar_select %p963, %s55, 1
          %s965 = scalar_lea.vmem %s17, %s964
        $region96: #{_lambda_.3} parent=23 // pred_fallthru
          _
        // Predicated region
        $region97: #{_lambda_.3} parent=23 // pred_check
          %p966 = pneg %p547
        $region98: #{_lambda_.3} parent=23 // pred_check_branch
          %968 = sbr.rel (%p966) target = $region100
        $region99: #{_lambda_.3} parent=23 // pred_region
          %s969 = sand.u32 %s47, 1
          %s970 = scalar_lea.sflag [#allocation10], %s969
          %s971 = sand.u32 %s537, 1
          %s972 = smul.addr %s971, 128
          %s973 = scalar_lea.vmem [#allocation11], %s972
          %975 = vsyncadd %s970, 0
          %s976 = smul.addr %s55, 32
          %s977 = smul.addr %s976, 4
          %s978 = scalar_lea.hbm %s18, %s977
          %s979 = sshll.u32 %s978, 4
          %s980 = int_to_ptr.hbm [resolvable:$true] %s979
          %s981 = sshll.u32 %s973, 4
          %s982 = int_to_ptr.vmem [resolvable:$true] %s981
          %987 = dma.hbm_to_vmem [thread:$0]  %s980, 2048, %s982, %s970, 128, 128, 8
        $region100: #{_lambda_.3} parent=23 // pred_fallthru
          _
        // Predicated region
        $region101: #{_lambda_.3} parent=23 // pred_check
          %p988 = pneg %p573
        $region102: #{_lambda_.3} parent=23 // pred_check_branch
          %990 = sbr.rel (%p988) target = $region104
        $region103: #{_lambda_.3} parent=23 // pred_region
          %p991 = scmp.lt.s32.totalorder %s55, 1
          %s992 = scalar_select %p991, %s55, 1
          %s993 = smul.addr %s992, 2
          %s994 = scalar_lea.vmem %s19, %s993
        $region104: #{_lambda_.3} parent=23 // pred_fallthru
          _
        // Predicated region
        $region105: #{_lambda_.3} parent=23 // pred_check
          %p995 = pneg %p599
        $region106: #{_lambda_.3} parent=23 // pred_check_branch
          %997 = sbr.rel (%p995) target = $region108
        $region107: #{_lambda_.3} parent=23 // pred_region
          %s998 = sand.u32 %s47, 1
          %s999 = scalar_lea.sflag [#allocation13], %s998
          %s1000 = sand.u32 %s589, 1
          %s1001 = smul.addr %s1000, 128
          %s1002 = scalar_lea.vmem [#allocation12], %s1001
          %1004 = vsyncadd %s999, 0
          %s1005 = smul.addr %s55, 32
          %s1006 = smul.addr %s1005, 4
          %s1007 = scalar_lea.hbm %s20, %s1006
          %s1008 = sshll.u32 %s1007, 4
          %s1009 = int_to_ptr.hbm [resolvable:$true] %s1008
          %s1010 = sshll.u32 %s1002, 4
          %s1011 = int_to_ptr.vmem [resolvable:$true] %s1010
          %1016 = dma.hbm_to_vmem [thread:$0]  %s1009, 2048, %s1011, %s999, 64, 64, 4
        $region108: #{_lambda_.3} parent=23 // pred_fallthru
          _
        // Predicated region
        $region109: #{_lambda_.3} parent=23 // pred_check
          %p1017 = pneg %p625
        $region110: #{_lambda_.3} parent=23 // pred_check_branch
          %1019 = sbr.rel (%p1017) target = $region112
        $region111: #{_lambda_.3} parent=23 // pred_region
          %p1020 = scmp.lt.s32.totalorder %s55, 1
          %s1021 = scalar_select %p1020, %s55, 1
          %s1022 = scalar_lea.vmem %s21, %s1021
        $region112: #{_lambda_.3} parent=23 // pred_fallthru
          _
        // Predicated region
        $region113: #{_lambda_.3} parent=23 // pred_check
          %p1023 = pneg %p651
        $region114: #{_lambda_.3} parent=23 // pred_check_branch
          %1025 = sbr.rel (%p1023) target = $region116
        $region115: #{_lambda_.3} parent=23 // pred_region
          %p1026 = scmp.lt.s32.totalorder %s55, 1
          %s1027 = scalar_select %p1026, %s55, 1
          %s1028 = scalar_lea.vmem %s22, %s1027
        $region116: #{_lambda_.3} parent=23 // pred_fallthru
          _
        // Predicated region
        $region117: #{_lambda_.3} parent=23 // pred_check
          %p1029 = pneg %p677
        $region118: #{_lambda_.3} parent=23 // pred_check_branch
          %1031 = sbr.rel (%p1029) target = $region120
        $region119: #{_lambda_.3} parent=23 // pred_region
          %p1032 = scmp.lt.s32.totalorder %s55, 1
          %s1033 = scalar_select %p1032, %s55, 1
          %s1034 = scalar_lea.vmem %s23, %s1033
        $region120: #{_lambda_.3} parent=23 // pred_fallthru
          _
      $region24: #{_lambda_.3} parent=5 // pred_fallthru
        _
      %p1035 = scmp.le.s32.totalorder 1, %s47
      %p1036 = scmp.lt.s32.totalorder %s47, 5
      %p1037 = pnand %p1035, %p1036
      %p1038 = pneg %p1037
      // Predicated region
      $region121: #{_lambda_.3} parent=5 // pred_check
        _
      $region122: #{_lambda_.3} parent=5 // pred_check_branch
        %1040 = sbr.rel (%p1037) target = $region124
      $region123: #{_lambda_.3} parent=5 // pred_region
        %s1041 = ssub.s32 %s47, 1
        %s1042 = sand.u32 %s228, 1
        %s1043 = scalar_lea.sflag [#allocation4], %s1042
        %s1044 = sand.u32 %s228, 1
        %s1045 = smul.addr %s1044, 64
        %s1046 = scalar_lea.vmem [#allocation3], %s1045
        // Predicated region
        $region125: #{_lambda_.3} parent=123 // pred_check
          %p1047 = pneg %p241
        $region126: #{_lambda_.3} parent=123 // pred_check_branch
          %1049 = sbr.rel (%p1047) target = $region128
        $region127: #{_lambda_.3} parent=123 // pred_region
          %1051 = dma.done %s1043, 1024
        $region128: #{_lambda_.3} parent=123 // pred_fallthru
          _
        %s1052 = sand.u32 %s52, 1
        %s1053 = scalar_lea.sflag [#allocation7], %s1052
        %s1054 = sand.u32 %s332, 1
        %s1055 = smul.addr %s1054, 64
        %s1056 = scalar_lea.vmem [#allocation6], %s1055
        // Predicated region
        $region129: #{_lambda_.3} parent=123 // pred_check
          %p1057 = pneg %p345
        $region130: #{_lambda_.3} parent=123 // pred_check_branch
          %1059 = sbr.rel (%p1057) target = $region132
        $region131: #{_lambda_.3} parent=123 // pred_region
          %1061 = dma.done %s1053, 1024
        $region132: #{_lambda_.3} parent=123 // pred_fallthru
          _
        %s1062 = sand.u32 %s52, 1
        %s1063 = scalar_lea.sflag [#allocation7], %s1062
        %s1064 = sand.u32 %s384, 1
        %s1065 = smul.addr %s1064, 128
        %s1066 = scalar_lea.vmem [#allocation8], %s1065
        // Predicated region
        $region133: #{_lambda_.3} parent=123 // pred_check
          %p1067 = pneg %p397
        $region134: #{_lambda_.3} parent=123 // pred_check_branch
          %1069 = sbr.rel (%p1067) target = $region136
        $region135: #{_lambda_.3} parent=123 // pred_region
          %1071 = dma.done %s1063, 2048
        $region136: #{_lambda_.3} parent=123 // pred_fallthru
          _
        %s1072 = sand.u32 %s52, 1
        %s1073 = scalar_lea.sflag [#allocation10], %s1072
        %s1074 = sand.u32 %s436, 1
        %s1075 = smul.addr %s1074, 64
        %s1076 = scalar_lea.vmem [#allocation9], %s1075
        // Predicated region
        $region137: #{_lambda_.3} parent=123 // pred_check
          %p1077 = pneg %p449
        $region138: #{_lambda_.3} parent=123 // pred_check_branch
          %1079 = sbr.rel (%p1077) target = $region140
        $region139: #{_lambda_.3} parent=123 // pred_region
          %1081 = dma.done %s1073, 1024
        $region140: #{_lambda_.3} parent=123 // pred_fallthru
          _
        %s1082 = sand.u32 %s52, 1
        %s1083 = scalar_lea.sflag [#allocation10], %s1082
        %s1084 = sand.u32 %s540, 1
        %s1085 = smul.addr %s1084, 128
        %s1086 = scalar_lea.vmem [#allocation11], %s1085
        // Predicated region
        $region141: #{_lambda_.3} parent=123 // pred_check
          %p1087 = pneg %p553
        $region142: #{_lambda_.3} parent=123 // pred_check_branch
          %1089 = sbr.rel (%p1087) target = $region144
        $region143: #{_lambda_.3} parent=123 // pred_region
          %1091 = dma.done %s1083, 2048
        $region144: #{_lambda_.3} parent=123 // pred_fallthru
          _
        %s1092 = sand.u32 %s52, 1
        %s1093 = scalar_lea.sflag [#allocation13], %s1092
        %s1094 = sand.u32 %s592, 1
        %s1095 = smul.addr %s1094, 128
        %s1096 = scalar_lea.vmem [#allocation12], %s1095
        // Predicated region
        $region145: #{_lambda_.3} parent=123 // pred_check
          %p1097 = pneg %p605
        $region146: #{_lambda_.3} parent=123 // pred_check_branch
          %1099 = sbr.rel (%p1097) target = $region148
        $region147: #{_lambda_.3} parent=123 // pred_region
          %1101 = dma.done %s1093, 2048
        $region148: #{_lambda_.3} parent=123 // pred_fallthru
          _
        // Predicated region
        $region149: #{_lambda_.3} parent=123 // pred_check
          %p1102 = pneg %p704
        $region150: #{_lambda_.3} parent=123 // pred_check_branch
          %1104 = sbr.rel (%p1102) target = $region152
        $region151: #{_lambda_.3} parent=123 // pred_region
          %1106 = dma.done [#allocation13], 1024
        $region152: #{_lambda_.3} parent=123 // pred_fallthru
          _
        %p1107 = scmp.lt.s32.totalorder %s56, 1
        %s1108 = scalar_select %p1107, %s56, 1
        %s1109 = smul.addr %s1108, 8
        %s1110 = scalar_lea.vmem %s0, %s1109
        %p1111 = pneg %p85
        %p1112 = pneg %p82
        %p1113 = scmp.lt.s32.totalorder %s56, 1
        %s1114 = scalar_select %p1113, %s56, 1
        %s1115 = smul.addr %s1114, 8
        %s1116 = scalar_lea.vmem %s1, %s1115
        %p1117 = pneg %p111
        %p1118 = pneg %p108
        %p1119 = scmp.lt.s32.totalorder %s56, 1
        %s1120 = scalar_select %p1119, %s56, 1
        %s1121 = smul.addr %s1120, 8
        %s1122 = scalar_lea.vmem %s2, %s1121
        %p1123 = pneg %p137
        %p1124 = pneg %p134
        %p1125 = scmp.lt.s32.totalorder %s56, 1
        %s1126 = scalar_select %p1125, %s56, 1
        %s1127 = scalar_lea.vmem %s3, %s1126
        %p1128 = pneg %p163
        %p1129 = pneg %p160
        %p1130 = scmp.lt.s32.totalorder %s57, 1
        %s1131 = scalar_select %p1130, %s57, 1
        %s1132 = smul.addr %s1131, 48
        %s1133 = smul.addr %s1132, 4
        %s1134 = scalar_lea.vmem %s4, %s1133
        %p1135 = pneg %p189
        %p1136 = pneg %p186
        %p1137 = scmp.lt.s32.totalorder %s57, 1
        %s1138 = scalar_select %p1137, %s57, 1
        %s1139 = smul.addr %s1138, 3
        %s1140 = scalar_lea.vmem %s5, %s1139
        %p1141 = pneg %p215
        %p1142 = pneg %p212
        %s1143 = sand.u32 %s228, 1
        %s1144 = scalar_lea.sflag [#allocation4], %s1143
        %s1145 = sand.u32 %s228, 1
        %s1146 = smul.addr %s1145, 64
        %s1147 = scalar_lea.vmem [#allocation3], %s1146
        %p1148 = pneg %p241
        %p1149 = pneg %p238
        %p1150 = scmp.lt.s32.totalorder %s57, 1
        %s1151 = scalar_select %p1150, %s57, 1
        %s1152 = scalar_lea.vmem %s7, %s1151
        %p1153 = pneg %p267
        %p1154 = pneg %p264
        %p1155 = scmp.lt.s32.totalorder %s57, 1
        %s1156 = scalar_select %p1155, %s57, 1
        %s1157 = scalar_lea.vmem %s8, %s1156
        %p1158 = pneg %p293
        %p1159 = pneg %p290
        %p1160 = scmp.lt.s32.totalorder %s57, 1
        %s1161 = scalar_select %p1160, %s57, 1
        %s1162 = scalar_lea.vmem %s9, %s1161
        %p1163 = pneg %p319
        %p1164 = pneg %p316
        %s1165 = sand.u32 %s52, 1
        %s1166 = scalar_lea.sflag [#allocation7], %s1165
        %s1167 = sand.u32 %s332, 1
        %s1168 = smul.addr %s1167, 64
        %s1169 = scalar_lea.vmem [#allocation6], %s1168
        %p1170 = pneg %p345
        %p1171 = pneg %p342
        %p1172 = scmp.lt.s32.totalorder %s57, 1
        %s1173 = scalar_select %p1172, %s57, 1
        %s1174 = scalar_lea.vmem %s11, %s1173
        %p1175 = pneg %p371
        %p1176 = pneg %p368
        %s1177 = sand.u32 %s52, 1
        %s1178 = scalar_lea.sflag [#allocation7], %s1177
        %s1179 = sand.u32 %s384, 1
        %s1180 = smul.addr %s1179, 128
        %s1181 = scalar_lea.vmem [#allocation8], %s1180
        %p1182 = pneg %p397
        %p1183 = pneg %p394
        %p1184 = scmp.lt.s32.totalorder %s57, 1
        %s1185 = scalar_select %p1184, %s57, 1
        %s1186 = smul.addr %s1185, 2
        %s1187 = scalar_lea.vmem %s13, %s1186
        %p1188 = pneg %p423
        %p1189 = pneg %p420
        %s1190 = sand.u32 %s52, 1
        %s1191 = scalar_lea.sflag [#allocation10], %s1190
        %s1192 = sand.u32 %s436, 1
        %s1193 = smul.addr %s1192, 64
        %s1194 = scalar_lea.vmem [#allocation9], %s1193
        %p1195 = pneg %p449
        %p1196 = pneg %p446
        %p1197 = scmp.lt.s32.totalorder %s57, 1
        %s1198 = scalar_select %p1197, %s57, 1
        %s1199 = scalar_lea.vmem %s15, %s1198
        %p1200 = pneg %p475
        %p1201 = pneg %p472
        %p1202 = scmp.lt.s32.totalorder %s57, 1
        %s1203 = scalar_select %p1202, %s57, 1
        %s1204 = scalar_lea.vmem %s16, %s1203
        %p1205 = pneg %p501
        %p1206 = pneg %p498
        %p1207 = scmp.lt.s32.totalorder %s57, 1
        %s1208 = scalar_select %p1207, %s57, 1
        %s1209 = scalar_lea.vmem %s17, %s1208
        %p1210 = pneg %p527
        %p1211 = pneg %p524
        %s1212 = sand.u32 %s52, 1
        %s1213 = scalar_lea.sflag [#allocation10], %s1212
        %s1214 = sand.u32 %s540, 1
        %s1215 = smul.addr %s1214, 128
        %s1216 = scalar_lea.vmem [#allocation11], %s1215
        %p1217 = pneg %p553
        %p1218 = pneg %p550
        %p1219 = scmp.lt.s32.totalorder %s57, 1
        %s1220 = scalar_select %p1219, %s57, 1
        %s1221 = smul.addr %s1220, 2
        %s1222 = scalar_lea.vmem %s19, %s1221
        %p1223 = pneg %p579
        %p1224 = pneg %p576
        %s1225 = sand.u32 %s52, 1
        %s1226 = scalar_lea.sflag [#allocation13], %s1225
        %s1227 = sand.u32 %s592, 1
        %s1228 = smul.addr %s1227, 128
        %s1229 = scalar_lea.vmem [#allocation12], %s1228
        %p1230 = pneg %p605
        %p1231 = pneg %p602
        %p1232 = scmp.lt.s32.totalorder %s57, 1
        %s1233 = scalar_select %p1232, %s57, 1
        %s1234 = scalar_lea.vmem %s21, %s1233
        %p1235 = pneg %p631
        %p1236 = pneg %p628
        %p1237 = scmp.lt.s32.totalorder %s57, 1
        %s1238 = scalar_select %p1237, %s57, 1
        %s1239 = scalar_lea.vmem %s22, %s1238
        %p1240 = pneg %p657
        %p1241 = pneg %p654
        %p1242 = scmp.lt.s32.totalorder %s57, 1
        %s1243 = scalar_select %p1242, %s57, 1
        %s1244 = scalar_lea.vmem %s23, %s1243
        %p1245 = pneg %p683
        %p1246 = pneg %p680
        %p1247 = pneg %p704
        %p1248 = pneg %p701
        %p1249 = pneg %p725
        %p1250 = pneg %p722
        %p1251 = pneg %p751
        %p1252 = pneg %p748
        %s1253 = sand.u32 %s738, 1
        %s1254 = scalar_lea.sflag [#allocation5], %s1253
        %s1255 = sand.u32 %s738, 1
        %s1256 = smul.addr %s1255, 8
        %s1257 = scalar_lea.vmem [#allocation15], %s1256
        %p1258 = scmp.lt.s32.totalorder %s56, 1
        %s1259 = scalar_select %p1258, %s56, 1
        %s1260 = smul.addr %s1259, 8
        %s1261 = scalar_lea.vmem %s0, %s1260
        %p1262 = scmp.lt.s32.totalorder %s56, 1
        %s1263 = scalar_select %p1262, %s56, 1
        %s1264 = smul.addr %s1263, 8
        %s1265 = scalar_lea.vmem %s1, %s1264
        %p1266 = scmp.lt.s32.totalorder %s56, 1
        %s1267 = scalar_select %p1266, %s56, 1
        %s1268 = smul.addr %s1267, 8
        %s1269 = scalar_lea.vmem %s2, %s1268
        %p1270 = scmp.lt.s32.totalorder %s56, 1
        %s1271 = scalar_select %p1270, %s56, 1
        %s1272 = scalar_lea.vmem %s3, %s1271
        %p1273 = scmp.lt.s32.totalorder %s57, 1
        %s1274 = scalar_select %p1273, %s57, 1
        %s1275 = smul.addr %s1274, 48
        %s1276 = smul.addr %s1275, 4
        %s1277 = scalar_lea.vmem %s4, %s1276
        %p1278 = scmp.lt.s32.totalorder %s57, 1
        %s1279 = scalar_select %p1278, %s57, 1
        %s1280 = smul.addr %s1279, 3
        %s1281 = scalar_lea.vmem %s5, %s1280
        %p1282 = scmp.lt.s32.totalorder %s57, 1
        %s1283 = scalar_select %p1282, %s57, 1
        %s1284 = scalar_lea.vmem %s7, %s1283
        %p1285 = scmp.lt.s32.totalorder %s57, 1
        %s1286 = scalar_select %p1285, %s57, 1
        %s1287 = scalar_lea.vmem %s8, %s1286
        %p1288 = scmp.lt.s32.totalorder %s57, 1
        %s1289 = scalar_select %p1288, %s57, 1
        %s1290 = scalar_lea.vmem %s9, %s1289
        %p1291 = scmp.lt.s32.totalorder %s57, 1
        %s1292 = scalar_select %p1291, %s57, 1
        %s1293 = scalar_lea.vmem %s11, %s1292
        %p1294 = scmp.lt.s32.totalorder %s57, 1
        %s1295 = scalar_select %p1294, %s57, 1
        %s1296 = smul.addr %s1295, 2
        %s1297 = scalar_lea.vmem %s13, %s1296
        %p1298 = scmp.lt.s32.totalorder %s57, 1
        %s1299 = scalar_select %p1298, %s57, 1
        %s1300 = scalar_lea.vmem %s15, %s1299
        %p1301 = scmp.lt.s32.totalorder %s57, 1
        %s1302 = scalar_select %p1301, %s57, 1
        %s1303 = scalar_lea.vmem %s16, %s1302
        %p1304 = scmp.lt.s32.totalorder %s57, 1
        %s1305 = scalar_select %p1304, %s57, 1
        %s1306 = scalar_lea.vmem %s17, %s1305
        %p1307 = scmp.lt.s32.totalorder %s57, 1
        %s1308 = scalar_select %p1307, %s57, 1
        %s1309 = smul.addr %s1308, 2
        %s1310 = scalar_lea.vmem %s19, %s1309
        %p1311 = scmp.lt.s32.totalorder %s57, 1
        %s1312 = scalar_select %p1311, %s57, 1
        %s1313 = scalar_lea.vmem %s21, %s1312
        %p1314 = scmp.lt.s32.totalorder %s57, 1
        %s1315 = scalar_select %p1314, %s57, 1
        %s1316 = scalar_lea.vmem %s22, %s1315
        %p1317 = scmp.lt.s32.totalorder %s57, 1
        %s1318 = scalar_select %p1317, %s57, 1
        %s1319 = scalar_lea.vmem %s23, %s1318
        %p1321 = scmp.eq.s32.totalorder %s57, 0
        // Predicated region
        $region153: #{_lambda_.3} parent=123 // pred_check
          %p1322 = pneg %p1321
        $region154: #{_lambda_.3} parent=123 // pred_check_branch
          %1324 = sbr.rel (%p1322) target = $region156
        $region155: #{_lambda_.3} parent=123 // pred_region
          %v1325 = vld [vmem:[%s1261] sm:$0xff]
          %1326 = vst [vmem:[#allocation2] sm:$0xff] %v1325
        $region156: #{_lambda_.3} parent=123 // pred_fallthru
          _
        %v1327 = vld [vmem:[#allocation2] sm:$0xff]
        %v1328 = vld [vmem:[%s1265] sm:$0xff]
        %v1329 = vpack.c.bf16 %v1327, %v1327
        %v1330 = vld [vmem:[%s1277] sm:$0xff]
        %v1331 = vld [vmem:[%s1277 + $0x8] sm:$0xf]
        %v1332 = vld [vmem:[%s1277 + $0xc] sm:$0xff]
        %v1333 = vld [vmem:[%s1277 + $0x14] sm:$0xf]
        %v1334 = vld [vmem:[%s1277 + $0x18] sm:$0xff]
        %v1335 = vld [vmem:[%s1277 + $0x20] sm:$0xf]
        %v1336 = vld [vmem:[%s1277 + $0x24] sm:$0xff]
        %v1337 = vld [vmem:[%s1277 + $0x2c] sm:$0xf]
        %v1338 = vld [vmem:[%s1277 + $0x30] sm:$0xff]
        %v1339 = vld [vmem:[%s1277 + $0x38] sm:$0xf]
        %v1340 = vld [vmem:[%s1277 + $0x3c] sm:$0xff]
        %v1341 = vld [vmem:[%s1277 + $0x44] sm:$0xf]
        %v1342 = vld [vmem:[%s1277 + $0x48] sm:$0xff]
        %v1343 = vld [vmem:[%s1277 + $0x50] sm:$0xf]
        %v1344 = vld [vmem:[%s1277 + $0x54] sm:$0xff]
        %v1345 = vld [vmem:[%s1277 + $0x5c] sm:$0xf]
        %v1346 = vld [vmem:[%s1277 + $0x60] sm:$0xff]
        %v1347 = vld [vmem:[%s1277 + $0x68] sm:$0xf]
        %v1348 = vld [vmem:[%s1277 + $0x6c] sm:$0xff]
        %v1349 = vld [vmem:[%s1277 + $0x74] sm:$0xf]
        %v1350 = vld [vmem:[%s1277 + $0x78] sm:$0xff]
        %v1351 = vld [vmem:[%s1277 + $0x80] sm:$0xf]
        %v1352 = vld [vmem:[%s1277 + $0x84] sm:$0xff]
        %v1353 = vld [vmem:[%s1277 + $0x8c] sm:$0xf]
        %v1354 = vld [vmem:[%s1277 + $0x90] sm:$0xff]
        %v1355 = vld [vmem:[%s1277 + $0x98] sm:$0xf]
        %v1356 = vld [vmem:[%s1277 + $0x9c] sm:$0xff]
        %v1357 = vld [vmem:[%s1277 + $0xa4] sm:$0xf]
        %v1358 = vld [vmem:[%s1277 + $0xa8] sm:$0xff]
        %v1359 = vld [vmem:[%s1277 + $0xb0] sm:$0xf]
        %v1360 = vld [vmem:[%s1277 + $0xb4] sm:$0xff]
        %v1361 = vld [vmem:[%s1277 + $0xbc] sm:$0xf]
        %v1362 = vld [vmem:[%s1281] sm:$0x7]
        %v1364 = vperm.slane %v1362, 0
        %v1365 = vperm.slane %v1362, 1
        %v1366 = vperm.slane %v1362, 2
        %v1402 = vunpack.c.l.b16 %v1330
        %v1403 = vunpack.c.h.b16 %v1330
        %v1404 = vunpack.c.l.b16 %v1331
        %v1405 = vunpack.c.l.b16 %v1332
        %v1406 = vunpack.c.h.b16 %v1332
        %v1407 = vunpack.c.l.b16 %v1333
        %v1408 = vunpack.c.l.b16 %v1334
        %v1409 = vunpack.c.h.b16 %v1334
        %v1410 = vunpack.c.l.b16 %v1335
        %v1411 = vunpack.c.l.b16 %v1336
        %v1412 = vunpack.c.h.b16 %v1336
        %v1413 = vunpack.c.l.b16 %v1337
        %v1414 = vunpack.c.l.b16 %v1338
        %v1415 = vunpack.c.h.b16 %v1338
        %v1416 = vunpack.c.l.b16 %v1339
        %v1417 = vunpack.c.l.b16 %v1340
        %v1418 = vunpack.c.h.b16 %v1340
        %v1419 = vunpack.c.l.b16 %v1341
        %v1420 = vunpack.c.l.b16 %v1342
        %v1421 = vunpack.c.h.b16 %v1342
        %v1422 = vunpack.c.l.b16 %v1343
        %v1423 = vunpack.c.l.b16 %v1344
        %v1424 = vunpack.c.h.b16 %v1344
        %v1425 = vunpack.c.l.b16 %v1345
        %v1426 = vunpack.c.l.b16 %v1346
        %v1427 = vunpack.c.h.b16 %v1346
        %v1428 = vunpack.c.l.b16 %v1347
        %v1429 = vunpack.c.l.b16 %v1348
        %v1430 = vunpack.c.h.b16 %v1348
        %v1431 = vunpack.c.l.b16 %v1349
        %v1432 = vunpack.c.l.b16 %v1350
        %v1433 = vunpack.c.h.b16 %v1350
        %v1434 = vunpack.c.l.b16 %v1351
        %v1435 = vunpack.c.l.b16 %v1352
        %v1436 = vunpack.c.h.b16 %v1352
        %v1437 = vunpack.c.l.b16 %v1353
        %v1438 = vunpack.c.l.b16 %v1354
        %v1439 = vunpack.c.h.b16 %v1354
        %v1440 = vunpack.c.l.b16 %v1355
        %v1441 = vunpack.c.l.b16 %v1356
        %v1442 = vunpack.c.h.b16 %v1356
        %v1443 = vunpack.c.l.b16 %v1357
        %v1444 = vunpack.c.l.b16 %v1358
        %v1445 = vunpack.c.h.b16 %v1358
        %v1446 = vunpack.c.l.b16 %v1359
        %v1447 = vunpack.c.l.b16 %v1360
        %v1448 = vunpack.c.h.b16 %v1360
        %v1449 = vunpack.c.l.b16 %v1361
        %v1450 = vpack.c.b16 %v1405, %v1402
        %v1451 = vpack.c.b16 %v1406, %v1403
        %v1452 = vpack.c.b16 %v1407, %v1404
        %v1453 = vpack.c.b16 %v1411, %v1408
        %v1454 = vpack.c.b16 %v1412, %v1409
        %v1455 = vpack.c.b16 %v1413, %v1410
        %v1456 = vpack.c.b16 %v1417, %v1414
        %v1457 = vpack.c.b16 %v1418, %v1415
        %v1458 = vpack.c.b16 %v1419, %v1416
        %v1459 = vpack.c.b16 %v1423, %v1420
        %v1460 = vpack.c.b16 %v1424, %v1421
        %v1461 = vpack.c.b16 %v1425, %v1422
        %v1462 = vpack.c.b16 %v1429, %v1426
        %v1463 = vpack.c.b16 %v1430, %v1427
        %v1464 = vpack.c.b16 %v1431, %v1428
        %v1465 = vpack.c.b16 %v1435, %v1432
        %v1466 = vpack.c.b16 %v1436, %v1433
        %v1467 = vpack.c.b16 %v1437, %v1434
        %v1468 = vpack.c.b16 %v1441, %v1438
        %v1469 = vpack.c.b16 %v1442, %v1439
        %v1470 = vpack.c.b16 %v1443, %v1440
        %v1471 = vpack.c.b16 %v1447, %v1444
        %v1472 = vpack.c.b16 %v1448, %v1445
        %v1473 = vpack.c.b16 %v1449, %v1446
        %1498 = vmatpush.bf16.msra.mxu0 %v1471
        %1499 = vmatpush.bf16.msra.mxu0 %v1468
        %1500 = vmatpush.bf16.msra.mxu0 %v1465
        %1501 = vmatpush.bf16.msra.mxu0 %v1462
        %1502 = vmatpush.bf16.msra.mxu0 %v1459
        %1503 = vmatpush.bf16.msra.mxu0 %v1456
        %1504 = vmatpush.bf16.msra.mxu0 %v1453
        %1505 = vmatpush.bf16.msra.mxu0 %v1450
        %1506 = vmatmul.bf16.gmra.mxu0 %v1329
        %v1507 = vpop.f32.mrf.mxu0
        %v1508 = vadd.f32 %v1364, %v1507
        %v1509 = vpop.f32.mrf.mxu0
        %1510 = vdwg.mxu0
        %1511 = vmatpush.bf16.msra.mxu0 %v1472
        %1512 = vmatpush.bf16.msra.mxu0 %v1469
        %1513 = vmatpush.bf16.msra.mxu0 %v1466
        %1514 = vmatpush.bf16.msra.mxu0 %v1463
        %1515 = vmatpush.bf16.msra.mxu0 %v1460
        %1516 = vmatpush.bf16.msra.mxu0 %v1457
        %1517 = vmatpush.bf16.msra.mxu0 %v1454
        %1518 = vmatpush.bf16.msra.mxu0 %v1451
        %1519 = vmatmul.bf16.gmra.mxu0 %v1329
        %v1520 = vpop.f32.mrf.mxu0
        %v1521 = vadd.f32 %v1365, %v1520
        %v1522 = vpop.f32.mrf.mxu0
        %1523 = vdwg.mxu0
        %1524 = vmatpush.bf16.msra.mxu0 %v1473
        %1525 = vmatpush.bf16.msra.mxu0 %v1470
        %1526 = vmatpush.bf16.msra.mxu0 %v1467
        %1527 = vmatpush.bf16.msra.mxu0 %v1464
        %1528 = vmatpush.bf16.msra.mxu0 %v1461
        %1529 = vmatpush.bf16.msra.mxu0 %v1458
        %1530 = vmatpush.bf16.msra.mxu0 %v1455
        %1531 = vmatpush.bf16.msra.mxu0 %v1452
        %1532 = vmatmul.bf16.gmra.mxu0 %v1329
        %v1533 = vpop.f32.mrf.mxu0
        %v1534 = vadd.f32 %v1366, %v1533
        %v1535 = vpop.f32.mrf.mxu0
        %1536 = vdwg.mxu0
        %v1537 = vld [vmem:[%s1269] sm:$0xff]
        %v1538 = vpack.c.bf16 %v1508, %v1508
        %v1539 = vpack.c.bf16 %v1521, %v1521
        %v1540 = vpack.c.bf16 %v1534, %v1534
        %vm1541 = vcmask 261120
        %v1543 = vsel %vm1541, %v1538, 0
        %v1546 = vsel %vm1541, %v1539, 0
        %1548 = vmatpush.bf16.xpose.msra.mxu0 0
        %1549 = vmatpush.bf16.xpose.msra.mxu0 0
        %1550 = vmatpush.bf16.xpose.msra.mxu0 0
        %1551 = vmatpush.bf16.xpose.msra.mxu0 0
        %1552 = vmatpush.bf16.xpose.msra.mxu0 0
        %1553 = vmatpush.bf16.xpose.msra.mxu0 0
        %1554 = vmatpush.bf16.xpose.msra.mxu0 0
        %1555 = vmatpush.bf16.xpose.msra.mxu0 %v1546
        %1556 = vmatmul.bf16.gmra.mxu0 %v1543
        %v1557 = vpop.f32.mrf.mxu0
        %v1558 = vadd.f32 0.0, %v1557
        %v1559 = vpop.f32.mrf.mxu0
        %1560 = vdwg.mxu0
        %v1561 = vmul.f32 %v1558, 0.17677669
        %v1562 = vadd.f32 %v1561, %v1537
        %vm1563 = vcmask 64512
        %v1564 = vsel %vm1563, %v1562, -inf
        %1565 = vmax.xlane.f32.xlu0 %v1564
        %v1566 = vpop.xlane.xlu0 %1565
        %v1567 = vsub.f32 %v1562, %v1566
        %v1568 = vmul.f32 %v1567, 1.442695
        %v1569 = vpow.pop %v1568
        %v1570 = vsel %vm1563, %v1569, 0.0
        %1571 = vadd.xlane.f32.xlu0 %v1570
        %v1572 = vpop.xlane.xlu0 %1571
        %v1573 = vrcp.pop %v1572
        %v1574 = vmul.f32 %v1569, %v1573
        %v1575 = vpack.c.bf16 %v1574, %v1574
        %v1577 = vsel %vm1563, %v1575, 0
        %vm1579 = vcmask 1043456
        %v1581 = vsel %vm1579, %v1540, 0
        %1583 = vmatpush.bf16.msra.mxu0 0
        %1584 = vmatpush.bf16.msra.mxu0 0
        %1585 = vmatpush.bf16.msra.mxu0 0
        %1586 = vmatpush.bf16.msra.mxu0 0
        %1587 = vmatpush.bf16.msra.mxu0 0
        %1588 = vmatpush.bf16.msra.mxu0 0
        %1589 = vmatpush.bf16.msra.mxu0 0
        %1590 = vmatpush.bf16.msra.mxu0 %v1581
        %1591 = vmatmul.bf16.gmra.mxu0 %v1577
        %v1592 = vpop.f32.mrf.mxu0
        %v1593 = vadd.f32 0.0, %v1592
        %v1594 = vpop.f32.mrf.mxu0
        %1595 = vdwg.mxu0
        %1597 = vrot.lane.b32.xlu0 %v1538, 96
        %v1598 = vpop.permute.xlu0 %1597
        %1600 = vrot.lane.b32.xlu0 %v1539, 96
        %v1601 = vpop.permute.xlu0 %1600
        %v1603 = vsel %vm1541, %v1598, 0
        %v1606 = vsel %vm1541, %v1601, 0
        %1608 = vmatpush.bf16.xpose.msra.mxu0 0
        %1609 = vmatpush.bf16.xpose.msra.mxu0 0
        %1610 = vmatpush.bf16.xpose.msra.mxu0 0
        %1611 = vmatpush.bf16.xpose.msra.mxu0 0
        %1612 = vmatpush.bf16.xpose.msra.mxu0 0
        %1613 = vmatpush.bf16.xpose.msra.mxu0 0
        %1614 = vmatpush.bf16.xpose.msra.mxu0 0
        %1615 = vmatpush.bf16.xpose.msra.mxu0 %v1606
        %1616 = vmatmul.bf16.gmra.mxu0 %v1603
        %v1617 = vpop.f32.mrf.mxu0
        %v1618 = vadd.f32 0.0, %v1617
        %v1619 = vpop.f32.mrf.mxu0
        %1620 = vdwg.mxu0
        %v1621 = vmul.f32 %v1618, 0.17677669
        %v1622 = vadd.f32 %v1621, %v1537
        %v1623 = vsel %vm1563, %v1622, -inf
        %1624 = vmax.xlane.f32.xlu0 %v1623
        %v1625 = vpop.xlane.xlu0 %1624
        %v1626 = vsub.f32 %v1622, %v1625
        %v1627 = vmul.f32 %v1626, 1.442695
        %v1628 = vpow.pop %v1627
        %v1629 = vsel %vm1563, %v1628, 0.0
        %1630 = vadd.xlane.f32.xlu0 %v1629
        %v1631 = vpop.xlane.xlu0 %1630
        %v1632 = vrcp.pop %v1631
        %v1633 = vmul.f32 %v1628, %v1632
        %v1634 = vpack.c.bf16 %v1633, %v1633
        %1636 = vrot.lane.b32.xlu0 %v1540, 96
        %v1637 = vpop.permute.xlu0 %1636
        %v1639 = vsel %vm1563, %v1634, 0
        %v1642 = vsel %vm1579, %v1637, 0
        %1644 = vmatpush.bf16.msra.mxu0 0
        %1645 = vmatpush.bf16.msra.mxu0 0
        %1646 = vmatpush.bf16.msra.mxu0 0
        %1647 = vmatpush.bf16.msra.mxu0 0
        %1648 = vmatpush.bf16.msra.mxu0 0
        %1649 = vmatpush.bf16.msra.mxu0 0
        %1650 = vmatpush.bf16.msra.mxu0 0
        %1651 = vmatpush.bf16.msra.mxu0 %v1642
        %1652 = vmatmul.bf16.gmra.mxu0 %v1639
        %v1653 = vpop.f32.mrf.mxu0
        %v1654 = vadd.f32 0.0, %v1653
        %v1655 = vpop.f32.mrf.mxu0
        %1656 = vdwg.mxu0
        %1657 = vrot.lane.b32.xlu0 %v1538, 64
        %v1658 = vpop.permute.xlu0 %1657
        %1659 = vrot.lane.b32.xlu0 %v1539, 64
        %v1660 = vpop.permute.xlu0 %1659
        %v1662 = vsel %vm1541, %v1658, 0
        %v1665 = vsel %vm1541, %v1660, 0
        %1667 = vmatpush.bf16.xpose.msra.mxu0 0
        %1668 = vmatpush.bf16.xpose.msra.mxu0 0
        %1669 = vmatpush.bf16.xpose.msra.mxu0 0
        %1670 = vmatpush.bf16.xpose.msra.mxu0 0
        %1671 = vmatpush.bf16.xpose.msra.mxu0 0
        %1672 = vmatpush.bf16.xpose.msra.mxu0 0
        %1673 = vmatpush.bf16.xpose.msra.mxu0 0
        %1674 = vmatpush.bf16.xpose.msra.mxu0 %v1665
        %1675 = vmatmul.bf16.gmra.mxu0 %v1662
        %v1676 = vpop.f32.mrf.mxu0
        %v1677 = vadd.f32 0.0, %v1676
        %v1678 = vpop.f32.mrf.mxu0
        %1679 = vdwg.mxu0
        %v1680 = vmul.f32 %v1677, 0.17677669
        %v1681 = vadd.f32 %v1680, %v1537
        %v1682 = vsel %vm1563, %v1681, -inf
        %1683 = vmax.xlane.f32.xlu0 %v1682
        %v1684 = vpop.xlane.xlu0 %1683
        %v1685 = vsub.f32 %v1681, %v1684
        %v1686 = vmul.f32 %v1685, 1.442695
        %v1687 = vpow.pop %v1686
        %v1688 = vsel %vm1563, %v1687, 0.0
        %1689 = vadd.xlane.f32.xlu0 %v1688
        %v1690 = vpop.xlane.xlu0 %1689
        %v1691 = vrcp.pop %v1690
        %v1692 = vmul.f32 %v1687, %v1691
        %v1693 = vpack.c.bf16 %v1692, %v1692
        %1694 = vrot.lane.b32.xlu0 %v1540, 64
        %v1695 = vpop.permute.xlu0 %1694
        %v1697 = vsel %vm1563, %v1693, 0
        %v1700 = vsel %vm1579, %v1695, 0
        %1702 = vmatpush.bf16.msra.mxu0 0
        %1703 = vmatpush.bf16.msra.mxu0 0
        %1704 = vmatpush.bf16.msra.mxu0 0
        %1705 = vmatpush.bf16.msra.mxu0 0
        %1706 = vmatpush.bf16.msra.mxu0 0
        %1707 = vmatpush.bf16.msra.mxu0 0
        %1708 = vmatpush.bf16.msra.mxu0 0
        %1709 = vmatpush.bf16.msra.mxu0 %v1700
        %1710 = vmatmul.bf16.gmra.mxu0 %v1697
        %v1711 = vpop.f32.mrf.mxu0
        %v1712 = vadd.f32 0.0, %v1711
        %v1713 = vpop.f32.mrf.mxu0
        %1714 = vdwg.mxu0
        %1715 = vrot.lane.b32.xlu0 %v1538, 32
        %v1716 = vpop.permute.xlu0 %1715
        %1717 = vrot.lane.b32.xlu0 %v1539, 32
        %v1718 = vpop.permute.xlu0 %1717
        %v1720 = vsel %vm1541, %v1716, 0
        %v1723 = vsel %vm1541, %v1718, 0
        %1725 = vmatpush.bf16.xpose.msra.mxu0 0
        %1726 = vmatpush.bf16.xpose.msra.mxu0 0
        %1727 = vmatpush.bf16.xpose.msra.mxu0 0
        %1728 = vmatpush.bf16.xpose.msra.mxu0 0
        %1729 = vmatpush.bf16.xpose.msra.mxu0 0
        %1730 = vmatpush.bf16.xpose.msra.mxu0 0
        %1731 = vmatpush.bf16.xpose.msra.mxu0 0
        %1732 = vmatpush.bf16.xpose.msra.mxu0 %v1723
        %1733 = vmatmul.bf16.gmra.mxu0 %v1720
        %v1734 = vpop.f32.mrf.mxu0
        %v1735 = vadd.f32 0.0, %v1734
        %v1736 = vpop.f32.mrf.mxu0
        %1737 = vdwg.mxu0
        %v1738 = vmul.f32 %v1735, 0.17677669
        %v1739 = vadd.f32 %v1738, %v1537
        %v1740 = vsel %vm1563, %v1739, -inf
        %1741 = vmax.xlane.f32.xlu0 %v1740
        %v1742 = vpop.xlane.xlu0 %1741
        %v1743 = vsub.f32 %v1739, %v1742
        %v1744 = vmul.f32 %v1743, 1.442695
        %v1745 = vpow.pop %v1744
        %v1746 = vsel %vm1563, %v1745, 0.0
        %1747 = vadd.xlane.f32.xlu0 %v1746
        %v1748 = vpop.xlane.xlu0 %1747
        %v1749 = vrcp.pop %v1748
        %v1750 = vmul.f32 %v1745, %v1749
        %v1751 = vpack.c.bf16 %v1750, %v1750
        %1752 = vrot.lane.b32.xlu0 %v1540, 32
        %v1753 = vpop.permute.xlu0 %1752
        %v1755 = vsel %vm1563, %v1751, 0
        %v1758 = vsel %vm1579, %v1753, 0
        %1760 = vmatpush.bf16.msra.mxu0 0
        %1761 = vmatpush.bf16.msra.mxu0 0
        %1762 = vmatpush.bf16.msra.mxu0 0
        %1763 = vmatpush.bf16.msra.mxu0 0
        %1764 = vmatpush.bf16.msra.mxu0 0
        %1765 = vmatpush.bf16.msra.mxu0 0
        %1766 = vmatpush.bf16.msra.mxu0 0
        %1767 = vmatpush.bf16.msra.mxu0 %v1758
        %1768 = vmatmul.bf16.gmra.mxu0 %v1755
        %v1769 = vpop.f32.mrf.mxu0
        %v1770 = vadd.f32 0.0, %v1769
        %v1771 = vpop.f32.mrf.mxu0
        %1772 = vdwg.mxu0
        %1774 = vrot.lane.b32.xlu0 %v1654, 32
        %v1775 = vpop.permute.xlu0 %1774
        %1778 = vrot.lane.b32.xlu0 %v1712, 64
        %v1779 = vpop.permute.xlu0 %1778
        %1782 = vrot.lane.b32.xlu0 %v1770, 96
        %v1783 = vpop.permute.xlu0 %1782
        %v1785 = vsel %vm1541, %v1593, %v1775
        %vm1786 = vcmask 523264
        %v1787 = vsel %vm1786, %v1785, %v1779
        %vm1788 = vcmask 785408
        %v1789 = vsel %vm1788, %v1787, %v1783
        %v1790 = vpack.c.bf16 %v1789, %v1789
        %v1791 = vld [vmem:[%s1046] sm:$0xf]
        %v1792 = vld [vmem:[%s1046 + $0x4] sm:$0xf]
        %v1793 = vld [vmem:[%s1046 + $0x8] sm:$0xf]
        %v1794 = vld [vmem:[%s1046 + $0xc] sm:$0xf]
        %v1795 = vld [vmem:[%s1046 + $0x10] sm:$0xf]
        %v1796 = vld [vmem:[%s1046 + $0x14] sm:$0xf]
        %v1797 = vld [vmem:[%s1046 + $0x18] sm:$0xf]
        %v1798 = vld [vmem:[%s1046 + $0x1c] sm:$0xf]
        %v1799 = vld [vmem:[%s1046 + $0x20] sm:$0xf]
        %v1800 = vld [vmem:[%s1046 + $0x24] sm:$0xf]
        %v1801 = vld [vmem:[%s1046 + $0x28] sm:$0xf]
        %v1802 = vld [vmem:[%s1046 + $0x2c] sm:$0xf]
        %v1803 = vld [vmem:[%s1046 + $0x30] sm:$0xf]
        %v1804 = vld [vmem:[%s1046 + $0x34] sm:$0xf]
        %v1805 = vld [vmem:[%s1046 + $0x38] sm:$0xf]
        %v1806 = vld [vmem:[%s1046 + $0x3c] sm:$0xf]
        %v1807 = vld [vmem:[%s1284] sm:$0x1]
        %v1809 = vperm.slane %v1807, 0
        %v1827 = vunpack.c.l.b16 %v1791
        %v1828 = vunpack.c.l.b16 %v1792
        %v1829 = vunpack.c.l.b16 %v1793
        %v1830 = vunpack.c.l.b16 %v1794
        %v1831 = vunpack.c.l.b16 %v1795
        %v1832 = vunpack.c.l.b16 %v1796
        %v1833 = vunpack.c.l.b16 %v1797
        %v1834 = vunpack.c.l.b16 %v1798
        %v1835 = vunpack.c.l.b16 %v1799
        %v1836 = vunpack.c.l.b16 %v1800
        %v1837 = vunpack.c.l.b16 %v1801
        %v1838 = vunpack.c.l.b16 %v1802
        %v1839 = vunpack.c.l.b16 %v1803
        %v1840 = vunpack.c.l.b16 %v1804
        %v1841 = vunpack.c.l.b16 %v1805
        %v1842 = vunpack.c.l.b16 %v1806
        %v1843 = vpack.c.b16 %v1828, %v1827
        %v1844 = vpack.c.b16 %v1830, %v1829
        %v1845 = vpack.c.b16 %v1832, %v1831
        %v1846 = vpack.c.b16 %v1834, %v1833
        %v1847 = vpack.c.b16 %v1836, %v1835
        %v1848 = vpack.c.b16 %v1838, %v1837
        %v1849 = vpack.c.b16 %v1840, %v1839
        %v1850 = vpack.c.b16 %v1842, %v1841
        %1859 = vmatpush.bf16.msra.mxu0 %v1850
        %1860 = vmatpush.bf16.msra.mxu0 %v1849
        %1861 = vmatpush.bf16.msra.mxu0 %v1848
        %1862 = vmatpush.bf16.msra.mxu0 %v1847
        %1863 = vmatpush.bf16.msra.mxu0 %v1846
        %1864 = vmatpush.bf16.msra.mxu0 %v1845
        %1865 = vmatpush.bf16.msra.mxu0 %v1844
        %1866 = vmatpush.bf16.msra.mxu0 %v1843
        %1867 = vmatmul.bf16.gmra.mxu0 %v1790
        %v1868 = vpop.f32.mrf.mxu0
        %v1869 = vadd.f32 %v1809, %v1868
        %v1870 = vpop.f32.mrf.mxu0
        %1871 = vdwg.mxu0
        %v1872 = vadd.f32 %v1327, %v1869
        %v1873 = vld [vmem:[%s1287] sm:$0x1]
        %v1874 = vld [vmem:[%s1290] sm:$0x1]
        %1875 = vadd.xlane.f32.xlu0 %v1872
        %v1876 = vpop.xlane.xlu0 %1875
        %v1877 = vrcp.pop 128.0
        %v1878 = vmul.f32 128.0, %v1877
        %v1879 = vsub.f32 1.0, %v1878
        %v1880 = vmul.f32 %v1877, %v1879
        %v1881 = vadd.f32 %v1877, %v1880
        %vm1882 = vweird.f32 %v1877
        %v1883 = vsel %vm1882, %v1877, %v1881
        %v1884 = vmul.f32 %v1876, %v1883
        %v1885 = vsub.f32 %v1872, %v1884
        %v1886 = vmul.f32 %v1885, %v1885
        %1887 = vadd.xlane.f32.xlu0 %v1886
        %v1888 = vpop.xlane.xlu0 %1887
        %v1889 = vmul.f32 %v1888, %v1883
        %v1890 = vadd.f32 %v1889, 1e-05
        %v1891 = vrsqrt.pop %v1890
        %v1892 = vmul.f32 %v1891, %v1890
        %v1893 = vmul.f32 %v1892, %v1891
        %v1894 = vmul.f32 0.5, %v1893
        %v1895 = vsub.f32 1.5, %v1894
        %v1896 = vmul.f32 %v1891, %v1895
        %vm1897 = vweird.f32 %v1890
        %vm1898 = vweird.f32 %v1891
        %vm1899 = vmor %vm1897, %vm1898
        %v1900 = vsel %vm1899, %v1891, %v1896
        %v1901 = vmul.f32 %v1885, %v1900
        %v1903 = vperm.slane %v1873, 0
        %v1905 = vmul.f32 %v1901, %v1903
        %v1907 = vperm.slane %v1874, 0
        %v1909 = vadd.f32 %v1905, %v1907
        %v1910 = vpack.c.bf16 %v1909, %v1909
        %v1911 = vld [vmem:[%s1056] sm:$0xf]
        %v1912 = vld [vmem:[%s1056 + $0x4] sm:$0xf]
        %v1913 = vld [vmem:[%s1056 + $0x8] sm:$0xf]
        %v1914 = vld [vmem:[%s1056 + $0xc] sm:$0xf]
        %v1915 = vld [vmem:[%s1056 + $0x10] sm:$0xf]
        %v1916 = vld [vmem:[%s1056 + $0x14] sm:$0xf]
        %v1917 = vld [vmem:[%s1056 + $0x18] sm:$0xf]
        %v1918 = vld [vmem:[%s1056 + $0x1c] sm:$0xf]
        %v1919 = vld [vmem:[%s1056 + $0x20] sm:$0xf]
        %v1920 = vld [vmem:[%s1056 + $0x24] sm:$0xf]
        %v1921 = vld [vmem:[%s1056 + $0x28] sm:$0xf]
        %v1922 = vld [vmem:[%s1056 + $0x2c] sm:$0xf]
        %v1923 = vld [vmem:[%s1056 + $0x30] sm:$0xf]
        %v1924 = vld [vmem:[%s1056 + $0x34] sm:$0xf]
        %v1925 = vld [vmem:[%s1056 + $0x38] sm:$0xf]
        %v1926 = vld [vmem:[%s1056 + $0x3c] sm:$0xf]
        %v1927 = vld [vmem:[%s1293] sm:$0x1]
        %v1929 = vperm.slane %v1927, 0
        %v1947 = vunpack.c.l.b16 %v1911
        %v1948 = vunpack.c.l.b16 %v1912
        %v1949 = vunpack.c.l.b16 %v1913
        %v1950 = vunpack.c.l.b16 %v1914
        %v1951 = vunpack.c.l.b16 %v1915
        %v1952 = vunpack.c.l.b16 %v1916
        %v1953 = vunpack.c.l.b16 %v1917
        %v1954 = vunpack.c.l.b16 %v1918
        %v1955 = vunpack.c.l.b16 %v1919
        %v1956 = vunpack.c.l.b16 %v1920
        %v1957 = vunpack.c.l.b16 %v1921
        %v1958 = vunpack.c.l.b16 %v1922
        %v1959 = vunpack.c.l.b16 %v1923
        %v1960 = vunpack.c.l.b16 %v1924
        %v1961 = vunpack.c.l.b16 %v1925
        %v1962 = vunpack.c.l.b16 %v1926
        %v1963 = vpack.c.b16 %v1948, %v1947
        %v1964 = vpack.c.b16 %v1950, %v1949
        %v1965 = vpack.c.b16 %v1952, %v1951
        %v1966 = vpack.c.b16 %v1954, %v1953
        %v1967 = vpack.c.b16 %v1956, %v1955
        %v1968 = vpack.c.b16 %v1958, %v1957
        %v1969 = vpack.c.b16 %v1960, %v1959
        %v1970 = vpack.c.b16 %v1962, %v1961
        %1979 = vmatpush.bf16.msra.mxu0 %v1970
        %1980 = vmatpush.bf16.msra.mxu0 %v1969
        %1981 = vmatpush.bf16.msra.mxu0 %v1968
        %1982 = vmatpush.bf16.msra.mxu0 %v1967
        %1983 = vmatpush.bf16.msra.mxu0 %v1966
        %1984 = vmatpush.bf16.msra.mxu0 %v1965
        %1985 = vmatpush.bf16.msra.mxu0 %v1964
        %1986 = vmatpush.bf16.msra.mxu0 %v1963
        %1987 = vmatmul.bf16.gmra.mxu0 %v1910
        %v1988 = vpop.f32.mrf.mxu0
        %v1989 = vadd.f32 %v1929, %v1988
        %v1990 = vpop.f32.mrf.mxu0
        %1991 = vdwg.mxu0
        %v1992 = vpack.c.bf16 %v1328, %v1328
        %v1993 = vld [vmem:[%s1066] sm:$0xff]
        %v1994 = vld [vmem:[%s1066 + $0x8] sm:$0xff]
        %v1995 = vld [vmem:[%s1066 + $0x10] sm:$0xff]
        %v1996 = vld [vmem:[%s1066 + $0x18] sm:$0xff]
        %v1997 = vld [vmem:[%s1066 + $0x20] sm:$0xff]
        %v1998 = vld [vmem:[%s1066 + $0x28] sm:$0xff]
        %v1999 = vld [vmem:[%s1066 + $0x30] sm:$0xff]
        %v2000 = vld [vmem:[%s1066 + $0x38] sm:$0xff]
        %v2001 = vld [vmem:[%s1066 + $0x40] sm:$0xff]
        %v2002 = vld [vmem:[%s1066 + $0x48] sm:$0xff]
        %v2003 = vld [vmem:[%s1066 + $0x50] sm:$0xff]
        %v2004 = vld [vmem:[%s1066 + $0x58] sm:$0xff]
        %v2005 = vld [vmem:[%s1066 + $0x60] sm:$0xff]
        %v2006 = vld [vmem:[%s1066 + $0x68] sm:$0xff]
        %v2007 = vld [vmem:[%s1066 + $0x70] sm:$0xff]
        %v2008 = vld [vmem:[%s1066 + $0x78] sm:$0xff]
        %v2009 = vld [vmem:[%s1297] sm:$0x3]
        %v2011 = vperm.slane %v2009, 0
        %v2012 = vperm.slane %v2009, 1
        %v2031 = vunpack.c.l.b16 %v1993
        %v2032 = vunpack.c.h.b16 %v1993
        %v2033 = vunpack.c.l.b16 %v1994
        %v2034 = vunpack.c.h.b16 %v1994
        %v2035 = vunpack.c.l.b16 %v1995
        %v2036 = vunpack.c.h.b16 %v1995
        %v2037 = vunpack.c.l.b16 %v1996
        %v2038 = vunpack.c.h.b16 %v1996
        %v2039 = vunpack.c.l.b16 %v1997
        %v2040 = vunpack.c.h.b16 %v1997
        %v2041 = vunpack.c.l.b16 %v1998
        %v2042 = vunpack.c.h.b16 %v1998
        %v2043 = vunpack.c.l.b16 %v1999
        %v2044 = vunpack.c.h.b16 %v1999
        %v2045 = vunpack.c.l.b16 %v2000
        %v2046 = vunpack.c.h.b16 %v2000
        %v2047 = vunpack.c.l.b16 %v2001
        %v2048 = vunpack.c.h.b16 %v2001
        %v2049 = vunpack.c.l.b16 %v2002
        %v2050 = vunpack.c.h.b16 %v2002
        %v2051 = vunpack.c.l.b16 %v2003
        %v2052 = vunpack.c.h.b16 %v2003
        %v2053 = vunpack.c.l.b16 %v2004
        %v2054 = vunpack.c.h.b16 %v2004
        %v2055 = vunpack.c.l.b16 %v2005
        %v2056 = vunpack.c.h.b16 %v2005
        %v2057 = vunpack.c.l.b16 %v2006
        %v2058 = vunpack.c.h.b16 %v2006
        %v2059 = vunpack.c.l.b16 %v2007
        %v2060 = vunpack.c.h.b16 %v2007
        %v2061 = vunpack.c.l.b16 %v2008
        %v2062 = vunpack.c.h.b16 %v2008
        %v2063 = vpack.c.b16 %v2033, %v2031
        %v2064 = vpack.c.b16 %v2034, %v2032
        %v2065 = vpack.c.b16 %v2037, %v2035
        %v2066 = vpack.c.b16 %v2038, %v2036
        %v2067 = vpack.c.b16 %v2041, %v2039
        %v2068 = vpack.c.b16 %v2042, %v2040
        %v2069 = vpack.c.b16 %v2045, %v2043
        %v2070 = vpack.c.b16 %v2046, %v2044
        %v2071 = vpack.c.b16 %v2049, %v2047
        %v2072 = vpack.c.b16 %v2050, %v2048
        %v2073 = vpack.c.b16 %v2053, %v2051
        %v2074 = vpack.c.b16 %v2054, %v2052
        %v2075 = vpack.c.b16 %v2057, %v2055
        %v2076 = vpack.c.b16 %v2058, %v2056
        %v2077 = vpack.c.b16 %v2061, %v2059
        %v2078 = vpack.c.b16 %v2062, %v2060
        %2095 = vmatpush.bf16.msra.mxu0 %v2077
        %2096 = vmatpush.bf16.msra.mxu0 %v2075
        %2097 = vmatpush.bf16.msra.mxu0 %v2073
        %2098 = vmatpush.bf16.msra.mxu0 %v2071
        %2099 = vmatpush.bf16.msra.mxu0 %v2069
        %2100 = vmatpush.bf16.msra.mxu0 %v2067
        %2101 = vmatpush.bf16.msra.mxu0 %v2065
        %2102 = vmatpush.bf16.msra.mxu0 %v2063
        %2103 = vmatmul.bf16.gmra.mxu0 %v1992
        %v2104 = vpop.f32.mrf.mxu0
        %v2105 = vadd.f32 %v2011, %v2104
        %v2106 = vpop.f32.mrf.mxu0
        %2107 = vdwg.mxu0
        %2108 = vmatpush.bf16.msra.mxu0 %v2078
        %2109 = vmatpush.bf16.msra.mxu0 %v2076
        %2110 = vmatpush.bf16.msra.mxu0 %v2074
        %2111 = vmatpush.bf16.msra.mxu0 %v2072
        %2112 = vmatpush.bf16.msra.mxu0 %v2070
        %2113 = vmatpush.bf16.msra.mxu0 %v2068
        %2114 = vmatpush.bf16.msra.mxu0 %v2066
        %2115 = vmatpush.bf16.msra.mxu0 %v2064
        %2116 = vmatmul.bf16.gmra.mxu0 %v1992
        %v2117 = vpop.f32.mrf.mxu0
        %v2118 = vadd.f32 %v2012, %v2117
        %v2119 = vpop.f32.mrf.mxu0
        %2120 = vdwg.mxu0
        %v2121 = vld [vmem:[%s1272] sm:$0x1]
        %v2122 = vpack.c.bf16 %v1989, %v1989
        %v2123 = vpack.c.bf16 %v2105, %v2105
        %v2124 = vpack.c.bf16 %v2118, %v2118
        %v2126 = vsel %vm1541, %v2122, 0
        %v2129 = vsel %vm1541, %v2123, 0
        %2131 = vmatpush.bf16.xpose.msra.mxu0 0
        %2132 = vmatpush.bf16.xpose.msra.mxu0 0
        %2133 = vmatpush.bf16.xpose.msra.mxu0 0
        %2134 = vmatpush.bf16.xpose.msra.mxu0 0
        %2135 = vmatpush.bf16.xpose.msra.mxu0 0
        %2136 = vmatpush.bf16.xpose.msra.mxu0 0
        %2137 = vmatpush.bf16.xpose.msra.mxu0 0
        %2138 = vmatpush.bf16.xpose.msra.mxu0 %v2129
        %2139 = vmatmul.bf16.gmra.mxu0 %v2126
        %v2140 = vpop.f32.mrf.mxu0
        %v2141 = vadd.f32 0.0, %v2140
        %v2142 = vpop.f32.mrf.mxu0
        %2143 = vdwg.mxu0
        %v2144 = vmul.f32 %v2141, 0.17677669
        %v2146 = vperm.slane %v2121, 0
        %v2148 = vadd.f32 %v2144, %v2146
        %v2149 = vsel %vm1563, %v2148, -inf
        %2150 = vmax.xlane.f32.xlu0 %v2149
        %v2151 = vpop.xlane.xlu0 %2150
        %v2152 = vsub.f32 %v2148, %v2151
        %v2153 = vmul.f32 %v2152, 1.442695
        %v2154 = vpow.pop %v2153
        %v2155 = vsel %vm1563, %v2154, 0.0
        %2156 = vadd.xlane.f32.xlu0 %v2155
        %v2157 = vpop.xlane.xlu0 %2156
        %v2158 = vrcp.pop %v2157
        %v2159 = vmul.f32 %v2154, %v2158
        %v2160 = vpack.c.bf16 %v2159, %v2159
        %v2162 = vsel %vm1563, %v2160, 0
        %v2165 = vsel %vm1579, %v2124, 0
        %2167 = vmatpush.bf16.msra.mxu0 0
        %2168 = vmatpush.bf16.msra.mxu0 0
        %2169 = vmatpush.bf16.msra.mxu0 0
        %2170 = vmatpush.bf16.msra.mxu0 0
        %2171 = vmatpush.bf16.msra.mxu0 0
        %2172 = vmatpush.bf16.msra.mxu0 0
        %2173 = vmatpush.bf16.msra.mxu0 0
        %2174 = vmatpush.bf16.msra.mxu0 %v2165
        %2175 = vmatmul.bf16.gmra.mxu0 %v2162
        %v2176 = vpop.f32.mrf.mxu0
        %v2177 = vadd.f32 0.0, %v2176
        %v2178 = vpop.f32.mrf.mxu0
        %2179 = vdwg.mxu0
        %2181 = vrot.lane.b32.xlu0 %v2122, 96
        %v2182 = vpop.permute.xlu0 %2181
        %2184 = vrot.lane.b32.xlu0 %v2123, 96
        %v2185 = vpop.permute.xlu0 %2184
        %v2187 = vsel %vm1541, %v2182, 0
        %v2190 = vsel %vm1541, %v2185, 0
        %2192 = vmatpush.bf16.xpose.msra.mxu0 0
        %2193 = vmatpush.bf16.xpose.msra.mxu0 0
        %2194 = vmatpush.bf16.xpose.msra.mxu0 0
        %2195 = vmatpush.bf16.xpose.msra.mxu0 0
        %2196 = vmatpush.bf16.xpose.msra.mxu0 0
        %2197 = vmatpush.bf16.xpose.msra.mxu0 0
        %2198 = vmatpush.bf16.xpose.msra.mxu0 0
        %2199 = vmatpush.bf16.xpose.msra.mxu0 %v2190
        %2200 = vmatmul.bf16.gmra.mxu0 %v2187
        %v2201 = vpop.f32.mrf.mxu0
        %v2202 = vadd.f32 0.0, %v2201
        %v2203 = vpop.f32.mrf.mxu0
        %2204 = vdwg.mxu0
        %v2205 = vmul.f32 %v2202, 0.17677669
        %v2206 = vadd.f32 %v2205, %v2146
        %v2207 = vsel %vm1563, %v2206, -inf
        %2208 = vmax.xlane.f32.xlu0 %v2207
        %v2209 = vpop.xlane.xlu0 %2208
        %v2210 = vsub.f32 %v2206, %v2209
        %v2211 = vmul.f32 %v2210, 1.442695
        %v2212 = vpow.pop %v2211
        %v2213 = vsel %vm1563, %v2212, 0.0
        %2214 = vadd.xlane.f32.xlu0 %v2213
        %v2215 = vpop.xlane.xlu0 %2214
        %v2216 = vrcp.pop %v2215
        %v2217 = vmul.f32 %v2212, %v2216
        %v2218 = vpack.c.bf16 %v2217, %v2217
        %2220 = vrot.lane.b32.xlu0 %v2124, 96
        %v2221 = vpop.permute.xlu0 %2220
        %v2223 = vsel %vm1563, %v2218, 0
        %v2226 = vsel %vm1579, %v2221, 0
        %2228 = vmatpush.bf16.msra.mxu0 0
        %2229 = vmatpush.bf16.msra.mxu0 0
        %2230 = vmatpush.bf16.msra.mxu0 0
        %2231 = vmatpush.bf16.msra.mxu0 0
        %2232 = vmatpush.bf16.msra.mxu0 0
        %2233 = vmatpush.bf16.msra.mxu0 0
        %2234 = vmatpush.bf16.msra.mxu0 0
        %2235 = vmatpush.bf16.msra.mxu0 %v2226
        %2236 = vmatmul.bf16.gmra.mxu0 %v2223
        %v2237 = vpop.f32.mrf.mxu0
        %v2238 = vadd.f32 0.0, %v2237
        %v2239 = vpop.f32.mrf.mxu0
        %2240 = vdwg.mxu0
        %2241 = vrot.lane.b32.xlu0 %v2122, 64
        %v2242 = vpop.permute.xlu0 %2241
        %2243 = vrot.lane.b32.xlu0 %v2123, 64
        %v2244 = vpop.permute.xlu0 %2243
        %v2246 = vsel %vm1541, %v2242, 0
        %v2249 = vsel %vm1541, %v2244, 0
        %2251 = vmatpush.bf16.xpose.msra.mxu0 0
        %2252 = vmatpush.bf16.xpose.msra.mxu0 0
        %2253 = vmatpush.bf16.xpose.msra.mxu0 0
        %2254 = vmatpush.bf16.xpose.msra.mxu0 0
        %2255 = vmatpush.bf16.xpose.msra.mxu0 0
        %2256 = vmatpush.bf16.xpose.msra.mxu0 0
        %2257 = vmatpush.bf16.xpose.msra.mxu0 0
        %2258 = vmatpush.bf16.xpose.msra.mxu0 %v2249
        %2259 = vmatmul.bf16.gmra.mxu0 %v2246
        %v2260 = vpop.f32.mrf.mxu0
        %v2261 = vadd.f32 0.0, %v2260
        %v2262 = vpop.f32.mrf.mxu0
        %2263 = vdwg.mxu0
        %v2264 = vmul.f32 %v2261, 0.17677669
        %v2265 = vadd.f32 %v2264, %v2146
        %v2266 = vsel %vm1563, %v2265, -inf
        %2267 = vmax.xlane.f32.xlu0 %v2266
        %v2268 = vpop.xlane.xlu0 %2267
        %v2269 = vsub.f32 %v2265, %v2268
        %v2270 = vmul.f32 %v2269, 1.442695
        %v2271 = vpow.pop %v2270
        %v2272 = vsel %vm1563, %v2271, 0.0
        %2273 = vadd.xlane.f32.xlu0 %v2272
        %v2274 = vpop.xlane.xlu0 %2273
        %v2275 = vrcp.pop %v2274
        %v2276 = vmul.f32 %v2271, %v2275
        %v2277 = vpack.c.bf16 %v2276, %v2276
        %2278 = vrot.lane.b32.xlu0 %v2124, 64
        %v2279 = vpop.permute.xlu0 %2278
        %v2281 = vsel %vm1563, %v2277, 0
        %v2284 = vsel %vm1579, %v2279, 0
        %2286 = vmatpush.bf16.msra.mxu0 0
        %2287 = vmatpush.bf16.msra.mxu0 0
        %2288 = vmatpush.bf16.msra.mxu0 0
        %2289 = vmatpush.bf16.msra.mxu0 0
        %2290 = vmatpush.bf16.msra.mxu0 0
        %2291 = vmatpush.bf16.msra.mxu0 0
        %2292 = vmatpush.bf16.msra.mxu0 0
        %2293 = vmatpush.bf16.msra.mxu0 %v2284
        %2294 = vmatmul.bf16.gmra.mxu0 %v2281
        %v2295 = vpop.f32.mrf.mxu0
        %v2296 = vadd.f32 0.0, %v2295
        %v2297 = vpop.f32.mrf.mxu0
        %2298 = vdwg.mxu0
        %2299 = vrot.lane.b32.xlu0 %v2122, 32
        %v2300 = vpop.permute.xlu0 %2299
        %2301 = vrot.lane.b32.xlu0 %v2123, 32
        %v2302 = vpop.permute.xlu0 %2301
        %v2304 = vsel %vm1541, %v2300, 0
        %v2307 = vsel %vm1541, %v2302, 0
        %2309 = vmatpush.bf16.xpose.msra.mxu0 0
        %2310 = vmatpush.bf16.xpose.msra.mxu0 0
        %2311 = vmatpush.bf16.xpose.msra.mxu0 0
        %2312 = vmatpush.bf16.xpose.msra.mxu0 0
        %2313 = vmatpush.bf16.xpose.msra.mxu0 0
        %2314 = vmatpush.bf16.xpose.msra.mxu0 0
        %2315 = vmatpush.bf16.xpose.msra.mxu0 0
        %2316 = vmatpush.bf16.xpose.msra.mxu0 %v2307
        %2317 = vmatmul.bf16.gmra.mxu0 %v2304
        %v2318 = vpop.f32.mrf.mxu0
        %v2319 = vadd.f32 0.0, %v2318
        %v2320 = vpop.f32.mrf.mxu0
        %2321 = vdwg.mxu0
        %v2322 = vmul.f32 %v2319, 0.17677669
        %v2323 = vadd.f32 %v2322, %v2146
        %v2324 = vsel %vm1563, %v2323, -inf
        %2325 = vmax.xlane.f32.xlu0 %v2324
        %v2326 = vpop.xlane.xlu0 %2325
        %v2327 = vsub.f32 %v2323, %v2326
        %v2328 = vmul.f32 %v2327, 1.442695
        %v2329 = vpow.pop %v2328
        %v2330 = vsel %vm1563, %v2329, 0.0
        %2331 = vadd.xlane.f32.xlu0 %v2330
        %v2332 = vpop.xlane.xlu0 %2331
        %v2333 = vrcp.pop %v2332
        %v2334 = vmul.f32 %v2329, %v2333
        %v2335 = vpack.c.bf16 %v2334, %v2334
        %2336 = vrot.lane.b32.xlu0 %v2124, 32
        %v2337 = vpop.permute.xlu0 %2336
        %v2339 = vsel %vm1563, %v2335, 0
        %v2342 = vsel %vm1579, %v2337, 0
        %2344 = vmatpush.bf16.msra.mxu0 0
        %2345 = vmatpush.bf16.msra.mxu0 0
        %2346 = vmatpush.bf16.msra.mxu0 0
        %2347 = vmatpush.bf16.msra.mxu0 0
        %2348 = vmatpush.bf16.msra.mxu0 0
        %2349 = vmatpush.bf16.msra.mxu0 0
        %2350 = vmatpush.bf16.msra.mxu0 0
        %2351 = vmatpush.bf16.msra.mxu0 %v2342
        %2352 = vmatmul.bf16.gmra.mxu0 %v2339
        %v2353 = vpop.f32.mrf.mxu0
        %v2354 = vadd.f32 0.0, %v2353
        %v2355 = vpop.f32.mrf.mxu0
        %2356 = vdwg.mxu0
        %2358 = vrot.lane.b32.xlu0 %v2238, 32
        %v2359 = vpop.permute.xlu0 %2358
        %2362 = vrot.lane.b32.xlu0 %v2296, 64
        %v2363 = vpop.permute.xlu0 %2362
        %2366 = vrot.lane.b32.xlu0 %v2354, 96
        %v2367 = vpop.permute.xlu0 %2366
        %v2369 = vsel %vm1541, %v2177, %v2359
        %v2370 = vsel %vm1786, %v2369, %v2363
        %v2371 = vsel %vm1788, %v2370, %v2367
        %v2372 = vpack.c.bf16 %v2371, %v2371
        %v2373 = vld [vmem:[%s1076] sm:$0xf]
        %v2374 = vld [vmem:[%s1076 + $0x4] sm:$0xf]
        %v2375 = vld [vmem:[%s1076 + $0x8] sm:$0xf]
        %v2376 = vld [vmem:[%s1076 + $0xc] sm:$0xf]
        %v2377 = vld [vmem:[%s1076 + $0x10] sm:$0xf]
        %v2378 = vld [vmem:[%s1076 + $0x14] sm:$0xf]
        %v2379 = vld [vmem:[%s1076 + $0x18] sm:$0xf]
        %v2380 = vld [vmem:[%s1076 + $0x1c] sm:$0xf]
        %v2381 = vld [vmem:[%s1076 + $0x20] sm:$0xf]
        %v2382 = vld [vmem:[%s1076 + $0x24] sm:$0xf]
        %v2383 = vld [vmem:[%s1076 + $0x28] sm:$0xf]
        %v2384 = vld [vmem:[%s1076 + $0x2c] sm:$0xf]
        %v2385 = vld [vmem:[%s1076 + $0x30] sm:$0xf]
        %v2386 = vld [vmem:[%s1076 + $0x34] sm:$0xf]
        %v2387 = vld [vmem:[%s1076 + $0x38] sm:$0xf]
        %v2388 = vld [vmem:[%s1076 + $0x3c] sm:$0xf]
        %v2389 = vld [vmem:[%s1300] sm:$0x1]
        %v2391 = vperm.slane %v2389, 0
        %v2409 = vunpack.c.l.b16 %v2373
        %v2410 = vunpack.c.l.b16 %v2374
        %v2411 = vunpack.c.l.b16 %v2375
        %v2412 = vunpack.c.l.b16 %v2376
        %v2413 = vunpack.c.l.b16 %v2377
        %v2414 = vunpack.c.l.b16 %v2378
        %v2415 = vunpack.c.l.b16 %v2379
        %v2416 = vunpack.c.l.b16 %v2380
        %v2417 = vunpack.c.l.b16 %v2381
        %v2418 = vunpack.c.l.b16 %v2382
        %v2419 = vunpack.c.l.b16 %v2383
        %v2420 = vunpack.c.l.b16 %v2384
        %v2421 = vunpack.c.l.b16 %v2385
        %v2422 = vunpack.c.l.b16 %v2386
        %v2423 = vunpack.c.l.b16 %v2387
        %v2424 = vunpack.c.l.b16 %v2388
        %v2425 = vpack.c.b16 %v2410, %v2409
        %v2426 = vpack.c.b16 %v2412, %v2411
        %v2427 = vpack.c.b16 %v2414, %v2413
        %v2428 = vpack.c.b16 %v2416, %v2415
        %v2429 = vpack.c.b16 %v2418, %v2417
        %v2430 = vpack.c.b16 %v2420, %v2419
        %v2431 = vpack.c.b16 %v2422, %v2421
        %v2432 = vpack.c.b16 %v2424, %v2423
        %2441 = vmatpush.bf16.msra.mxu0 %v2432
        %2442 = vmatpush.bf16.msra.mxu0 %v2431
        %2443 = vmatpush.bf16.msra.mxu0 %v2430
        %2444 = vmatpush.bf16.msra.mxu0 %v2429
        %2445 = vmatpush.bf16.msra.mxu0 %v2428
        %2446 = vmatpush.bf16.msra.mxu0 %v2427
        %2447 = vmatpush.bf16.msra.mxu0 %v2426
        %2448 = vmatpush.bf16.msra.mxu0 %v2425
        %2449 = vmatmul.bf16.gmra.mxu0 %v2372
        %v2450 = vpop.f32.mrf.mxu0
        %v2451 = vadd.f32 %v2391, %v2450
        %v2452 = vpop.f32.mrf.mxu0
        %2453 = vdwg.mxu0
        %v2454 = vadd.f32 %v1909, %v2451
        %v2455 = vld [vmem:[%s1303] sm:$0x1]
        %v2456 = vld [vmem:[%s1306] sm:$0x1]
        %2457 = vadd.xlane.f32.xlu0 %v2454
        %v2458 = vpop.xlane.xlu0 %2457
        %v2459 = vmul.f32 %v2458, %v1883
        %v2460 = vsub.f32 %v2454, %v2459
        %v2461 = vmul.f32 %v2460, %v2460
        %2462 = vadd.xlane.f32.xlu0 %v2461
        %v2463 = vpop.xlane.xlu0 %2462
        %v2464 = vmul.f32 %v2463, %v1883
        %v2465 = vadd.f32 %v2464, 1e-05
        %v2466 = vrsqrt.pop %v2465
        %v2467 = vmul.f32 %v2466, %v2465
        %v2468 = vmul.f32 %v2467, %v2466
        %v2469 = vmul.f32 0.5, %v2468
        %v2470 = vsub.f32 1.5, %v2469
        %v2471 = vmul.f32 %v2466, %v2470
        %vm2472 = vweird.f32 %v2465
        %vm2473 = vweird.f32 %v2466
        %vm2474 = vmor %vm2472, %vm2473
        %v2475 = vsel %vm2474, %v2466, %v2471
        %v2476 = vmul.f32 %v2460, %v2475
        %v2478 = vperm.slane %v2455, 0
        %v2480 = vmul.f32 %v2476, %v2478
        %v2482 = vperm.slane %v2456, 0
        %v2484 = vadd.f32 %v2480, %v2482
        %v2485 = vpack.c.bf16 %v2484, %v2484
        %v2486 = vld [vmem:[%s1086] sm:$0xff]
        %v2487 = vld [vmem:[%s1086 + $0x8] sm:$0xff]
        %v2488 = vld [vmem:[%s1086 + $0x10] sm:$0xff]
        %v2489 = vld [vmem:[%s1086 + $0x18] sm:$0xff]
        %v2490 = vld [vmem:[%s1086 + $0x20] sm:$0xff]
        %v2491 = vld [vmem:[%s1086 + $0x28] sm:$0xff]
        %v2492 = vld [vmem:[%s1086 + $0x30] sm:$0xff]
        %v2493 = vld [vmem:[%s1086 + $0x38] sm:$0xff]
        %v2494 = vld [vmem:[%s1086 + $0x40] sm:$0xff]
        %v2495 = vld [vmem:[%s1086 + $0x48] sm:$0xff]
        %v2496 = vld [vmem:[%s1086 + $0x50] sm:$0xff]
        %v2497 = vld [vmem:[%s1086 + $0x58] sm:$0xff]
        %v2498 = vld [vmem:[%s1086 + $0x60] sm:$0xff]
        %v2499 = vld [vmem:[%s1086 + $0x68] sm:$0xff]
        %v2500 = vld [vmem:[%s1086 + $0x70] sm:$0xff]
        %v2501 = vld [vmem:[%s1086 + $0x78] sm:$0xff]
        %v2502 = vld [vmem:[%s1310] sm:$0x3]
        %v2504 = vperm.slane %v2502, 0
        %v2505 = vperm.slane %v2502, 1
        %v2524 = vunpack.c.l.b16 %v2486
        %v2525 = vunpack.c.h.b16 %v2486
        %v2526 = vunpack.c.l.b16 %v2487
        %v2527 = vunpack.c.h.b16 %v2487
        %v2528 = vunpack.c.l.b16 %v2488
        %v2529 = vunpack.c.h.b16 %v2488
        %v2530 = vunpack.c.l.b16 %v2489
        %v2531 = vunpack.c.h.b16 %v2489
        %v2532 = vunpack.c.l.b16 %v2490
        %v2533 = vunpack.c.h.b16 %v2490
        %v2534 = vunpack.c.l.b16 %v2491
        %v2535 = vunpack.c.h.b16 %v2491
        %v2536 = vunpack.c.l.b16 %v2492
        %v2537 = vunpack.c.h.b16 %v2492
        %v2538 = vunpack.c.l.b16 %v2493
        %v2539 = vunpack.c.h.b16 %v2493
        %v2540 = vunpack.c.l.b16 %v2494
        %v2541 = vunpack.c.h.b16 %v2494
        %v2542 = vunpack.c.l.b16 %v2495
        %v2543 = vunpack.c.h.b16 %v2495
        %v2544 = vunpack.c.l.b16 %v2496
        %v2545 = vunpack.c.h.b16 %v2496
        %v2546 = vunpack.c.l.b16 %v2497
        %v2547 = vunpack.c.h.b16 %v2497
        %v2548 = vunpack.c.l.b16 %v2498
        %v2549 = vunpack.c.h.b16 %v2498
        %v2550 = vunpack.c.l.b16 %v2499
        %v2551 = vunpack.c.h.b16 %v2499
        %v2552 = vunpack.c.l.b16 %v2500
        %v2553 = vunpack.c.h.b16 %v2500
        %v2554 = vunpack.c.l.b16 %v2501
        %v2555 = vunpack.c.h.b16 %v2501
        %v2556 = vpack.c.b16 %v2526, %v2524
        %v2557 = vpack.c.b16 %v2527, %v2525
        %v2558 = vpack.c.b16 %v2530, %v2528
        %v2559 = vpack.c.b16 %v2531, %v2529
        %v2560 = vpack.c.b16 %v2534, %v2532
        %v2561 = vpack.c.b16 %v2535, %v2533
        %v2562 = vpack.c.b16 %v2538, %v2536
        %v2563 = vpack.c.b16 %v2539, %v2537
        %v2564 = vpack.c.b16 %v2542, %v2540
        %v2565 = vpack.c.b16 %v2543, %v2541
        %v2566 = vpack.c.b16 %v2546, %v2544
        %v2567 = vpack.c.b16 %v2547, %v2545
        %v2568 = vpack.c.b16 %v2550, %v2548
        %v2569 = vpack.c.b16 %v2551, %v2549
        %v2570 = vpack.c.b16 %v2554, %v2552
        %v2571 = vpack.c.b16 %v2555, %v2553
        %2588 = vmatpush.bf16.msra.mxu0 %v2570
        %2589 = vmatpush.bf16.msra.mxu0 %v2568
        %2590 = vmatpush.bf16.msra.mxu0 %v2566
        %2591 = vmatpush.bf16.msra.mxu0 %v2564
        %2592 = vmatpush.bf16.msra.mxu0 %v2562
        %2593 = vmatpush.bf16.msra.mxu0 %v2560
        %2594 = vmatpush.bf16.msra.mxu0 %v2558
        %2595 = vmatpush.bf16.msra.mxu0 %v2556
        %2596 = vmatmul.bf16.gmra.mxu0 %v2485
        %v2597 = vpop.f32.mrf.mxu0
        %v2598 = vadd.f32 %v2504, %v2597
        %v2599 = vpop.f32.mrf.mxu0
        %2600 = vdwg.mxu0
        %2601 = vmatpush.bf16.msra.mxu0 %v2571
        %2602 = vmatpush.bf16.msra.mxu0 %v2569
        %2603 = vmatpush.bf16.msra.mxu0 %v2567
        %2604 = vmatpush.bf16.msra.mxu0 %v2565
        %2605 = vmatpush.bf16.msra.mxu0 %v2563
        %2606 = vmatpush.bf16.msra.mxu0 %v2561
        %2607 = vmatpush.bf16.msra.mxu0 %v2559
        %2608 = vmatpush.bf16.msra.mxu0 %v2557
        %2609 = vmatmul.bf16.gmra.mxu0 %v2485
        %v2610 = vpop.f32.mrf.mxu0
        %v2611 = vadd.f32 %v2505, %v2610
        %v2612 = vpop.f32.mrf.mxu0
        %2613 = vdwg.mxu0
        %v2614 = vmax.f32 %v2598, 0.0
        %v2615 = vmax.f32 %v2611, 0.0
        %v2616 = vpack.c.bf16 %v2614, %v2614
        %v2617 = vpack.c.bf16 %v2615, %v2615
        %v2618 = vld [vmem:[%s1096] sm:$0xf]
        %v2619 = vld [vmem:[%s1096 + $0x4] sm:$0xf]
        %v2620 = vld [vmem:[%s1096 + $0x8] sm:$0xf]
        %v2621 = vld [vmem:[%s1096 + $0xc] sm:$0xf]
        %v2622 = vld [vmem:[%s1096 + $0x10] sm:$0xf]
        %v2623 = vld [vmem:[%s1096 + $0x14] sm:$0xf]
        %v2624 = vld [vmem:[%s1096 + $0x18] sm:$0xf]
        %v2625 = vld [vmem:[%s1096 + $0x1c] sm:$0xf]
        %v2626 = vld [vmem:[%s1096 + $0x20] sm:$0xf]
        %v2627 = vld [vmem:[%s1096 + $0x24] sm:$0xf]
        %v2628 = vld [vmem:[%s1096 + $0x28] sm:$0xf]
        %v2629 = vld [vmem:[%s1096 + $0x2c] sm:$0xf]
        %v2630 = vld [vmem:[%s1096 + $0x30] sm:$0xf]
        %v2631 = vld [vmem:[%s1096 + $0x34] sm:$0xf]
        %v2632 = vld [vmem:[%s1096 + $0x38] sm:$0xf]
        %v2633 = vld [vmem:[%s1096 + $0x3c] sm:$0xf]
        %v2634 = vld [vmem:[%s1096 + $0x40] sm:$0xf]
        %v2635 = vld [vmem:[%s1096 + $0x44] sm:$0xf]
        %v2636 = vld [vmem:[%s1096 + $0x48] sm:$0xf]
        %v2637 = vld [vmem:[%s1096 + $0x4c] sm:$0xf]
        %v2638 = vld [vmem:[%s1096 + $0x50] sm:$0xf]
        %v2639 = vld [vmem:[%s1096 + $0x54] sm:$0xf]
        %v2640 = vld [vmem:[%s1096 + $0x58] sm:$0xf]
        %v2641 = vld [vmem:[%s1096 + $0x5c] sm:$0xf]
        %v2642 = vld [vmem:[%s1096 + $0x60] sm:$0xf]
        %v2643 = vld [vmem:[%s1096 + $0x64] sm:$0xf]
        %v2644 = vld [vmem:[%s1096 + $0x68] sm:$0xf]
        %v2645 = vld [vmem:[%s1096 + $0x6c] sm:$0xf]
        %v2646 = vld [vmem:[%s1096 + $0x70] sm:$0xf]
        %v2647 = vld [vmem:[%s1096 + $0x74] sm:$0xf]
        %v2648 = vld [vmem:[%s1096 + $0x78] sm:$0xf]
        %v2649 = vld [vmem:[%s1096 + $0x7c] sm:$0xf]
        %v2650 = vld [vmem:[%s1313] sm:$0x1]
        %v2652 = vperm.slane %v2650, 0
        %v2686 = vunpack.c.l.b16 %v2618
        %v2687 = vunpack.c.l.b16 %v2619
        %v2688 = vunpack.c.l.b16 %v2620
        %v2689 = vunpack.c.l.b16 %v2621
        %v2690 = vunpack.c.l.b16 %v2622
        %v2691 = vunpack.c.l.b16 %v2623
        %v2692 = vunpack.c.l.b16 %v2624
        %v2693 = vunpack.c.l.b16 %v2625
        %v2694 = vunpack.c.l.b16 %v2626
        %v2695 = vunpack.c.l.b16 %v2627
        %v2696 = vunpack.c.l.b16 %v2628
        %v2697 = vunpack.c.l.b16 %v2629
        %v2698 = vunpack.c.l.b16 %v2630
        %v2699 = vunpack.c.l.b16 %v2631
        %v2700 = vunpack.c.l.b16 %v2632
        %v2701 = vunpack.c.l.b16 %v2633
        %v2702 = vunpack.c.l.b16 %v2634
        %v2703 = vunpack.c.l.b16 %v2635
        %v2704 = vunpack.c.l.b16 %v2636
        %v2705 = vunpack.c.l.b16 %v2637
        %v2706 = vunpack.c.l.b16 %v2638
        %v2707 = vunpack.c.l.b16 %v2639
        %v2708 = vunpack.c.l.b16 %v2640
        %v2709 = vunpack.c.l.b16 %v2641
        %v2710 = vunpack.c.l.b16 %v2642
        %v2711 = vunpack.c.l.b16 %v2643
        %v2712 = vunpack.c.l.b16 %v2644
        %v2713 = vunpack.c.l.b16 %v2645
        %v2714 = vunpack.c.l.b16 %v2646
        %v2715 = vunpack.c.l.b16 %v2647
        %v2716 = vunpack.c.l.b16 %v2648
        %v2717 = vunpack.c.l.b16 %v2649
        %v2718 = vpack.c.b16 %v2687, %v2686
        %v2719 = vpack.c.b16 %v2689, %v2688
        %v2720 = vpack.c.b16 %v2691, %v2690
        %v2721 = vpack.c.b16 %v2693, %v2692
        %v2722 = vpack.c.b16 %v2695, %v2694
        %v2723 = vpack.c.b16 %v2697, %v2696
        %v2724 = vpack.c.b16 %v2699, %v2698
        %v2725 = vpack.c.b16 %v2701, %v2700
        %v2726 = vpack.c.b16 %v2703, %v2702
        %v2727 = vpack.c.b16 %v2705, %v2704
        %v2728 = vpack.c.b16 %v2707, %v2706
        %v2729 = vpack.c.b16 %v2709, %v2708
        %v2730 = vpack.c.b16 %v2711, %v2710
        %v2731 = vpack.c.b16 %v2713, %v2712
        %v2732 = vpack.c.b16 %v2715, %v2714
        %v2733 = vpack.c.b16 %v2717, %v2716
        %2750 = vmatpush.bf16.msra.mxu0 %v2725
        %2751 = vmatpush.bf16.msra.mxu0 %v2724
        %2752 = vmatpush.bf16.msra.mxu0 %v2723
        %2753 = vmatpush.bf16.msra.mxu0 %v2722
        %2754 = vmatpush.bf16.msra.mxu0 %v2721
        %2755 = vmatpush.bf16.msra.mxu0 %v2720
        %2756 = vmatpush.bf16.msra.mxu0 %v2719
        %2757 = vmatpush.bf16.msra.mxu0 %v2718
        %2758 = vmatmul.bf16.gmra.mxu0 %v2616
        %v2759 = vpop.f32.mrf.mxu0
        %v2760 = vadd.f32 %v2652, %v2759
        %v2761 = vpop.f32.mrf.mxu0
        %2762 = vdwg.mxu0
        %2763 = vmatpush.bf16.msra.mxu0 %v2733
        %2764 = vmatpush.bf16.msra.mxu0 %v2732
        %2765 = vmatpush.bf16.msra.mxu0 %v2731
        %2766 = vmatpush.bf16.msra.mxu0 %v2730
        %2767 = vmatpush.bf16.msra.mxu0 %v2729
        %2768 = vmatpush.bf16.msra.mxu0 %v2728
        %2769 = vmatpush.bf16.msra.mxu0 %v2727
        %2770 = vmatpush.bf16.msra.mxu0 %v2726
        %2771 = vmatmul.bf16.gmra.mxu0 %v2617
        %v2772 = vpop.f32.mrf.mxu0
        %v2773 = vadd.f32 %v2760, %v2772
        %v2774 = vpop.f32.mrf.mxu0
        %2775 = vdwg.mxu0
        %v2776 = vadd.f32 %v2484, %v2773
        %v2777 = vld [vmem:[%s1316] sm:$0x1]
        %v2778 = vld [vmem:[%s1319] sm:$0x1]
        %2779 = vadd.xlane.f32.xlu0 %v2776
        %v2780 = vpop.xlane.xlu0 %2779
        %v2781 = vmul.f32 %v2780, %v1883
        %v2782 = vsub.f32 %v2776, %v2781
        %v2783 = vmul.f32 %v2782, %v2782
        %2784 = vadd.xlane.f32.xlu0 %v2783
        %v2785 = vpop.xlane.xlu0 %2784
        %v2786 = vmul.f32 %v2785, %v1883
        %v2787 = vadd.f32 %v2786, 1e-05
        %v2788 = vrsqrt.pop %v2787
        %v2789 = vmul.f32 %v2788, %v2787
        %v2790 = vmul.f32 %v2789, %v2788
        %v2791 = vmul.f32 0.5, %v2790
        %v2792 = vsub.f32 1.5, %v2791
        %v2793 = vmul.f32 %v2788, %v2792
        %vm2794 = vweird.f32 %v2787
        %vm2795 = vweird.f32 %v2788
        %vm2796 = vmor %vm2794, %vm2795
        %v2797 = vsel %vm2796, %v2788, %v2793
        %v2798 = vmul.f32 %v2782, %v2797
        %v2800 = vperm.slane %v2777, 0
        %v2802 = vmul.f32 %v2798, %v2800
        %v2804 = vperm.slane %v2778, 0
        %v2806 = vadd.f32 %v2802, %v2804
        %2807 = vst [vmem:[#allocation2] sm:$0xff] %v2806
        %p2808 = scmp.eq.s32.totalorder %s57, 1
        // Predicated region
        $region157: #{_lambda_.3} parent=123 // pred_check
          %p2809 = pneg %p2808
        $region158: #{_lambda_.3} parent=123 // pred_check_branch
          %2811 = sbr.rel (%p2809) target = $region160
        $region159: #{_lambda_.3} parent=123 // pred_region
          %v2812 = vpack.c.bf16 %v2806, %v2806
          %v2813 = vld [vmem:[#allocation14] sm:$0xf]
          %v2814 = vld [vmem:[#allocation14 + $0x4] sm:$0xf]
          %v2815 = vld [vmem:[#allocation14 + $0x8] sm:$0xf]
          %v2816 = vld [vmem:[#allocation14 + $0xc] sm:$0xf]
          %v2817 = vld [vmem:[#allocation14 + $0x10] sm:$0xf]
          %v2818 = vld [vmem:[#allocation14 + $0x14] sm:$0xf]
          %v2819 = vld [vmem:[#allocation14 + $0x18] sm:$0xf]
          %v2820 = vld [vmem:[#allocation14 + $0x1c] sm:$0xf]
          %v2821 = vld [vmem:[#allocation14 + $0x20] sm:$0xf]
          %v2822 = vld [vmem:[#allocation14 + $0x24] sm:$0xf]
          %v2823 = vld [vmem:[#allocation14 + $0x28] sm:$0xf]
          %v2824 = vld [vmem:[#allocation14 + $0x2c] sm:$0xf]
          %v2825 = vld [vmem:[#allocation14 + $0x30] sm:$0xf]
          %v2826 = vld [vmem:[#allocation14 + $0x34] sm:$0xf]
          %v2827 = vld [vmem:[#allocation14 + $0x38] sm:$0xf]
          %v2828 = vld [vmem:[#allocation14 + $0x3c] sm:$0xf]
          %v2829 = vld [vmem:[%s25] sm:$0x1]
          %v2831 = vperm.slane %v2829, 0
          %v2849 = vunpack.c.l.b16 %v2813
          %v2850 = vunpack.c.l.b16 %v2814
          %v2851 = vunpack.c.l.b16 %v2815
          %v2852 = vunpack.c.l.b16 %v2816
          %v2853 = vunpack.c.l.b16 %v2817
          %v2854 = vunpack.c.l.b16 %v2818
          %v2855 = vunpack.c.l.b16 %v2819
          %v2856 = vunpack.c.l.b16 %v2820
          %v2857 = vunpack.c.l.b16 %v2821
          %v2858 = vunpack.c.l.b16 %v2822
          %v2859 = vunpack.c.l.b16 %v2823
          %v2860 = vunpack.c.l.b16 %v2824
          %v2861 = vunpack.c.l.b16 %v2825
          %v2862 = vunpack.c.l.b16 %v2826
          %v2863 = vunpack.c.l.b16 %v2827
          %v2864 = vunpack.c.l.b16 %v2828
          %v2865 = vpack.c.b16 %v2850, %v2849
          %v2866 = vpack.c.b16 %v2852, %v2851
          %v2867 = vpack.c.b16 %v2854, %v2853
          %v2868 = vpack.c.b16 %v2856, %v2855
          %v2869 = vpack.c.b16 %v2858, %v2857
          %v2870 = vpack.c.b16 %v2860, %v2859
          %v2871 = vpack.c.b16 %v2862, %v2861
          %v2872 = vpack.c.b16 %v2864, %v2863
          %2881 = vmatpush.bf16.msra.mxu0 %v2872
          %2882 = vmatpush.bf16.msra.mxu0 %v2871
          %2883 = vmatpush.bf16.msra.mxu0 %v2870
          %2884 = vmatpush.bf16.msra.mxu0 %v2869
          %2885 = vmatpush.bf16.msra.mxu0 %v2868
          %2886 = vmatpush.bf16.msra.mxu0 %v2867
          %2887 = vmatpush.bf16.msra.mxu0 %v2866
          %2888 = vmatpush.bf16.msra.mxu0 %v2865
          %2889 = vmatmul.bf16.gmra.mxu0 %v2812
          %v2890 = vpop.f32.mrf.mxu0
          %v2891 = vadd.f32 %v2831, %v2890
          %v2892 = vpop.f32.mrf.mxu0
          %2893 = vdwg.mxu0
          %2894 = vst [vmem:[%s1257] sm:$0xff] %v2891
        $region160: #{_lambda_.3} parent=123 // pred_fallthru
          _
        %s2895 = sand.u32 %s738, 1
        %s2896 = scalar_lea.sflag [#allocation5], %s2895
        %s2897 = sand.u32 %s738, 1
        %s2898 = smul.addr %s2897, 8
        %s2899 = scalar_lea.vmem [#allocation15], %s2898
        // Predicated region
        $region161: #{_lambda_.3} parent=123 // pred_check
          %p2900 = pneg %p748
        $region162: #{_lambda_.3} parent=123 // pred_check_branch
          %2902 = sbr.rel (%p2900) target = $region164
        $region163: #{_lambda_.3} parent=123 // pred_region
          %2904 = vsyncadd %s2896, 0
          %s2905 = smul.addr %s56, 8
          %s2906 = scalar_lea.hbm %s26, %s2905
          %s2908 = sshll.u32 %s2899, 4
          %s2909 = int_to_ptr.vmem [resolvable:$true] %s2908
          %s2910 = sshll.u32 %s2906, 4
          %s2911 = int_to_ptr.hbm [resolvable:$true] %s2910
          %2913 = dma.vmem_to_hbm [thread:$0]  %s2909, 128, %s2911, %s2896
        $region164: #{_lambda_.3} parent=123 // pred_fallthru
          _
      $region124: #{_lambda_.3} parent=5 // pred_fallthru
        _
      %p2914 = scmp.le.s32.totalorder 2, %s47
      // Predicated region
      $region165: #{_lambda_.3} parent=5 // pred_check
        %p2915 = pneg %p2914
      $region166: #{_lambda_.3} parent=5 // pred_check_branch
        %2917 = sbr.rel (%p2915) target = $region168
      $region167: #{_lambda_.3} parent=5 // pred_region
        %s2918 = ssub.s32 %s47, 2
        // Predicated region
        $region169: #{_lambda_.3} parent=167 // pred_check
          %p2919 = pneg %p754
        $region170: #{_lambda_.3} parent=167 // pred_check_branch
          %2921 = sbr.rel (%p2919) target = $region172
        $region171: #{_lambda_.3} parent=167 // pred_region
          %s2922 = sand.u32 %s739, 1
          %s2923 = scalar_lea.sflag [#allocation5], %s2922
          %s2924 = sand.u32 %s739, 1
          %s2925 = smul.addr %s2924, 8
          %s2926 = scalar_lea.vmem [#allocation15], %s2925
          %2928 = dma.done %s2923, 128
        $region172: #{_lambda_.3} parent=167 // pred_fallthru
          _
      $region168: #{_lambda_.3} parent=5 // pred_fallthru
        _
    $region6: #{_lambda_.3} parent=1 // loop_footer
      %s51 = sadd.s32 1, %s47
    $region7: #{_lambda_.3} parent=1 // loop_footer_branch
      %46 = sbr.rel target = $region3
    $region8: #{_lambda_.3} parent=1 // loop_exit
      _
    %2929 = vsyncpa [#allocation4], 1
    %s2930 = scalar_lea.sflag [#allocation4], 1
    %2931 = vsyncpa %s2930, 1
    %2932 = vsyncpa [#allocation7], 1
    %s2933 = scalar_lea.sflag [#allocation7], 1
    %2934 = vsyncpa %s2933, 1
    %2935 = vsyncpa [#allocation10], 1
    %s2936 = scalar_lea.sflag [#allocation10], 1
    %2937 = vsyncpa %s2936, 1
    %2938 = vsyncpa [#allocation13], 1
    %s2939 = scalar_lea.sflag [#allocation13], 1
    %2940 = vsyncpa %s2939, 1
    %2941 = vsyncpa [#allocation5], 1
    %s2942 = scalar_lea.sflag [#allocation5], 1
    %2943 = vsyncpa %s2942, 1

</llo_original>
